<compile_context>
chip_gen: v7x
topology: tpu7x:2x2x1
jax: 0.10.0
libtpu: 0.0.40
codegen_flags: <defaults>
</compile_context>

<pallas_src>
import math
import functools

import jax
import jax.numpy as jnp
from jax.experimental import pallas as pl
from jax.experimental.pallas import tpu as pltpu


# ------------------------------- kernel ------------------------------------

def make_kernel(num_layers, num_heads):
    """Builds the per-(batch, layer) Pallas kernel body."""
    H = num_heads
    L = num_layers

    def _layer_norm(x, g, b, ones_d, eps=1e-5):
        # Two-pass LN with stats computed on the MXU (no XLU lane reductions):
        #   mu = x @ (1/D);  var = (x - mu)^2 @ (1/D)
        f32 = jnp.float32
        mu = jnp.dot(x, ones_d, preferred_element_type=f32)          # (S, 1)
        xc = x - mu
        var = jnp.dot(xc * xc, ones_d, preferred_element_type=f32)   # (S, 1)
        return xc * jax.lax.rsqrt(var + eps) * g + b

    def kernel(x_ref, pe_ref,
               wq_ref, bq_ref, wk_ref, bk_ref, wv_ref, bv_ref, wo_ref, bo_ref,
               ln1g_ref, ln1b_ref, w1_ref, b1_ref, w2_ref, b2_ref,
               ln2g_ref, ln2b_ref, wout_ref, bout_ref,
               out_ref, x_carry):
        f32 = jnp.float32
        S, D = x_carry.shape
        Dh = D // H
        HS = H * S
        scale = 1.0 / math.sqrt(Dh)
        l = pl.program_id(1)

        # ---- head-merge constants, built in-kernel (iota + compares only;
        #      avoids int div/mod and removes 3 HBM inputs).
        n_col = jax.lax.broadcasted_iota(jnp.int32, (HS, 1), 0)   # wide-row id
        n_row = jax.lax.broadcasted_iota(jnp.int32, (1, HS), 1)
        d_row = jax.lax.broadcasted_iota(jnp.int32, (1, D), 1)    # feature id
        s_col = jax.lax.broadcasted_iota(jnp.int32, (HS, S), 1)   # key position

        def head_of(idx, blk):
            # head id = number of block boundaries crossed (no div/mod).
            h = jnp.zeros_like(idx)
            for hh in range(1, H):
                h = h + (idx >= hh * blk).astype(jnp.int32)
            return h

        head_n_col = head_of(n_col, S)            # (HS, 1)
        head_n_row = head_of(n_row, S)            # (1, HS)
        head_d_row = head_of(d_row, Dh)           # (1, D)
        pos_n_col = n_col - head_n_col * S        # position within head block

        # expand[n, s]  = 1 iff s == n mod S          (token replication)
        # mask_kd[n, d] = 1 iff head(n) == head(d)    (block-diagonal K/V)
        # gg[n, m]      = 1 iff head(n) == head(m)    (per-head softmax sums)
        expand = jnp.where(pos_n_col == s_col, 1.0, 0.0).astype(f32)      # (HS, S)
        mask_kd = jnp.where(head_n_col == head_d_row, 1.0, 0.0).astype(f32)
        gg = jnp.where(head_n_col == head_n_row, 1.0, 0.0).astype(f32)    # (HS, HS)
        head_sel = [jnp.where(head_n_row == h, 1.0, 0.0).astype(f32)
                    for h in range(H)]                                    # (1, HS)
        neg_mask = [(sel - 1.0) * 1e30 for sel in head_sel]               # 0 / -1e30
        ones_d = jnp.full((D, 1), 1.0 / D, f32)

        # ---- layer input: activation carried in VMEM scratch across the
        #      "arbitrary" layer axis; initialize once per batch element.
        @pl.when(l == 0)
        def _():
            x_carry[...] = x_ref[...] + pe_ref[...]        # dropout == identity

        x = x_carry[...]                                    # (S, D)

        # ---- multi-head self-attention, all heads fused -------------------
        q = jnp.dot(x, wq_ref[...], preferred_element_type=f32) + bq_ref[...]
        q = q * scale                                       # fold 1/sqrt(Dh) into q
        k = jnp.dot(x, wk_ref[...], preferred_element_type=f32) + bk_ref[...]
        v = jnp.dot(x, wv_ref[...], preferred_element_type=f32) + bv_ref[...]

        # Replicate tokens per head along the width-(H*S) axis AFTER projecting
        # (11-row weight matmuls instead of 44-row ones), then block-diag mask.
        k_t = jnp.dot(expand, k, preferred_element_type=f32)   # (HS, D)
        v_t = jnp.dot(expand, v, preferred_element_type=f32)
        kbd = k_t * mask_kd
        vbd = v_t * mask_kd

        # scores[q, h*S + key] = <q_head_h[q], k_head_h[key]>  (one matmul)
        scores = jax.lax.dot_general(
            q, kbd, (((1,), (1,)), ((), ())), preferred_element_type=f32)  # (S, HS)

        # Per-head max shift (fixes the global-max underflow issue): masked max
        # per head block, then scattered back along lanes with head selectors.
        m_blk = jnp.zeros_like(scores)
        for h in range(H):
            m_h = jnp.max(scores + neg_mask[h], axis=-1, keepdims=True)   # (S, 1)
            m_blk = m_blk + m_h * head_sel[h]
        e = jnp.exp(scores - m_blk)                           # <= 1 everywhere
        denom = jnp.dot(e, gg, preferred_element_type=f32)    # per-head sums, >= 1
        p = e / denom                                         # exact (review concern)

        # One matmul gives every head's context, already concatenated.
        ctx = jnp.dot(p, vbd, preferred_element_type=f32)     # (S, D)
        attn = jnp.dot(ctx, wo_ref[...], preferred_element_type=f32) + bo_ref[...]

        x = _layer_norm(x + attn, ln1g_ref[...], ln1b_ref[...], ones_d)

        # ---- feed-forward: Linear -> ReLU -> Linear ------------------------
        h1 = jnp.dot(x, w1_ref[...], preferred_element_type=f32) + b1_ref[...]
        h1 = jnp.maximum(h1, 0.0)
        h2 = jnp.dot(h1, w2_ref[...], preferred_element_type=f32) + b2_ref[...]

        x = _layer_norm(x + h2, ln2g_ref[...], ln2b_ref[...], ones_d)

        x_carry[...] = x

        # ---- mean pool (via MXU) + output projection on the last layer -----
        @pl.when(l == L - 1)
        def _():
            pool_w = jnp.full((1, S), 1.0 / S, f32)
            pooled = jnp.dot(pool_w, x, preferred_element_type=f32)       # (1, D)
            out_ref[...] = jnp.dot(pooled, wout_ref[...],
                                   preferred_element_type=f32) + bout_ref[...]

    return kernel


# ----------------------------- parameter setup -----------------------------

def make_positional_encoding(d_model, max_len):
    position = jnp.arange(max_len, dtype=jnp.float32)[:, None]
    div_term = jnp.exp(jnp.arange(0, d_model, 2, dtype=jnp.float32)
                       * (-math.log(10000.0) / d_model))
    angles = position * div_term
    pe = jnp.zeros((max_len, d_model), jnp.float32)
    pe = pe.at[:, 0::2].set(jnp.sin(angles))
    pe = pe.at[:, 1::2].set(jnp.cos(angles))
    return pe


def init_params(key, grid_vocab, coord_vocab, d, num_layers, d_ff,
                num_actions, max_seq_len):
    ks = jax.random.split(key, 10)
    s = 0.02
    f32 = jnp.float32
    L = num_layers
    # TODO(synk): for production sizes cast weights (and MXU operands) to bf16.
    return {
        'grid_emb': jax.random.normal(ks[0], (grid_vocab, d), f32),
        'row_emb':  jax.random.normal(ks[1], (coord_vocab, d // 2), f32),
        'col_emb':  jax.random.normal(ks[2], (coord_vocab, d // 2), f32),
        'wq': jax.random.normal(ks[3], (L, d, d), f32) * s,
        'wk': jax.random.normal(ks[4], (L, d, d), f32) * s,
        'wv': jax.random.normal(ks[5], (L, d, d), f32) * s,
        'wo': jax.random.normal(ks[6], (L, d, d), f32) * s,
        'bq': jnp.zeros((L, d), f32),
        'bk': jnp.zeros((L, d), f32),
        'bv': jnp.zeros((L, d), f32),
        'bo': jnp.zeros((L, d), f32),
        'ln1g': jnp.ones((L, d), f32),
        'ln1b': jnp.zeros((L, d), f32),
        'w1': jax.random.normal(ks[7], (L, d, d_ff), f32) * s,
        'b1': jnp.zeros((L, d_ff), f32),
        'w2': jax.random.normal(ks[8], (L, d_ff, d), f32) * s,
        'b2': jnp.zeros((L, d), f32),
        'ln2g': jnp.ones((L, d), f32),
        'ln2b': jnp.zeros((L, d), f32),
        'wout': jax.random.normal(ks[9], (d, num_actions), f32) * s,
        'bout': jnp.zeros((num_actions,), f32),
        'pe': make_positional_encoding(d, max_seq_len),
    }


# ------------------------------- forward pass ------------------------------

@functools.partial(jax.jit, static_argnames=('num_layers', 'num_heads',
                                             'num_actions'))
def pathfinding_transformer_forward(params, flat_patch, cur_pos, goal_pos, *,
                                    num_layers, num_heads, num_actions):
    # --- embedding glue (gathers) in plain JAX ---
    patch_emb = jnp.take(params['grid_emb'], flat_patch, axis=0)     # (B, P, D)

    def embed_pos(pos):
        r = jnp.take(params['row_emb'], pos[:, 0], axis=0)
        c = jnp.take(params['col_emb'], pos[:, 1], axis=0)
        return jnp.concatenate([r, c], axis=-1)[:, None, :]          # (B, 1, D)

    seq = jnp.concatenate(
        [patch_emb, embed_pos(cur_pos), embed_pos(goal_pos)], axis=1)  # (B, S, D)
    B, S, D = seq.shape
    F = params['w1'].shape[-1]
    A = num_actions
    L = num_layers
    pe = params['pe'][:S]                                            # (S, D)
    # dropout(p=0.1) is identity in eval mode.
    # TODO(synk): at larger S, pad S to a sublane multiple + mask and fold
    # (B,S)->(B*S) for the per-token matmuls (small win at S=11, skipped).

    as3 = lambda a: a[:, None, :]   # (L, D) -> (L, 1, D) for clean 2-D broadcast

    args = (seq, pe,
            params['wq'], as3(params['bq']),
            params['wk'], as3(params['bk']),
            params['wv'], as3(params['bv']),
            params['wo'], as3(params['bo']),
            as3(params['ln1g']), as3(params['ln1b']),
            params['w1'], as3(params['b1']),
            params['w2'], as3(params['b2']),
            as3(params['ln2g']), as3(params['ln2b']),
            params['wout'], params['bout'][None, :])

    def layer_spec(*dims):      # per-layer block, leading L dim squeezed
        return pl.BlockSpec((None,) + dims, lambda b, l: (l,) + (0,) * len(dims))

    def shared_spec(*dims):     # same block every grid step (no re-fetch)
        return pl.BlockSpec(dims, lambda b, l: (0,) * len(dims))

    in_specs = [
        pl.BlockSpec((None, S, D), lambda b, l: (b, 0, 0)),   # seq: 1 batch row
        shared_spec(S, D),                                    # pe
        layer_spec(D, D), layer_spec(1, D),                   # wq, bq
        layer_spec(D, D), layer_spec(1, D),                   # wk, bk
        layer_spec(D, D), layer_spec(1, D),                   # wv, bv
        layer_spec(D, D), layer_spec(1, D),                   # wo, bo
        layer_spec(1, D), layer_spec(1, D),                   # ln1g, ln1b
        layer_spec(D, F), layer_spec(1, F),                   # w1, b1
        layer_spec(F, D), layer_spec(1, D),                   # w2, b2
        layer_spec(1, D), layer_spec(1, D),                   # ln2g, ln2b
        shared_spec(D, A), shared_spec(1, A),                 # wout, bout
    ]

    kernel = make_kernel(num_layers, num_heads)
    out3 = pl.pallas_call(
        kernel,
        out_shape=jax.ShapeDtypeStruct((B, 1, A), jnp.float32),
        grid=(B, L),
        in_specs=in_specs,
        out_specs=pl.BlockSpec((None, 1, A), lambda b, l: (b, 0, 0)),
        scratch_shapes=[pltpu.VMEM((S, D), jnp.float32)],     # carried activation
        compiler_params=pltpu.CompilerParams(
            dimension_semantics=("parallel", "arbitrary")),
    )(*args)
    return out3[:, 0, :]                                      # (B, A)


# ----------------------------------- main -----------------------------------

if __name__ == "__main__":
    # Small, module-consistent shapes.
    BATCH = 2
    GRID_VOCAB = 2            # free / obstacle
    COORD_VOCAB = 16
    EMBED_DIM = 32
    NUM_HEADS = 4
    NUM_LAYERS = 2
    D_FF = 64
    NUM_ACTIONS = 4
    PATCH_LEN = 9             # 3x3 local patch
    MAX_SEQ_LEN = PATCH_LEN + 2

    root = jax.random.PRNGKey(0)
    k_params, k_patch, k_cur, k_goal = jax.random.split(root, 4)

    params = init_params(k_params, GRID_VOCAB, COORD_VOCAB, EMBED_DIM,
                         NUM_LAYERS, D_FF, NUM_ACTIONS, MAX_SEQ_LEN)

    flat_patch = jax.random.randint(k_patch, (BATCH, PATCH_LEN), 0, GRID_VOCAB,
                                    dtype=jnp.int32)
    cur_pos = jax.random.randint(k_cur, (BATCH, 2), 0, COORD_VOCAB,
                                 dtype=jnp.int32)
    goal_pos = jax.random.randint(k_goal, (BATCH, 2), 0, COORD_VOCAB,
                                  dtype=jnp.int32)

    logits = pathfinding_transformer_forward(
        params, flat_patch, cur_pos, goal_pos,
        num_layers=NUM_LAYERS, num_heads=NUM_HEADS, num_actions=NUM_ACTIONS)
    jax.block_until_ready(logits)
    assert logits.shape == (BATCH, NUM_ACTIONS)
    assert bool(jnp.all(jnp.isfinite(logits)))
    print("KERNEL_OK")
</pallas_src>

<mosaic_0001>
module attributes {stable_mosaic.version = 11 : i64} {
  func.func @kernel(%arg0: i32, %arg1: i32, %arg2: memref<1x11x32xf32, #tpu.memory_space<vmem>>, %arg3: memref<11x32xf32, #tpu.memory_space<vmem>>, %arg4: memref<1x32x32xf32, #tpu.memory_space<vmem>>, %arg5: memref<1x1x32xf32, #tpu.memory_space<vmem>>, %arg6: memref<1x32x32xf32, #tpu.memory_space<vmem>>, %arg7: memref<1x1x32xf32, #tpu.memory_space<vmem>>, %arg8: memref<1x32x32xf32, #tpu.memory_space<vmem>>, %arg9: memref<1x1x32xf32, #tpu.memory_space<vmem>>, %arg10: memref<1x32x32xf32, #tpu.memory_space<vmem>>, %arg11: memref<1x1x32xf32, #tpu.memory_space<vmem>>, %arg12: memref<1x1x32xf32, #tpu.memory_space<vmem>>, %arg13: memref<1x1x32xf32, #tpu.memory_space<vmem>>, %arg14: memref<1x32x64xf32, #tpu.memory_space<vmem>>, %arg15: memref<1x1x64xf32, #tpu.memory_space<vmem>>, %arg16: memref<1x64x32xf32, #tpu.memory_space<vmem>>, %arg17: memref<1x1x32xf32, #tpu.memory_space<vmem>>, %arg18: memref<1x1x32xf32, #tpu.memory_space<vmem>>, %arg19: memref<1x1x32xf32, #tpu.memory_space<vmem>>, %arg20: memref<32x4xf32, #tpu.memory_space<vmem>>, %arg21: memref<1x4xf32, #tpu.memory_space<vmem>>, %arg22: memref<1x1x4xf32, #tpu.memory_space<vmem>>, %arg23: memref<11x32xf32, #tpu.memory_space<vmem>>) attributes {dimension_semantics = [#tpu.dimension_semantics<parallel>, #tpu.dimension_semantics<arbitrary>], iteration_bounds = array<i64: 2, 2>, scalar_prefetch = 0 : i64, scratch_operands = 1 : i64, tpu.core_type = #tpu.core_type<tc>, window_params = [{transform_indices = @transform_0, window_bounds = array<i64: 1, 11, 32>}, {pipeline_mode = #tpu.pipeline_mode<synchronous>, transform_indices = @transform_1, window_bounds = array<i64: 11, 32>}, {transform_indices = @transform_2, window_bounds = array<i64: 1, 32, 32>}, {transform_indices = @transform_3, window_bounds = array<i64: 1, 1, 32>}, {transform_indices = @transform_4, window_bounds = array<i64: 1, 32, 32>}, {transform_indices = @transform_5, window_bounds = array<i64: 1, 1, 32>}, {transform_indices = @transform_6, window_bounds = array<i64: 1, 32, 32>}, {transform_indices = @transform_7, window_bounds = array<i64: 1, 1, 32>}, {transform_indices = @transform_8, window_bounds = array<i64: 1, 32, 32>}, {transform_indices = @transform_9, window_bounds = array<i64: 1, 1, 32>}, {transform_indices = @transform_10, window_bounds = array<i64: 1, 1, 32>}, {transform_indices = @transform_11, window_bounds = array<i64: 1, 1, 32>}, {transform_indices = @transform_12, window_bounds = array<i64: 1, 32, 64>}, {transform_indices = @transform_13, window_bounds = array<i64: 1, 1, 64>}, {transform_indices = @transform_14, window_bounds = array<i64: 1, 64, 32>}, {transform_indices = @transform_15, window_bounds = array<i64: 1, 1, 32>}, {transform_indices = @transform_16, window_bounds = array<i64: 1, 1, 32>}, {transform_indices = @transform_17, window_bounds = array<i64: 1, 1, 32>}, {pipeline_mode = #tpu.pipeline_mode<synchronous>, transform_indices = @transform_18, window_bounds = array<i64: 32, 4>}, {pipeline_mode = #tpu.pipeline_mode<synchronous>, transform_indices = @transform_19, window_bounds = array<i64: 1, 4>}, {transform_indices = @transform_20, window_bounds = array<i64: 1, 1, 4>}]} {
    %0 = tpu.iota {dimensions = array<i32: 0>} : vector<44x1xi32>
    %1 = tpu.iota {dimensions = array<i32: 1>} : vector<1x44xi32>
    %2 = tpu.iota {dimensions = array<i32: 1>} : vector<1x32xi32>
    %3 = tpu.iota {dimensions = array<i32: 1>} : vector<44x11xi32>
    %c0_i32 = arith.constant 0 : i32
    %4 = vector.broadcast %c0_i32 : i32 to vector<44x1xi32>
    %c11_i32 = arith.constant 11 : i32
    %5 = vector.broadcast %c11_i32 : i32 to vector<44x1xi32>
    %6 = arith.cmpi sge, %0, %5 : vector<44x1xi32>
    %7 = arith.extui %6 : vector<44x1xi1> to vector<44x1xi32>
    %8 = arith.addi %4, %7 : vector<44x1xi32>
    %c22_i32 = arith.constant 22 : i32
    %9 = vector.broadcast %c22_i32 : i32 to vector<44x1xi32>
    %10 = arith.cmpi sge, %0, %9 : vector<44x1xi32>
    %11 = arith.extui %10 : vector<44x1xi1> to vector<44x1xi32>
    %12 = arith.addi %8, %11 : vector<44x1xi32>
    %c33_i32 = arith.constant 33 : i32
    %13 = vector.broadcast %c33_i32 : i32 to vector<44x1xi32>
    %14 = arith.cmpi sge, %0, %13 : vector<44x1xi32>
    %15 = arith.extui %14 : vector<44x1xi1> to vector<44x1xi32>
    %16 = arith.addi %12, %15 : vector<44x1xi32>
    %c0_i32_0 = arith.constant 0 : i32
    %17 = vector.broadcast %c0_i32_0 : i32 to vector<1x44xi32>
    %c11_i32_1 = arith.constant 11 : i32
    %18 = vector.broadcast %c11_i32_1 : i32 to vector<1x44xi32>
    %19 = arith.cmpi sge, %1, %18 : vector<1x44xi32>
    %20 = arith.extui %19 : vector<1x44xi1> to vector<1x44xi32>
    %21 = arith.addi %17, %20 : vector<1x44xi32>
    %c22_i32_2 = arith.constant 22 : i32
    %22 = vector.broadcast %c22_i32_2 : i32 to vector<1x44xi32>
    %23 = arith.cmpi sge, %1, %22 : vector<1x44xi32>
    %24 = arith.extui %23 : vector<1x44xi1> to vector<1x44xi32>
    %25 = arith.addi %21, %24 : vector<1x44xi32>
    %c33_i32_3 = arith.constant 33 : i32
    %26 = vector.broadcast %c33_i32_3 : i32 to vector<1x44xi32>
    %27 = arith.cmpi sge, %1, %26 : vector<1x44xi32>
    %28 = arith.extui %27 : vector<1x44xi1> to vector<1x44xi32>
    %29 = arith.addi %25, %28 : vector<1x44xi32>
    %c0_i32_4 = arith.constant 0 : i32
    %30 = vector.broadcast %c0_i32_4 : i32 to vector<1x32xi32>
    %c8_i32 = arith.constant 8 : i32
    %31 = vector.broadcast %c8_i32 : i32 to vector<1x32xi32>
    %32 = arith.cmpi sge, %2, %31 : vector<1x32xi32>
    %33 = arith.extui %32 : vector<1x32xi1> to vector<1x32xi32>
    %34 = arith.addi %30, %33 : vector<1x32xi32>
    %c16_i32 = arith.constant 16 : i32
    %35 = vector.broadcast %c16_i32 : i32 to vector<1x32xi32>
    %36 = arith.cmpi sge, %2, %35 : vector<1x32xi32>
    %37 = arith.extui %36 : vector<1x32xi1> to vector<1x32xi32>
    %38 = arith.addi %34, %37 : vector<1x32xi32>
    %c24_i32 = arith.constant 24 : i32
    %39 = vector.broadcast %c24_i32 : i32 to vector<1x32xi32>
    %40 = arith.cmpi sge, %2, %39 : vector<1x32xi32>
    %41 = arith.extui %40 : vector<1x32xi1> to vector<1x32xi32>
    %42 = arith.addi %38, %41 : vector<1x32xi32>
    %c11_i32_5 = arith.constant 11 : i32
    %43 = vector.broadcast %c11_i32_5 : i32 to vector<44x1xi32>
    %44 = arith.muli %16, %43 : vector<44x1xi32>
    %45 = arith.subi %0, %44 : vector<44x1xi32>
    %46 = vector.broadcast %45 : vector<44x1xi32> to vector<44x11xi32>
    %47 = arith.cmpi eq, %46, %3 : vector<44x11xi32>
    %cst = arith.constant 1.000000e+00 : f32
    %cst_6 = arith.constant 0.000000e+00 : f32
    %48 = vector.broadcast %cst : f32 to vector<44x11xf32>
    %49 = vector.broadcast %cst_6 : f32 to vector<44x11xf32>
    %50 = arith.select %47, %48, %49 : vector<44x11xi1>, vector<44x11xf32>
    %51 = vector.broadcast %16 : vector<44x1xi32> to vector<44x32xi32>
    %52 = vector.broadcast %42 : vector<1x32xi32> to vector<44x32xi32>
    %53 = arith.cmpi eq, %51, %52 : vector<44x32xi32>
    %cst_7 = arith.constant 1.000000e+00 : f32
    %cst_8 = arith.constant 0.000000e+00 : f32
    %54 = vector.broadcast %cst_7 : f32 to vector<44x32xf32>
    %55 = vector.broadcast %cst_8 : f32 to vector<44x32xf32>
    %56 = arith.select %53, %54, %55 : vector<44x32xi1>, vector<44x32xf32>
    %57 = vector.broadcast %16 : vector<44x1xi32> to vector<44x44xi32>
    %58 = vector.broadcast %29 : vector<1x44xi32> to vector<44x44xi32>
    %59 = arith.cmpi eq, %57, %58 : vector<44x44xi32>
    %cst_9 = arith.constant 1.000000e+00 : f32
    %cst_10 = arith.constant 0.000000e+00 : f32
    %60 = vector.broadcast %cst_9 : f32 to vector<44x44xf32>
    %61 = vector.broadcast %cst_10 : f32 to vector<44x44xf32>
    %62 = arith.select %59, %60, %61 : vector<44x44xi1>, vector<44x44xf32>
    %c0_i32_11 = arith.constant 0 : i32
    %63 = vector.broadcast %c0_i32_11 : i32 to vector<1x44xi32>
    %64 = arith.cmpi eq, %29, %63 : vector<1x44xi32>
    %cst_12 = arith.constant 1.000000e+00 : f32
    %cst_13 = arith.constant 0.000000e+00 : f32
    %65 = vector.broadcast %cst_12 : f32 to vector<1x44xf32>
    %66 = vector.broadcast %cst_13 : f32 to vector<1x44xf32>
    %67 = arith.select %64, %65, %66 : vector<1x44xi1>, vector<1x44xf32>
    %c1_i32 = arith.constant 1 : i32
    %68 = vector.broadcast %c1_i32 : i32 to vector<1x44xi32>
    %69 = arith.cmpi eq, %29, %68 : vector<1x44xi32>
    %cst_14 = arith.constant 1.000000e+00 : f32
    %cst_15 = arith.constant 0.000000e+00 : f32
    %70 = vector.broadcast %cst_14 : f32 to vector<1x44xf32>
    %71 = vector.broadcast %cst_15 : f32 to vector<1x44xf32>
    %72 = arith.select %69, %70, %71 : vector<1x44xi1>, vector<1x44xf32>
    %c2_i32 = arith.constant 2 : i32
    %73 = vector.broadcast %c2_i32 : i32 to vector<1x44xi32>
    %74 = arith.cmpi eq, %29, %73 : vector<1x44xi32>
    %cst_16 = arith.constant 1.000000e+00 : f32
    %cst_17 = arith.constant 0.000000e+00 : f32
    %75 = vector.broadcast %cst_16 : f32 to vector<1x44xf32>
    %76 = vector.broadcast %cst_17 : f32 to vector<1x44xf32>
    %77 = arith.select %74, %75, %76 : vector<1x44xi1>, vector<1x44xf32>
    %c3_i32 = arith.constant 3 : i32
    %78 = vector.broadcast %c3_i32 : i32 to vector<1x44xi32>
    %79 = arith.cmpi eq, %29, %78 : vector<1x44xi32>
    %cst_18 = arith.constant 1.000000e+00 : f32
    %cst_19 = arith.constant 0.000000e+00 : f32
    %80 = vector.broadcast %cst_18 : f32 to vector<1x44xf32>
    %81 = vector.broadcast %cst_19 : f32 to vector<1x44xf32>
    %82 = arith.select %79, %80, %81 : vector<1x44xi1>, vector<1x44xf32>
    %cst_20 = arith.constant 1.000000e+00 : f32
    %83 = vector.broadcast %cst_20 : f32 to vector<1x44xf32>
    %84 = arith.subf %67, %83 : vector<1x44xf32>
    %cst_21 = arith.constant 1.000000e+30 : f32
    %85 = vector.broadcast %cst_21 : f32 to vector<1x44xf32>
    %86 = arith.mulf %84, %85 : vector<1x44xf32>
    %cst_22 = arith.constant 1.000000e+00 : f32
    %87 = vector.broadcast %cst_22 : f32 to vector<1x44xf32>
    %88 = arith.subf %72, %87 : vector<1x44xf32>
    %cst_23 = arith.constant 1.000000e+30 : f32
    %89 = vector.broadcast %cst_23 : f32 to vector<1x44xf32>
    %90 = arith.mulf %88, %89 : vector<1x44xf32>
    %cst_24 = arith.constant 1.000000e+00 : f32
    %91 = vector.broadcast %cst_24 : f32 to vector<1x44xf32>
    %92 = arith.subf %77, %91 : vector<1x44xf32>
    %cst_25 = arith.constant 1.000000e+30 : f32
    %93 = vector.broadcast %cst_25 : f32 to vector<1x44xf32>
    %94 = arith.mulf %92, %93 : vector<1x44xf32>
    %cst_26 = arith.constant 1.000000e+00 : f32
    %95 = vector.broadcast %cst_26 : f32 to vector<1x44xf32>
    %96 = arith.subf %82, %95 : vector<1x44xf32>
    %cst_27 = arith.constant 1.000000e+30 : f32
    %97 = vector.broadcast %cst_27 : f32 to vector<1x44xf32>
    %98 = arith.mulf %96, %97 : vector<1x44xf32>
    %cst_28 = arith.constant 3.125000e-02 : f32
    %99 = vector.broadcast %cst_28 : f32 to vector<32x1xf32>
    %c0_i32_29 = arith.constant 0 : i32
    %100 = arith.cmpi eq, %arg1, %c0_i32_29 : i32
    %101 = arith.extui %100 : i1 to i32
    %c0_i32_30 = arith.constant 0 : i32
    %102 = arith.cmpi ne, %101, %c0_i32_30 : i32
    scf.if %102 {
      %c0_108 = arith.constant 0 : index
      %c0_109 = arith.constant 0 : index
      %c0_110 = arith.constant 0 : index
      %235 = vector.load %arg2[%c0_108, %c0_109, %c0_110] : memref<1x11x32xf32, #tpu.memory_space<vmem>>, vector<1x11x32xf32>
      %236 = vector.shape_cast %235 : vector<1x11x32xf32> to vector<11x32xf32>
      %c0_111 = arith.constant 0 : index
      %c0_112 = arith.constant 0 : index
      %237 = vector.load %arg3[%c0_111, %c0_112] : memref<11x32xf32, #tpu.memory_space<vmem>>, vector<11x32xf32>
      %238 = arith.addf %236, %237 : vector<11x32xf32>
      %c0_113 = arith.constant 0 : index
      %c0_114 = arith.constant 0 : index
      %239 = vector.load %arg23[%c0_113, %c0_114] : memref<11x32xf32, #tpu.memory_space<vmem>>, vector<11x32xf32>
      tpu.vector_store %arg23[%c0_113, %c0_114], %238 {strides = array<i32>} : memref<11x32xf32, #tpu.memory_space<vmem>>, vector<11x32xf32>,
    } else {
    }
    %c0 = arith.constant 0 : index
    %c0_31 = arith.constant 0 : index
    %103 = vector.load %arg23[%c0, %c0_31] : memref<11x32xf32, #tpu.memory_space<vmem>>, vector<11x32xf32>
    %c0_32 = arith.constant 0 : index
    %c0_33 = arith.constant 0 : index
    %c0_34 = arith.constant 0 : index
    %104 = vector.load %arg4[%c0_32, %c0_33, %c0_34] : memref<1x32x32xf32, #tpu.memory_space<vmem>>, vector<1x32x32xf32>
    %105 = vector.shape_cast %104 : vector<1x32x32xf32> to vector<32x32xf32>
    %cst_35 = arith.constant dense<0.000000e+00> : vector<11x32xf32>
    %106 = tpu.matmul %103, %105, %cst_35 {dimension_numbers = #tpu.dot_dimension_numbers<[1], [0], [0], [1], [0, 0, 1, 1], [], []>} : vector<11x32xf32>, vector<32x32xf32>, vector<11x32xf32> -> vector<11x32xf32>
    %c0_36 = arith.constant 0 : index
    %c0_37 = arith.constant 0 : index
    %c0_38 = arith.constant 0 : index
    %107 = vector.load %arg5[%c0_36, %c0_37, %c0_38] : memref<1x1x32xf32, #tpu.memory_space<vmem>>, vector<1x1x32xf32>
    %108 = vector.shape_cast %107 : vector<1x1x32xf32> to vector<1x32xf32>
    %109 = vector.broadcast %108 : vector<1x32xf32> to vector<11x32xf32>
    %110 = arith.addf %106, %109 : vector<11x32xf32>
    %cst_39 = arith.constant 0.353553385 : f32
    %111 = vector.broadcast %cst_39 : f32 to vector<11x32xf32>
    %112 = arith.mulf %110, %111 : vector<11x32xf32>
    %c0_40 = arith.constant 0 : index
    %c0_41 = arith.constant 0 : index
    %c0_42 = arith.constant 0 : index
    %113 = vector.load %arg6[%c0_40, %c0_41, %c0_42] : memref<1x32x32xf32, #tpu.memory_space<vmem>>, vector<1x32x32xf32>
    %114 = vector.shape_cast %113 : vector<1x32x32xf32> to vector<32x32xf32>
    %cst_43 = arith.constant dense<0.000000e+00> : vector<11x32xf32>
    %115 = tpu.matmul %103, %114, %cst_43 {dimension_numbers = #tpu.dot_dimension_numbers<[1], [0], [0], [1], [0, 0, 1, 1], [], []>} : vector<11x32xf32>, vector<32x32xf32>, vector<11x32xf32> -> vector<11x32xf32>
    %c0_44 = arith.constant 0 : index
    %c0_45 = arith.constant 0 : index
    %c0_46 = arith.constant 0 : index
    %116 = vector.load %arg7[%c0_44, %c0_45, %c0_46] : memref<1x1x32xf32, #tpu.memory_space<vmem>>, vector<1x1x32xf32>
    %117 = vector.shape_cast %116 : vector<1x1x32xf32> to vector<1x32xf32>
    %118 = vector.broadcast %117 : vector<1x32xf32> to vector<11x32xf32>
    %119 = arith.addf %115, %118 : vector<11x32xf32>
    %c0_47 = arith.constant 0 : index
    %c0_48 = arith.constant 0 : index
    %c0_49 = arith.constant 0 : index
    %120 = vector.load %arg8[%c0_47, %c0_48, %c0_49] : memref<1x32x32xf32, #tpu.memory_space<vmem>>, vector<1x32x32xf32>
    %121 = vector.shape_cast %120 : vector<1x32x32xf32> to vector<32x32xf32>
    %cst_50 = arith.constant dense<0.000000e+00> : vector<11x32xf32>
    %122 = tpu.matmul %103, %121, %cst_50 {dimension_numbers = #tpu.dot_dimension_numbers<[1], [0], [0], [1], [0, 0, 1, 1], [], []>} : vector<11x32xf32>, vector<32x32xf32>, vector<11x32xf32> -> vector<11x32xf32>
    %c0_51 = arith.constant 0 : index
    %c0_52 = arith.constant 0 : index
    %c0_53 = arith.constant 0 : index
    %123 = vector.load %arg9[%c0_51, %c0_52, %c0_53] : memref<1x1x32xf32, #tpu.memory_space<vmem>>, vector<1x1x32xf32>
    %124 = vector.shape_cast %123 : vector<1x1x32xf32> to vector<1x32xf32>
    %125 = vector.broadcast %124 : vector<1x32xf32> to vector<11x32xf32>
    %126 = arith.addf %122, %125 : vector<11x32xf32>
    %cst_54 = arith.constant dense<0.000000e+00> : vector<44x32xf32>
    %127 = tpu.matmul %50, %119, %cst_54 {dimension_numbers = #tpu.dot_dimension_numbers<[1], [0], [0], [1], [0, 0, 1, 1], [], []>} : vector<44x11xf32>, vector<11x32xf32>, vector<44x32xf32> -> vector<44x32xf32>
    %cst_55 = arith.constant dense<0.000000e+00> : vector<44x32xf32>
    %128 = tpu.matmul %50, %126, %cst_55 {dimension_numbers = #tpu.dot_dimension_numbers<[1], [0], [0], [1], [0, 0, 1, 1], [], []>} : vector<44x11xf32>, vector<11x32xf32>, vector<44x32xf32> -> vector<44x32xf32>
    %129 = arith.mulf %127, %56 : vector<44x32xf32>
    %130 = arith.mulf %128, %56 : vector<44x32xf32>
    %cst_56 = arith.constant dense<0.000000e+00> : vector<11x44xf32>
    %131 = tpu.matmul %112, %129, %cst_56 {dimension_numbers = #tpu.dot_dimension_numbers<[1], [1], [0], [0], [0, 0, 1, 0], [], []>} : vector<11x32xf32>, vector<44x32xf32>, vector<11x44xf32> -> vector<11x44xf32>
    %cst_57 = arith.constant 0.000000e+00 : f32
    %132 = vector.broadcast %cst_57 : f32 to vector<11x44xf32>
    %133 = vector.broadcast %86 : vector<1x44xf32> to vector<11x44xf32>
    %134 = arith.addf %131, %133 : vector<11x44xf32>
    %cst_58 = arith.constant dense<0xFF800000> : vector<11xf32>
    %135 = vector.multi_reduction <maximumf>, %134, %cst_58 [1] : vector<11x44xf32> to vector<11xf32>
    %136 = vector.shape_cast %135 : vector<11xf32> to vector<11x1xf32>
    %137 = vector.broadcast %136 : vector<11x1xf32> to vector<11x44xf32>
    %138 = vector.broadcast %67 : vector<1x44xf32> to vector<11x44xf32>
    %139 = arith.mulf %137, %138 : vector<11x44xf32>
    %140 = arith.addf %132, %139 : vector<11x44xf32>
    %141 = vector.broadcast %90 : vector<1x44xf32> to vector<11x44xf32>
    %142 = arith.addf %131, %141 : vector<11x44xf32>
    %cst_59 = arith.constant dense<0xFF800000> : vector<11xf32>
    %143 = vector.multi_reduction <maximumf>, %142, %cst_59 [1] : vector<11x44xf32> to vector<11xf32>
    %144 = vector.shape_cast %143 : vector<11xf32> to vector<11x1xf32>
    %145 = vector.broadcast %144 : vector<11x1xf32> to vector<11x44xf32>
    %146 = vector.broadcast %72 : vector<1x44xf32> to vector<11x44xf32>
    %147 = arith.mulf %145, %146 : vector<11x44xf32>
    %148 = arith.addf %140, %147 : vector<11x44xf32>
    %149 = vector.broadcast %94 : vector<1x44xf32> to vector<11x44xf32>
    %150 = arith.addf %131, %149 : vector<11x44xf32>
    %cst_60 = arith.constant dense<0xFF800000> : vector<11xf32>
    %151 = vector.multi_reduction <maximumf>, %150, %cst_60 [1] : vector<11x44xf32> to vector<11xf32>
    %152 = vector.shape_cast %151 : vector<11xf32> to vector<11x1xf32>
    %153 = vector.broadcast %152 : vector<11x1xf32> to vector<11x44xf32>
    %154 = vector.broadcast %77 : vector<1x44xf32> to vector<11x44xf32>
    %155 = arith.mulf %153, %154 : vector<11x44xf32>
    %156 = arith.addf %148, %155 : vector<11x44xf32>
    %157 = vector.broadcast %98 : vector<1x44xf32> to vector<11x44xf32>
    %158 = arith.addf %131, %157 : vector<11x44xf32>
    %cst_61 = arith.constant dense<0xFF800000> : vector<11xf32>
    %159 = vector.multi_reduction <maximumf>, %158, %cst_61 [1] : vector<11x44xf32> to vector<11xf32>
    %160 = vector.shape_cast %159 : vector<11xf32> to vector<11x1xf32>
    %161 = vector.broadcast %160 : vector<11x1xf32> to vector<11x44xf32>
    %162 = vector.broadcast %82 : vector<1x44xf32> to vector<11x44xf32>
    %163 = arith.mulf %161, %162 : vector<11x44xf32>
    %164 = arith.addf %156, %163 : vector<11x44xf32>
    %165 = arith.subf %131, %164 : vector<11x44xf32>
    %166 = math.exp %165 : vector<11x44xf32>
    %cst_62 = arith.constant dense<0.000000e+00> : vector<11x44xf32>
    %167 = tpu.matmul %166, %62, %cst_62 {dimension_numbers = #tpu.dot_dimension_numbers<[1], [0], [0], [1], [0, 0, 1, 1], [], []>} : vector<11x44xf32>, vector<44x44xf32>, vector<11x44xf32> -> vector<11x44xf32>
    %168 = arith.divf %166, %167 : vector<11x44xf32>
    %cst_63 = arith.constant dense<0.000000e+00> : vector<11x32xf32>
    %169 = tpu.matmul %168, %130, %cst_63 {dimension_numbers = #tpu.dot_dimension_numbers<[1], [0], [0], [1], [0, 0, 1, 1], [], []>} : vector<11x44xf32>, vector<44x32xf32>, vector<11x32xf32> -> vector<11x32xf32>
    %c0_64 = arith.constant 0 : index
    %c0_65 = arith.constant 0 : index
    %c0_66 = arith.constant 0 : index
    %170 = vector.load %arg10[%c0_64, %c0_65, %c0_66] : memref<1x32x32xf32, #tpu.memory_space<vmem>>, vector<1x32x32xf32>
    %171 = vector.shape_cast %170 : vector<1x32x32xf32> to vector<32x32xf32>
    %cst_67 = arith.constant dense<0.000000e+00> : vector<11x32xf32>
    %172 = tpu.matmul %169, %171, %cst_67 {dimension_numbers = #tpu.dot_dimension_numbers<[1], [0], [0], [1], [0, 0, 1, 1], [], []>} : vector<11x32xf32>, vector<32x32xf32>, vector<11x32xf32> -> vector<11x32xf32>
    %c0_68 = arith.constant 0 : index
    %c0_69 = arith.constant 0 : index
    %c0_70 = arith.constant 0 : index
    %173 = vector.load %arg11[%c0_68, %c0_69, %c0_70] : memref<1x1x32xf32, #tpu.memory_space<vmem>>, vector<1x1x32xf32>
    %174 = vector.shape_cast %173 : vector<1x1x32xf32> to vector<1x32xf32>
    %175 = vector.broadcast %174 : vector<1x32xf32> to vector<11x32xf32>
    %176 = arith.addf %172, %175 : vector<11x32xf32>
    %177 = arith.addf %103, %176 : vector<11x32xf32>
    %c0_71 = arith.constant 0 : index
    %c0_72 = arith.constant 0 : index
    %c0_73 = arith.constant 0 : index
    %178 = vector.load %arg12[%c0_71, %c0_72, %c0_73] : memref<1x1x32xf32, #tpu.memory_space<vmem>>, vector<1x1x32xf32>
    %179 = vector.shape_cast %178 : vector<1x1x32xf32> to vector<1x32xf32>
    %c0_74 = arith.constant 0 : index
    %c0_75 = arith.constant 0 : index
    %c0_76 = arith.constant 0 : index
    %180 = vector.load %arg13[%c0_74, %c0_75, %c0_76] : memref<1x1x32xf32, #tpu.memory_space<vmem>>, vector<1x1x32xf32>
    %181 = vector.shape_cast %180 : vector<1x1x32xf32> to vector<1x32xf32>
    %cst_77 = arith.constant dense<0.000000e+00> : vector<11x1xf32>
    %182 = tpu.matmul %177, %99, %cst_77 {dimension_numbers = #tpu.dot_dimension_numbers<[1], [0], [0], [1], [0, 0, 1, 1], [], []>} : vector<11x32xf32>, vector<32x1xf32>, vector<11x1xf32> -> vector<11x1xf32>
    %183 = vector.broadcast %182 : vector<11x1xf32> to vector<11x32xf32>
    %184 = arith.subf %177, %183 : vector<11x32xf32>
    %185 = arith.mulf %184, %184 : vector<11x32xf32>
    %cst_78 = arith.constant dense<0.000000e+00> : vector<11x1xf32>
    %186 = tpu.matmul %185, %99, %cst_78 {dimension_numbers = #tpu.dot_dimension_numbers<[1], [0], [0], [1], [0, 0, 1, 1], [], []>} : vector<11x32xf32>, vector<32x1xf32>, vector<11x1xf32> -> vector<11x1xf32>
    %cst_79 = arith.constant 9.99999974E-6 : f32
    %187 = vector.broadcast %cst_79 : f32 to vector<11x1xf32>
    %188 = arith.addf %186, %187 : vector<11x1xf32>
    %189 = math.rsqrt %188 : vector<11x1xf32>
    %190 = vector.broadcast %189 : vector<11x1xf32> to vector<11x32xf32>
    %191 = arith.mulf %184, %190 : vector<11x32xf32>
    %192 = vector.broadcast %179 : vector<1x32xf32> to vector<11x32xf32>
    %193 = arith.mulf %191, %192 : vector<11x32xf32>
    %194 = vector.broadcast %181 : vector<1x32xf32> to vector<11x32xf32>
    %195 = arith.addf %193, %194 : vector<11x32xf32>
    %c0_80 = arith.constant 0 : index
    %c0_81 = arith.constant 0 : index
    %c0_82 = arith.constant 0 : index
    %196 = vector.load %arg14[%c0_80, %c0_81, %c0_82] : memref<1x32x64xf32, #tpu.memory_space<vmem>>, vector<1x32x64xf32>
    %197 = vector.shape_cast %196 : vector<1x32x64xf32> to vector<32x64xf32>
    %cst_83 = arith.constant dense<0.000000e+00> : vector<11x64xf32>
    %198 = tpu.matmul %195, %197, %cst_83 {dimension_numbers = #tpu.dot_dimension_numbers<[1], [0], [0], [1], [0, 0, 1, 1], [], []>} : vector<11x32xf32>, vector<32x64xf32>, vector<11x64xf32> -> vector<11x64xf32>
    %c0_84 = arith.constant 0 : index
    %c0_85 = arith.constant 0 : index
    %c0_86 = arith.constant 0 : index
    %199 = vector.load %arg15[%c0_84, %c0_85, %c0_86] : memref<1x1x64xf32, #tpu.memory_space<vmem>>, vector<1x1x64xf32>
    %200 = vector.shape_cast %199 : vector<1x1x64xf32> to vector<1x64xf32>
    %201 = vector.broadcast %200 : vector<1x64xf32> to vector<11x64xf32>
    %202 = arith.addf %198, %201 : vector<11x64xf32>
    %cst_87 = arith.constant 0.000000e+00 : f32
    %203 = vector.broadcast %cst_87 : f32 to vector<11x64xf32>
    %204 = arith.maximumf %202, %203 : vector<11x64xf32>
    %c0_88 = arith.constant 0 : index
    %c0_89 = arith.constant 0 : index
    %c0_90 = arith.constant 0 : index
    %205 = vector.load %arg16[%c0_88, %c0_89, %c0_90] : memref<1x64x32xf32, #tpu.memory_space<vmem>>, vector<1x64x32xf32>
    %206 = vector.shape_cast %205 : vector<1x64x32xf32> to vector<64x32xf32>
    %cst_91 = arith.constant dense<0.000000e+00> : vector<11x32xf32>
    %207 = tpu.matmul %204, %206, %cst_91 {dimension_numbers = #tpu.dot_dimension_numbers<[1], [0], [0], [1], [0, 0, 1, 1], [], []>} : vector<11x64xf32>, vector<64x32xf32>, vector<11x32xf32> -> vector<11x32xf32>
    %c0_92 = arith.constant 0 : index
    %c0_93 = arith.constant 0 : index
    %c0_94 = arith.constant 0 : index
    %208 = vector.load %arg17[%c0_92, %c0_93, %c0_94] : memref<1x1x32xf32, #tpu.memory_space<vmem>>, vector<1x1x32xf32>
    %209 = vector.shape_cast %208 : vector<1x1x32xf32> to vector<1x32xf32>
    %210 = vector.broadcast %209 : vector<1x32xf32> to vector<11x32xf32>
    %211 = arith.addf %207, %210 : vector<11x32xf32>
    %212 = arith.addf %195, %211 : vector<11x32xf32>
    %c0_95 = arith.constant 0 : index
    %c0_96 = arith.constant 0 : index
    %c0_97 = arith.constant 0 : index
    %213 = vector.load %arg18[%c0_95, %c0_96, %c0_97] : memref<1x1x32xf32, #tpu.memory_space<vmem>>, vector<1x1x32xf32>
    %214 = vector.shape_cast %213 : vector<1x1x32xf32> to vector<1x32xf32>
    %c0_98 = arith.constant 0 : index
    %c0_99 = arith.constant 0 : index
    %c0_100 = arith.constant 0 : index
    %215 = vector.load %arg19[%c0_98, %c0_99, %c0_100] : memref<1x1x32xf32, #tpu.memory_space<vmem>>, vector<1x1x32xf32>
    %216 = vector.shape_cast %215 : vector<1x1x32xf32> to vector<1x32xf32>
    %cst_101 = arith.constant dense<0.000000e+00> : vector<11x1xf32>
    %217 = tpu.matmul %212, %99, %cst_101 {dimension_numbers = #tpu.dot_dimension_numbers<[1], [0], [0], [1], [0, 0, 1, 1], [], []>} : vector<11x32xf32>, vector<32x1xf32>, vector<11x1xf32> -> vector<11x1xf32>
    %218 = vector.broadcast %217 : vector<11x1xf32> to vector<11x32xf32>
    %219 = arith.subf %212, %218 : vector<11x32xf32>
    %220 = arith.mulf %219, %219 : vector<11x32xf32>
    %cst_102 = arith.constant dense<0.000000e+00> : vector<11x1xf32>
    %221 = tpu.matmul %220, %99, %cst_102 {dimension_numbers = #tpu.dot_dimension_numbers<[1], [0], [0], [1], [0, 0, 1, 1], [], []>} : vector<11x32xf32>, vector<32x1xf32>, vector<11x1xf32> -> vector<11x1xf32>
    %cst_103 = arith.constant 9.99999974E-6 : f32
    %222 = vector.broadcast %cst_103 : f32 to vector<11x1xf32>
    %223 = arith.addf %221, %222 : vector<11x1xf32>
    %224 = math.rsqrt %223 : vector<11x1xf32>
    %225 = vector.broadcast %224 : vector<11x1xf32> to vector<11x32xf32>
    %226 = arith.mulf %219, %225 : vector<11x32xf32>
    %227 = vector.broadcast %214 : vector<1x32xf32> to vector<11x32xf32>
    %228 = arith.mulf %226, %227 : vector<11x32xf32>
    %229 = vector.broadcast %216 : vector<1x32xf32> to vector<11x32xf32>
    %230 = arith.addf %228, %229 : vector<11x32xf32>
    %c0_104 = arith.constant 0 : index
    %c0_105 = arith.constant 0 : index
    %231 = vector.load %arg23[%c0_104, %c0_105] : memref<11x32xf32, #tpu.memory_space<vmem>>, vector<11x32xf32>
    tpu.vector_store %arg23[%c0_104, %c0_105], %230 {strides = array<i32>} : memref<11x32xf32, #tpu.memory_space<vmem>>, vector<11x32xf32>,
    %c1_i32_106 = arith.constant 1 : i32
    %232 = arith.cmpi eq, %arg1, %c1_i32_106 : i32
    %233 = arith.extui %232 : i1 to i32
    %c0_i32_107 = arith.constant 0 : i32
    %234 = arith.cmpi ne, %233, %c0_i32_107 : i32
    scf.if %234 {
      %cst_108 = arith.constant 0.0909090936 : f32
      %235 = vector.broadcast %cst_108 : f32 to vector<1x11xf32>
      %cst_109 = arith.constant dense<0.000000e+00> : vector<1x32xf32>
      %236 = tpu.matmul %235, %230, %cst_109 {dimension_numbers = #tpu.dot_dimension_numbers<[1], [0], [0], [1], [0, 0, 1, 1], [], []>} : vector<1x11xf32>, vector<11x32xf32>, vector<1x32xf32> -> vector<1x32xf32>
      %c0_110 = arith.constant 0 : index
      %c0_111 = arith.constant 0 : index
      %237 = vector.load %arg20[%c0_110, %c0_111] : memref<32x4xf32, #tpu.memory_space<vmem>>, vector<32x4xf32>
      %cst_112 = arith.constant dense<0.000000e+00> : vector<1x4xf32>
      %238 = tpu.matmul %236, %237, %cst_112 {dimension_numbers = #tpu.dot_dimension_numbers<[1], [0], [0], [1], [0, 0, 1, 1], [], []>} : vector<1x32xf32>, vector<32x4xf32>, vector<1x4xf32> -> vector<1x4xf32>
      %c0_113 = arith.constant 0 : index
      %c0_114 = arith.constant 0 : index
      %239 = vector.load %arg21[%c0_113, %c0_114] : memref<1x4xf32, #tpu.memory_space<vmem>>, vector<1x4xf32>
      %240 = arith.addf %238, %239 : vector<1x4xf32>
      %c0_115 = arith.constant 0 : index
      %c0_116 = arith.constant 0 : index
      %c0_117 = arith.constant 0 : index
      %241 = vector.load %arg22[%c0_115, %c0_116, %c0_117] : memref<1x1x4xf32, #tpu.memory_space<vmem>>, vector<1x1x4xf32>
      %242 = vector.shape_cast %241 : vector<1x1x4xf32> to vector<1x4xf32>
      %243 = vector.shape_cast %240 : vector<1x4xf32> to vector<1x1x4xf32>
      tpu.vector_store %arg22[%c0_115, %c0_116, %c0_117], %243 {strides = array<i32>} : memref<1x1x4xf32, #tpu.memory_space<vmem>>, vector<1x1x4xf32>,
    } else {
    }
    return
  }
  func.func @transform_0(%arg0: i32, %arg1: i32) -> (i32, i32, i32) {
    %c0_i32 = arith.constant 0 : i32
    %c0_i32_0 = arith.constant 0 : i32
    %c0_i32_1 = arith.constant 0 : i32
    return %arg0, %c0_i32, %c0_i32_0 : i32, i32, i32
  }
  func.func @transform_1(%arg0: i32, %arg1: i32) -> (i32, i32) {
    %c0_i32 = arith.constant 0 : i32
    %c0_i32_0 = arith.constant 0 : i32
    %c0_i32_1 = arith.constant 0 : i32
    return %c0_i32, %c0_i32_0 : i32, i32
  }
  func.func @transform_2(%arg0: i32, %arg1: i32) -> (i32, i32, i32) {
    %c0_i32 = arith.constant 0 : i32
    %c0_i32_0 = arith.constant 0 : i32
    %c0_i32_1 = arith.constant 0 : i32
    return %arg1, %c0_i32, %c0_i32_0 : i32, i32, i32
  }
  func.func @transform_3(%arg0: i32, %arg1: i32) -> (i32, i32, i32) {
    %c0_i32 = arith.constant 0 : i32
    %c0_i32_0 = arith.constant 0 : i32
    %c0_i32_1 = arith.constant 0 : i32
    return %arg1, %c0_i32, %c0_i32_0 : i32, i32, i32
  }
  func.func @transform_4(%arg0: i32, %arg1: i32) -> (i32, i32, i32) {
    %c0_i32 = arith.constant 0 : i32
    %c0_i32_0 = arith.constant 0 : i32
    %c0_i32_1 = arith.constant 0 : i32
    return %arg1, %c0_i32, %c0_i32_0 : i32, i32, i32
  }
  func.func @transform_5(%arg0: i32, %arg1: i32) -> (i32, i32, i32) {
    %c0_i32 = arith.constant 0 : i32
    %c0_i32_0 = arith.constant 0 : i32
    %c0_i32_1 = arith.constant 0 : i32
    return %arg1, %c0_i32, %c0_i32_0 : i32, i32, i32
  }
  func.func @transform_6(%arg0: i32, %arg1: i32) -> (i32, i32, i32) {
    %c0_i32 = arith.constant 0 : i32
    %c0_i32_0 = arith.constant 0 : i32
    %c0_i32_1 = arith.constant 0 : i32
    return %arg1, %c0_i32, %c0_i32_0 : i32, i32, i32
  }
  func.func @transform_7(%arg0: i32, %arg1: i32) -> (i32, i32, i32) {
    %c0_i32 = arith.constant 0 : i32
    %c0_i32_0 = arith.constant 0 : i32
    %c0_i32_1 = arith.constant 0 : i32
    return %arg1, %c0_i32, %c0_i32_0 : i32, i32, i32
  }
  func.func @transform_8(%arg0: i32, %arg1: i32) -> (i32, i32, i32) {
    %c0_i32 = arith.constant 0 : i32
    %c0_i32_0 = arith.constant 0 : i32
    %c0_i32_1 = arith.constant 0 : i32
    return %arg1, %c0_i32, %c0_i32_0 : i32, i32, i32
  }
  func.func @transform_9(%arg0: i32, %arg1: i32) -> (i32, i32, i32) {
    %c0_i32 = arith.constant 0 : i32
    %c0_i32_0 = arith.constant 0 : i32
    %c0_i32_1 = arith.constant 0 : i32
    return %arg1, %c0_i32, %c0_i32_0 : i32, i32, i32
  }
  func.func @transform_10(%arg0: i32, %arg1: i32) -> (i32, i32, i32) {
    %c0_i32 = arith.constant 0 : i32
    %c0_i32_0 = arith.constant 0 : i32
    %c0_i32_1 = arith.constant 0 : i32
    return %arg1, %c0_i32, %c0_i32_0 : i32, i32, i32
  }
  func.func @transform_11(%arg0: i32, %arg1: i32) -> (i32, i32, i32) {
    %c0_i32 = arith.constant 0 : i32
    %c0_i32_0 = arith.constant 0 : i32
    %c0_i32_1 = arith.constant 0 : i32
    return %arg1, %c0_i32, %c0_i32_0 : i32, i32, i32
  }
  func.func @transform_12(%arg0: i32, %arg1: i32) -> (i32, i32, i32) {
    %c0_i32 = arith.constant 0 : i32
    %c0_i32_0 = arith.constant 0 : i32
    %c0_i32_1 = arith.constant 0 : i32
    return %arg1, %c0_i32, %c0_i32_0 : i32, i32, i32
  }
  func.func @transform_13(%arg0: i32, %arg1: i32) -> (i32, i32, i32) {
    %c0_i32 = arith.constant 0 : i32
    %c0_i32_0 = arith.constant 0 : i32
    %c0_i32_1 = arith.constant 0 : i32
    return %arg1, %c0_i32, %c0_i32_0 : i32, i32, i32
  }
  func.func @transform_14(%arg0: i32, %arg1: i32) -> (i32, i32, i32) {
    %c0_i32 = arith.constant 0 : i32
    %c0_i32_0 = arith.constant 0 : i32
    %c0_i32_1 = arith.constant 0 : i32
    return %arg1, %c0_i32, %c0_i32_0 : i32, i32, i32
  }
  func.func @transform_15(%arg0: i32, %arg1: i32) -> (i32, i32, i32) {
    %c0_i32 = arith.constant 0 : i32
    %c0_i32_0 = arith.constant 0 : i32
    %c0_i32_1 = arith.constant 0 : i32
    return %arg1, %c0_i32, %c0_i32_0 : i32, i32, i32
  }
  func.func @transform_16(%arg0: i32, %arg1: i32) -> (i32, i32, i32) {
    %c0_i32 = arith.constant 0 : i32
    %c0_i32_0 = arith.constant 0 : i32
    %c0_i32_1 = arith.constant 0 : i32
    return %arg1, %c0_i32, %c0_i32_0 : i32, i32, i32
  }
  func.func @transform_17(%arg0: i32, %arg1: i32) -> (i32, i32, i32) {
    %c0_i32 = arith.constant 0 : i32
    %c0_i32_0 = arith.constant 0 : i32
    %c0_i32_1 = arith.constant 0 : i32
    return %arg1, %c0_i32, %c0_i32_0 : i32, i32, i32
  }
  func.func @transform_18(%arg0: i32, %arg1: i32) -> (i32, i32) {
    %c0_i32 = arith.constant 0 : i32
    %c0_i32_0 = arith.constant 0 : i32
    %c0_i32_1 = arith.constant 0 : i32
    return %c0_i32, %c0_i32_0 : i32, i32
  }
  func.func @transform_19(%arg0: i32, %arg1: i32) -> (i32, i32) {
    %c0_i32 = arith.constant 0 : i32
    %c0_i32_0 = arith.constant 0 : i32
    %c0_i32_1 = arith.constant 0 : i32
    return %c0_i32, %c0_i32_0 : i32, i32
  }
  func.func @transform_20(%arg0: i32, %arg1: i32) -> (i32, i32, i32) {
    %c0_i32 = arith.constant 0 : i32
    %c0_i32_0 = arith.constant 0 : i32
    %c0_i32_1 = arith.constant 0 : i32
    return %arg0, %c0_i32, %c0_i32_0 : i32, i32, i32
  }
}

</mosaic_0001>

<llo_original>
// kernel: pathfinding_transformer_forward.1
$region0: #{pathfinding_transformer_forward.1}
  #allocation0 [shape = 'u32[]', space=smem, size = 0x4, offset = 0x4, fixed_abs, tag = 'smem constant byte address 0x4 - core index']
  #allocation1 [shape = 'u32[144,128]{1,0:T(1,128)}', space=vmem, size = 0x12000, scoped, tag = 'internal scratch']
  #allocation2 [shape = 'f32[11,32]{1,0:T(8,128)}', space=vmem, size = 0x2000, scoped, tag = 'scratch operand']
  %s0 = inlined_call_operand.vmem [shape: f32[2,11,32], index: 0, kind: input, shape index: {}]
  %s1 = inlined_call_operand.vmem [shape: f32[11,32], index: 1, kind: input, shape index: {}]
  %s2 = inlined_call_operand.vmem [shape: f32[2,32,32], index: 2, kind: input, shape index: {}]
  %s3 = inlined_call_operand.vmem [shape: f32[2,1,32], index: 3, kind: input, shape index: {}]
  %s4 = inlined_call_operand.vmem [shape: f32[2,32,32], index: 4, kind: input, shape index: {}]
  %s5 = inlined_call_operand.vmem [shape: f32[2,1,32], index: 5, kind: input, shape index: {}]
  %s6 = inlined_call_operand.vmem [shape: f32[2,32,32], index: 6, kind: input, shape index: {}]
  %s7 = inlined_call_operand.vmem [shape: f32[2,1,32], index: 7, kind: input, shape index: {}]
  %s8 = inlined_call_operand.vmem [shape: f32[2,32,32], index: 8, kind: input, shape index: {}]
  %s9 = inlined_call_operand.vmem [shape: f32[2,1,32], index: 9, kind: input, shape index: {}]
  %s10 = inlined_call_operand.vmem [shape: f32[2,1,32], index: 10, kind: input, shape index: {}]
  %s11 = inlined_call_operand.vmem [shape: f32[2,1,32], index: 11, kind: input, shape index: {}]
  %s12 = inlined_call_operand.vmem [shape: f32[2,32,64], index: 12, kind: input, shape index: {}]
  %s13 = inlined_call_operand.vmem [shape: f32[2,1,64], index: 13, kind: input, shape index: {}]
  %s14 = inlined_call_operand.vmem [shape: f32[2,64,32], index: 14, kind: input, shape index: {}]
  %s15 = inlined_call_operand.vmem [shape: f32[2,1,32], index: 15, kind: input, shape index: {}]
  %s16 = inlined_call_operand.vmem [shape: f32[2,1,32], index: 16, kind: input, shape index: {}]
  %s17 = inlined_call_operand.vmem [shape: f32[2,1,32], index: 17, kind: input, shape index: {}]
  %s18 = inlined_call_operand.vmem [shape: f32[32,4], index: 18, kind: input, shape index: {}]
  %s19 = inlined_call_operand.vmem [shape: f32[1,4], index: 19, kind: input, shape index: {}]
  %s20 = inlined_call_operand.hbm [shape: f32[2,1,4], index: 20, kind: output, shape index: {}]
  %s21 = sld [smem:[#allocation0]]
  $region121: #{pathfinding_transformer_forward.1} parent=0
    _
  %s23 = ssub.s32 1, %s21
  %s24 = scalar_select 0, %s23, %s21
  $region1: #{pathfinding_transformer_forward.1} parent=0
    #allocation3 [shape = 'u8[1024]{0}', space=vmem, size = 0x400, scoped, tag = 'output window, operand 0']
    #allocation4 [shape = 's32[2]{0}', space=sflag, size = 0x8, scoped, tag = 'scoped memory for pathfinding_transformer_forward.1']
    %25 = vsyncpa [#allocation4], 0
    %s26 = scalar_lea.sflag [#allocation4], 1
    %27 = vsyncpa %s26, 0
    loop: start=0, step=1, limit=6
    $region2: #{pathfinding_transformer_forward.1} parent=1 // loop_pre_header
      _
    $region3: #{pathfinding_transformer_forward.1} parent=1 // loop_header
      %s29 = sphi 0, %s33
      %p30 = scmp.ge.s32.totalorder %s29, 6
      %s36 = sphi 0, %s48
      %s37 = sphi 0, %s44
      %s38 = sphi 0, %s36
      %s39 = sphi 0, %s37
      %s40 = sphi 0, %s38
      %s41 = sphi 0, %s39
      %s51 = sphi 0, %s53
      %s54 = sphi 0, %s51
      %s55 = sphi 0, %s54
      %s71 = sphi 0, %s55
      %s75 = sphi 0, %s75
      %s77 = sphi 0, %s75
      %s78 = sphi 0, %s77
      %s92 = sphi 0, %s78
      %s98 = sphi 0, %s100
      %s101 = sphi 0, %s98
      %s102 = sphi 0, %s101
      %s118 = sphi 0, %s102
      %s124 = sphi 0, %s126
      %s127 = sphi 0, %s124
      %s128 = sphi 0, %s127
      %s144 = sphi 0, %s128
      %s150 = sphi 0, %s152
      %s153 = sphi 0, %s150
      %s154 = sphi 0, %s153
      %s170 = sphi 0, %s154
      %s176 = sphi 0, %s178
      %s179 = sphi 0, %s176
      %s180 = sphi 0, %s179
      %s196 = sphi 0, %s180
      %s202 = sphi 0, %s204
      %s205 = sphi 0, %s202
      %s206 = sphi 0, %s205
      %s222 = sphi 0, %s206
      %s228 = sphi 0, %s230
      %s231 = sphi 0, %s228
      %s232 = sphi 0, %s231
      %s248 = sphi 0, %s232
      %s254 = sphi 0, %s256
      %s257 = sphi 0, %s254
      %s258 = sphi 0, %s257
      %s274 = sphi 0, %s258
      %s280 = sphi 0, %s282
      %s283 = sphi 0, %s280
      %s284 = sphi 0, %s283
      %s300 = sphi 0, %s284
      %s306 = sphi 0, %s308
      %s309 = sphi 0, %s306
      %s310 = sphi 0, %s309
      %s326 = sphi 0, %s310
      %s332 = sphi 0, %s334
      %s335 = sphi 0, %s332
      %s336 = sphi 0, %s335
      %s352 = sphi 0, %s336
      %s358 = sphi 0, %s360
      %s361 = sphi 0, %s358
      %s362 = sphi 0, %s361
      %s378 = sphi 0, %s362
      %s384 = sphi 0, %s386
      %s387 = sphi 0, %s384
      %s388 = sphi 0, %s387
      %s404 = sphi 0, %s388
      %s410 = sphi 0, %s412
      %s413 = sphi 0, %s410
      %s414 = sphi 0, %s413
      %s430 = sphi 0, %s414
      %s436 = sphi 0, %s438
      %s439 = sphi 0, %s436
      %s440 = sphi 0, %s439
      %s456 = sphi 0, %s440
      %s462 = sphi 0, %s464
      %s465 = sphi 0, %s462
      %s466 = sphi 0, %s465
      %s482 = sphi 0, %s466
      %s488 = sphi 0, %s490
      %s491 = sphi 0, %s488
      %s492 = sphi 0, %s491
      %s508 = sphi 0, %s492
      %s512 = sphi 0, %s512
      %s514 = sphi 0, %s512
      %s515 = sphi 0, %s514
      %s529 = sphi 0, %s515
      %s533 = sphi 0, %s533
      %s535 = sphi 0, %s533
      %s536 = sphi 0, %s535
      %s550 = sphi 0, %s536
      %s556 = sphi 0, %s558
      %s559 = sphi 0, %s556
      %s560 = sphi 0, %s559
      %s576 = sphi 0, %s560
    $region4: #{pathfinding_transformer_forward.1} parent=1 // loop_header_branch
      %32 = sbr.rel (%p30) target = $region8
    $region5: #{pathfinding_transformer_forward.1} parent=1 // loop_body
      %s34 = ssub.s32 %s29, 1
      %s35 = ssub.s32 %s29, 2
      %s42 = sadd.s32 1, %s37
      %p43 = scmp.ge.s32.totalorder %s42, 2
      %s44 = scalar_select %p43, 0, %s42
      %s45 = sadd.s32 1, %s36
      %s46 = scalar_select %p43, %s45, %s36
      %p47 = scmp.ge.s32.totalorder %s46, 2
      %s48 = scalar_select %p47, 0, %s46
      %s49 = ssub.s32 %s36, %s48
      %p50 = scmp.eq.s32.totalorder %s49, 0
      %s52 = sadd.s32 %s51, 1
      %s53 = scalar_select %p50, %s51, %s52
      %p56 = pneg %p50
      %p57 = scmp.eq.s32.totalorder %s29, 3
      %p58 = por %p56, %p57
      %p59 = scmp.ne.s32.totalorder %s51, %s54
      %p60 = scmp.eq.s32.totalorder %s29, 0
      %p61 = por %p59, %p60
      %p62 = scmp.ne.s32.totalorder %s51, %s54
      %p63 = scmp.eq.s32.totalorder %s34, 3
      %p64 = por %p62, %p63
      %p65 = scmp.ne.s32.totalorder %s54, %s55
      %p66 = scmp.eq.s32.totalorder %s34, 0
      %p67 = por %p65, %p66
      %p68 = scmp.ne.s32.totalorder %s54, %s55
      %p69 = scmp.eq.s32.totalorder %s35, 3
      %p70 = por %p68, %p69
      %p72 = scmp.ne.s32.totalorder %s55, %s71
      %p73 = scmp.eq.s32.totalorder %s35, 0
      %p74 = por %p72, %p73
      %s76 = sadd.s32 %s75, 1
      %p79 = scmp.eq.s32.totalorder %s29, 3
      %p80 = scmp.ne.s32.totalorder %s75, %s77
      %p81 = scmp.eq.s32.totalorder %s29, 0
      %p82 = por %p80, %p81
      %p83 = scmp.ne.s32.totalorder %s75, %s77
      %p84 = scmp.eq.s32.totalorder %s34, 3
      %p85 = por %p83, %p84
      %p86 = scmp.ne.s32.totalorder %s77, %s78
      %p87 = scmp.eq.s32.totalorder %s34, 0
      %p88 = por %p86, %p87
      %p89 = scmp.ne.s32.totalorder %s77, %s78
      %p90 = scmp.eq.s32.totalorder %s35, 3
      %p91 = por %p89, %p90
      %p93 = scmp.ne.s32.totalorder %s78, %s92
      %p94 = scmp.eq.s32.totalorder %s35, 0
      %p95 = por %p93, %p94
      %s96 = ssub.s32 %s37, %s44
      %p97 = scmp.eq.s32.totalorder %s96, 0
      %s99 = sadd.s32 %s98, 1
      %s100 = scalar_select %p97, %s98, %s99
      %p103 = pneg %p97
      %p104 = scmp.eq.s32.totalorder %s29, 3
      %p105 = por %p103, %p104
      %p106 = scmp.ne.s32.totalorder %s98, %s101
      %p107 = scmp.eq.s32.totalorder %s29, 0
      %p108 = por %p106, %p107
      %p109 = scmp.ne.s32.totalorder %s98, %s101
      %p110 = scmp.eq.s32.totalorder %s34, 3
      %p111 = por %p109, %p110
      %p112 = scmp.ne.s32.totalorder %s101, %s102
      %p113 = scmp.eq.s32.totalorder %s34, 0
      %p114 = por %p112, %p113
      %p115 = scmp.ne.s32.totalorder %s101, %s102
      %p116 = scmp.eq.s32.totalorder %s35, 3
      %p117 = por %p115, %p116
      %p119 = scmp.ne.s32.totalorder %s102, %s118
      %p120 = scmp.eq.s32.totalorder %s35, 0
      %p121 = por %p119, %p120
      %s122 = ssub.s32 %s37, %s44
      %p123 = scmp.eq.s32.totalorder %s122, 0
      %s125 = sadd.s32 %s124, 1
      %s126 = scalar_select %p123, %s124, %s125
      %p129 = pneg %p123
      %p130 = scmp.eq.s32.totalorder %s29, 3
      %p131 = por %p129, %p130
      %p132 = scmp.ne.s32.totalorder %s124, %s127
      %p133 = scmp.eq.s32.totalorder %s29, 0
      %p134 = por %p132, %p133
      %p135 = scmp.ne.s32.totalorder %s124, %s127
      %p136 = scmp.eq.s32.totalorder %s34, 3
      %p137 = por %p135, %p136
      %p138 = scmp.ne.s32.totalorder %s127, %s128
      %p139 = scmp.eq.s32.totalorder %s34, 0
      %p140 = por %p138, %p139
      %p141 = scmp.ne.s32.totalorder %s127, %s128
      %p142 = scmp.eq.s32.totalorder %s35, 3
      %p143 = por %p141, %p142
      %p145 = scmp.ne.s32.totalorder %s128, %s144
      %p146 = scmp.eq.s32.totalorder %s35, 0
      %p147 = por %p145, %p146
      %s148 = ssub.s32 %s37, %s44
      %p149 = scmp.eq.s32.totalorder %s148, 0
      %s151 = sadd.s32 %s150, 1
      %s152 = scalar_select %p149, %s150, %s151
      %p155 = pneg %p149
      %p156 = scmp.eq.s32.totalorder %s29, 3
      %p157 = por %p155, %p156
      %p158 = scmp.ne.s32.totalorder %s150, %s153
      %p159 = scmp.eq.s32.totalorder %s29, 0
      %p160 = por %p158, %p159
      %p161 = scmp.ne.s32.totalorder %s150, %s153
      %p162 = scmp.eq.s32.totalorder %s34, 3
      %p163 = por %p161, %p162
      %p164 = scmp.ne.s32.totalorder %s153, %s154
      %p165 = scmp.eq.s32.totalorder %s34, 0
      %p166 = por %p164, %p165
      %p167 = scmp.ne.s32.totalorder %s153, %s154
      %p168 = scmp.eq.s32.totalorder %s35, 3
      %p169 = por %p167, %p168
      %p171 = scmp.ne.s32.totalorder %s154, %s170
      %p172 = scmp.eq.s32.totalorder %s35, 0
      %p173 = por %p171, %p172
      %s174 = ssub.s32 %s37, %s44
      %p175 = scmp.eq.s32.totalorder %s174, 0
      %s177 = sadd.s32 %s176, 1
      %s178 = scalar_select %p175, %s176, %s177
      %p181 = pneg %p175
      %p182 = scmp.eq.s32.totalorder %s29, 3
      %p183 = por %p181, %p182
      %p184 = scmp.ne.s32.totalorder %s176, %s179
      %p185 = scmp.eq.s32.totalorder %s29, 0
      %p186 = por %p184, %p185
      %p187 = scmp.ne.s32.totalorder %s176, %s179
      %p188 = scmp.eq.s32.totalorder %s34, 3
      %p189 = por %p187, %p188
      %p190 = scmp.ne.s32.totalorder %s179, %s180
      %p191 = scmp.eq.s32.totalorder %s34, 0
      %p192 = por %p190, %p191
      %p193 = scmp.ne.s32.totalorder %s179, %s180
      %p194 = scmp.eq.s32.totalorder %s35, 3
      %p195 = por %p193, %p194
      %p197 = scmp.ne.s32.totalorder %s180, %s196
      %p198 = scmp.eq.s32.totalorder %s35, 0
      %p199 = por %p197, %p198
      %s200 = ssub.s32 %s37, %s44
      %p201 = scmp.eq.s32.totalorder %s200, 0
      %s203 = sadd.s32 %s202, 1
      %s204 = scalar_select %p201, %s202, %s203
      %p207 = pneg %p201
      %p208 = scmp.eq.s32.totalorder %s29, 3
      %p209 = por %p207, %p208
      %p210 = scmp.ne.s32.totalorder %s202, %s205
      %p211 = scmp.eq.s32.totalorder %s29, 0
      %p212 = por %p210, %p211
      %p213 = scmp.ne.s32.totalorder %s202, %s205
      %p214 = scmp.eq.s32.totalorder %s34, 3
      %p215 = por %p213, %p214
      %p216 = scmp.ne.s32.totalorder %s205, %s206
      %p217 = scmp.eq.s32.totalorder %s34, 0
      %p218 = por %p216, %p217
      %p219 = scmp.ne.s32.totalorder %s205, %s206
      %p220 = scmp.eq.s32.totalorder %s35, 3
      %p221 = por %p219, %p220
      %p223 = scmp.ne.s32.totalorder %s206, %s222
      %p224 = scmp.eq.s32.totalorder %s35, 0
      %p225 = por %p223, %p224
      %s226 = ssub.s32 %s37, %s44
      %p227 = scmp.eq.s32.totalorder %s226, 0
      %s229 = sadd.s32 %s228, 1
      %s230 = scalar_select %p227, %s228, %s229
      %p233 = pneg %p227
      %p234 = scmp.eq.s32.totalorder %s29, 3
      %p235 = por %p233, %p234
      %p236 = scmp.ne.s32.totalorder %s228, %s231
      %p237 = scmp.eq.s32.totalorder %s29, 0
      %p238 = por %p236, %p237
      %p239 = scmp.ne.s32.totalorder %s228, %s231
      %p240 = scmp.eq.s32.totalorder %s34, 3
      %p241 = por %p239, %p240
      %p242 = scmp.ne.s32.totalorder %s231, %s232
      %p243 = scmp.eq.s32.totalorder %s34, 0
      %p244 = por %p242, %p243
      %p245 = scmp.ne.s32.totalorder %s231, %s232
      %p246 = scmp.eq.s32.totalorder %s35, 3
      %p247 = por %p245, %p246
      %p249 = scmp.ne.s32.totalorder %s232, %s248
      %p250 = scmp.eq.s32.totalorder %s35, 0
      %p251 = por %p249, %p250
      %s252 = ssub.s32 %s37, %s44
      %p253 = scmp.eq.s32.totalorder %s252, 0
      %s255 = sadd.s32 %s254, 1
      %s256 = scalar_select %p253, %s254, %s255
      %p259 = pneg %p253
      %p260 = scmp.eq.s32.totalorder %s29, 3
      %p261 = por %p259, %p260
      %p262 = scmp.ne.s32.totalorder %s254, %s257
      %p263 = scmp.eq.s32.totalorder %s29, 0
      %p264 = por %p262, %p263
      %p265 = scmp.ne.s32.totalorder %s254, %s257
      %p266 = scmp.eq.s32.totalorder %s34, 3
      %p267 = por %p265, %p266
      %p268 = scmp.ne.s32.totalorder %s257, %s258
      %p269 = scmp.eq.s32.totalorder %s34, 0
      %p270 = por %p268, %p269
      %p271 = scmp.ne.s32.totalorder %s257, %s258
      %p272 = scmp.eq.s32.totalorder %s35, 3
      %p273 = por %p271, %p272
      %p275 = scmp.ne.s32.totalorder %s258, %s274
      %p276 = scmp.eq.s32.totalorder %s35, 0
      %p277 = por %p275, %p276
      %s278 = ssub.s32 %s37, %s44
      %p279 = scmp.eq.s32.totalorder %s278, 0
      %s281 = sadd.s32 %s280, 1
      %s282 = scalar_select %p279, %s280, %s281
      %p285 = pneg %p279
      %p286 = scmp.eq.s32.totalorder %s29, 3
      %p287 = por %p285, %p286
      %p288 = scmp.ne.s32.totalorder %s280, %s283
      %p289 = scmp.eq.s32.totalorder %s29, 0
      %p290 = por %p288, %p289
      %p291 = scmp.ne.s32.totalorder %s280, %s283
      %p292 = scmp.eq.s32.totalorder %s34, 3
      %p293 = por %p291, %p292
      %p294 = scmp.ne.s32.totalorder %s283, %s284
      %p295 = scmp.eq.s32.totalorder %s34, 0
      %p296 = por %p294, %p295
      %p297 = scmp.ne.s32.totalorder %s283, %s284
      %p298 = scmp.eq.s32.totalorder %s35, 3
      %p299 = por %p297, %p298
      %p301 = scmp.ne.s32.totalorder %s284, %s300
      %p302 = scmp.eq.s32.totalorder %s35, 0
      %p303 = por %p301, %p302
      %s304 = ssub.s32 %s37, %s44
      %p305 = scmp.eq.s32.totalorder %s304, 0
      %s307 = sadd.s32 %s306, 1
      %s308 = scalar_select %p305, %s306, %s307
      %p311 = pneg %p305
      %p312 = scmp.eq.s32.totalorder %s29, 3
      %p313 = por %p311, %p312
      %p314 = scmp.ne.s32.totalorder %s306, %s309
      %p315 = scmp.eq.s32.totalorder %s29, 0
      %p316 = por %p314, %p315
      %p317 = scmp.ne.s32.totalorder %s306, %s309
      %p318 = scmp.eq.s32.totalorder %s34, 3
      %p319 = por %p317, %p318
      %p320 = scmp.ne.s32.totalorder %s309, %s310
      %p321 = scmp.eq.s32.totalorder %s34, 0
      %p322 = por %p320, %p321
      %p323 = scmp.ne.s32.totalorder %s309, %s310
      %p324 = scmp.eq.s32.totalorder %s35, 3
      %p325 = por %p323, %p324
      %p327 = scmp.ne.s32.totalorder %s310, %s326
      %p328 = scmp.eq.s32.totalorder %s35, 0
      %p329 = por %p327, %p328
      %s330 = ssub.s32 %s37, %s44
      %p331 = scmp.eq.s32.totalorder %s330, 0
      %s333 = sadd.s32 %s332, 1
      %s334 = scalar_select %p331, %s332, %s333
      %p337 = pneg %p331
      %p338 = scmp.eq.s32.totalorder %s29, 3
      %p339 = por %p337, %p338
      %p340 = scmp.ne.s32.totalorder %s332, %s335
      %p341 = scmp.eq.s32.totalorder %s29, 0
      %p342 = por %p340, %p341
      %p343 = scmp.ne.s32.totalorder %s332, %s335
      %p344 = scmp.eq.s32.totalorder %s34, 3
      %p345 = por %p343, %p344
      %p346 = scmp.ne.s32.totalorder %s335, %s336
      %p347 = scmp.eq.s32.totalorder %s34, 0
      %p348 = por %p346, %p347
      %p349 = scmp.ne.s32.totalorder %s335, %s336
      %p350 = scmp.eq.s32.totalorder %s35, 3
      %p351 = por %p349, %p350
      %p353 = scmp.ne.s32.totalorder %s336, %s352
      %p354 = scmp.eq.s32.totalorder %s35, 0
      %p355 = por %p353, %p354
      %s356 = ssub.s32 %s37, %s44
      %p357 = scmp.eq.s32.totalorder %s356, 0
      %s359 = sadd.s32 %s358, 1
      %s360 = scalar_select %p357, %s358, %s359
      %p363 = pneg %p357
      %p364 = scmp.eq.s32.totalorder %s29, 3
      %p365 = por %p363, %p364
      %p366 = scmp.ne.s32.totalorder %s358, %s361
      %p367 = scmp.eq.s32.totalorder %s29, 0
      %p368 = por %p366, %p367
      %p369 = scmp.ne.s32.totalorder %s358, %s361
      %p370 = scmp.eq.s32.totalorder %s34, 3
      %p371 = por %p369, %p370
      %p372 = scmp.ne.s32.totalorder %s361, %s362
      %p373 = scmp.eq.s32.totalorder %s34, 0
      %p374 = por %p372, %p373
      %p375 = scmp.ne.s32.totalorder %s361, %s362
      %p376 = scmp.eq.s32.totalorder %s35, 3
      %p377 = por %p375, %p376
      %p379 = scmp.ne.s32.totalorder %s362, %s378
      %p380 = scmp.eq.s32.totalorder %s35, 0
      %p381 = por %p379, %p380
      %s382 = ssub.s32 %s37, %s44
      %p383 = scmp.eq.s32.totalorder %s382, 0
      %s385 = sadd.s32 %s384, 1
      %s386 = scalar_select %p383, %s384, %s385
      %p389 = pneg %p383
      %p390 = scmp.eq.s32.totalorder %s29, 3
      %p391 = por %p389, %p390
      %p392 = scmp.ne.s32.totalorder %s384, %s387
      %p393 = scmp.eq.s32.totalorder %s29, 0
      %p394 = por %p392, %p393
      %p395 = scmp.ne.s32.totalorder %s384, %s387
      %p396 = scmp.eq.s32.totalorder %s34, 3
      %p397 = por %p395, %p396
      %p398 = scmp.ne.s32.totalorder %s387, %s388
      %p399 = scmp.eq.s32.totalorder %s34, 0
      %p400 = por %p398, %p399
      %p401 = scmp.ne.s32.totalorder %s387, %s388
      %p402 = scmp.eq.s32.totalorder %s35, 3
      %p403 = por %p401, %p402
      %p405 = scmp.ne.s32.totalorder %s388, %s404
      %p406 = scmp.eq.s32.totalorder %s35, 0
      %p407 = por %p405, %p406
      %s408 = ssub.s32 %s37, %s44
      %p409 = scmp.eq.s32.totalorder %s408, 0
      %s411 = sadd.s32 %s410, 1
      %s412 = scalar_select %p409, %s410, %s411
      %p415 = pneg %p409
      %p416 = scmp.eq.s32.totalorder %s29, 3
      %p417 = por %p415, %p416
      %p418 = scmp.ne.s32.totalorder %s410, %s413
      %p419 = scmp.eq.s32.totalorder %s29, 0
      %p420 = por %p418, %p419
      %p421 = scmp.ne.s32.totalorder %s410, %s413
      %p422 = scmp.eq.s32.totalorder %s34, 3
      %p423 = por %p421, %p422
      %p424 = scmp.ne.s32.totalorder %s413, %s414
      %p425 = scmp.eq.s32.totalorder %s34, 0
      %p426 = por %p424, %p425
      %p427 = scmp.ne.s32.totalorder %s413, %s414
      %p428 = scmp.eq.s32.totalorder %s35, 3
      %p429 = por %p427, %p428
      %p431 = scmp.ne.s32.totalorder %s414, %s430
      %p432 = scmp.eq.s32.totalorder %s35, 0
      %p433 = por %p431, %p432
      %s434 = ssub.s32 %s37, %s44
      %p435 = scmp.eq.s32.totalorder %s434, 0
      %s437 = sadd.s32 %s436, 1
      %s438 = scalar_select %p435, %s436, %s437
      %p441 = pneg %p435
      %p442 = scmp.eq.s32.totalorder %s29, 3
      %p443 = por %p441, %p442
      %p444 = scmp.ne.s32.totalorder %s436, %s439
      %p445 = scmp.eq.s32.totalorder %s29, 0
      %p446 = por %p444, %p445
      %p447 = scmp.ne.s32.totalorder %s436, %s439
      %p448 = scmp.eq.s32.totalorder %s34, 3
      %p449 = por %p447, %p448
      %p450 = scmp.ne.s32.totalorder %s439, %s440
      %p451 = scmp.eq.s32.totalorder %s34, 0
      %p452 = por %p450, %p451
      %p453 = scmp.ne.s32.totalorder %s439, %s440
      %p454 = scmp.eq.s32.totalorder %s35, 3
      %p455 = por %p453, %p454
      %p457 = scmp.ne.s32.totalorder %s440, %s456
      %p458 = scmp.eq.s32.totalorder %s35, 0
      %p459 = por %p457, %p458
      %s460 = ssub.s32 %s37, %s44
      %p461 = scmp.eq.s32.totalorder %s460, 0
      %s463 = sadd.s32 %s462, 1
      %s464 = scalar_select %p461, %s462, %s463
      %p467 = pneg %p461
      %p468 = scmp.eq.s32.totalorder %s29, 3
      %p469 = por %p467, %p468
      %p470 = scmp.ne.s32.totalorder %s462, %s465
      %p471 = scmp.eq.s32.totalorder %s29, 0
      %p472 = por %p470, %p471
      %p473 = scmp.ne.s32.totalorder %s462, %s465
      %p474 = scmp.eq.s32.totalorder %s34, 3
      %p475 = por %p473, %p474
      %p476 = scmp.ne.s32.totalorder %s465, %s466
      %p477 = scmp.eq.s32.totalorder %s34, 0
      %p478 = por %p476, %p477
      %p479 = scmp.ne.s32.totalorder %s465, %s466
      %p480 = scmp.eq.s32.totalorder %s35, 3
      %p481 = por %p479, %p480
      %p483 = scmp.ne.s32.totalorder %s466, %s482
      %p484 = scmp.eq.s32.totalorder %s35, 0
      %p485 = por %p483, %p484
      %s486 = ssub.s32 %s37, %s44
      %p487 = scmp.eq.s32.totalorder %s486, 0
      %s489 = sadd.s32 %s488, 1
      %s490 = scalar_select %p487, %s488, %s489
      %p493 = pneg %p487
      %p494 = scmp.eq.s32.totalorder %s29, 3
      %p495 = por %p493, %p494
      %p496 = scmp.ne.s32.totalorder %s488, %s491
      %p497 = scmp.eq.s32.totalorder %s29, 0
      %p498 = por %p496, %p497
      %p499 = scmp.ne.s32.totalorder %s488, %s491
      %p500 = scmp.eq.s32.totalorder %s34, 3
      %p501 = por %p499, %p500
      %p502 = scmp.ne.s32.totalorder %s491, %s492
      %p503 = scmp.eq.s32.totalorder %s34, 0
      %p504 = por %p502, %p503
      %p505 = scmp.ne.s32.totalorder %s491, %s492
      %p506 = scmp.eq.s32.totalorder %s35, 3
      %p507 = por %p505, %p506
      %p509 = scmp.ne.s32.totalorder %s492, %s508
      %p510 = scmp.eq.s32.totalorder %s35, 0
      %p511 = por %p509, %p510
      %s513 = sadd.s32 %s512, 1
      %p516 = scmp.eq.s32.totalorder %s29, 3
      %p517 = scmp.ne.s32.totalorder %s512, %s514
      %p518 = scmp.eq.s32.totalorder %s29, 0
      %p519 = por %p517, %p518
      %p520 = scmp.ne.s32.totalorder %s512, %s514
      %p521 = scmp.eq.s32.totalorder %s34, 3
      %p522 = por %p520, %p521
      %p523 = scmp.ne.s32.totalorder %s514, %s515
      %p524 = scmp.eq.s32.totalorder %s34, 0
      %p525 = por %p523, %p524
      %p526 = scmp.ne.s32.totalorder %s514, %s515
      %p527 = scmp.eq.s32.totalorder %s35, 3
      %p528 = por %p526, %p527
      %p530 = scmp.ne.s32.totalorder %s515, %s529
      %p531 = scmp.eq.s32.totalorder %s35, 0
      %p532 = por %p530, %p531
      %s534 = sadd.s32 %s533, 1
      %p537 = scmp.eq.s32.totalorder %s29, 3
      %p538 = scmp.ne.s32.totalorder %s533, %s535
      %p539 = scmp.eq.s32.totalorder %s29, 0
      %p540 = por %p538, %p539
      %p541 = scmp.ne.s32.totalorder %s533, %s535
      %p542 = scmp.eq.s32.totalorder %s34, 3
      %p543 = por %p541, %p542
      %p544 = scmp.ne.s32.totalorder %s535, %s536
      %p545 = scmp.eq.s32.totalorder %s34, 0
      %p546 = por %p544, %p545
      %p547 = scmp.ne.s32.totalorder %s535, %s536
      %p548 = scmp.eq.s32.totalorder %s35, 3
      %p549 = por %p547, %p548
      %p551 = scmp.ne.s32.totalorder %s536, %s550
      %p552 = scmp.eq.s32.totalorder %s35, 0
      %p553 = por %p551, %p552
      %s554 = ssub.s32 %s36, %s48
      %p555 = scmp.eq.s32.totalorder %s554, 0
      %s557 = sadd.s32 %s556, 1
      %s558 = scalar_select %p555, %s556, %s557
      %p561 = pneg %p555
      %p562 = scmp.eq.s32.totalorder %s29, 3
      %p563 = por %p561, %p562
      %p564 = scmp.ne.s32.totalorder %s556, %s559
      %p565 = scmp.eq.s32.totalorder %s29, 0
      %p566 = por %p564, %p565
      %p567 = scmp.ne.s32.totalorder %s556, %s559
      %p568 = scmp.eq.s32.totalorder %s34, 3
      %p569 = por %p567, %p568
      %p570 = scmp.ne.s32.totalorder %s559, %s560
      %p571 = scmp.eq.s32.totalorder %s34, 0
      %p572 = por %p570, %p571
      %p573 = scmp.ne.s32.totalorder %s559, %s560
      %p574 = scmp.eq.s32.totalorder %s35, 3
      %p575 = por %p573, %p574
      %p577 = scmp.ne.s32.totalorder %s560, %s576
      %p578 = scmp.eq.s32.totalorder %s35, 0
      %p579 = por %p577, %p578
      %p580 = scmp.le.s32.totalorder 1, %s29
      %p581 = scmp.lt.s32.totalorder %s29, 5
      %p582 = pnand %p580, %p581
      %p583 = pneg %p582
      // Predicated region
      $region9: #{pathfinding_transformer_forward.1} parent=5 // pred_check
        _
      $region10: #{pathfinding_transformer_forward.1} parent=5 // pred_check_branch
        %585 = sbr.rel (%p582) target = $region12
      $region11: #{pathfinding_transformer_forward.1} parent=5 // pred_region
        %s586 = ssub.s32 %s29, 1
        // Predicated region
        $region13: #{pathfinding_transformer_forward.1} parent=11 // pred_check
          %p587 = pneg %p88
        $region14: #{pathfinding_transformer_forward.1} parent=11 // pred_check_branch
          %589 = sbr.rel (%p587) target = $region16
        $region15: #{pathfinding_transformer_forward.1} parent=11 // pred_region
          _
        $region16: #{pathfinding_transformer_forward.1} parent=11 // pred_fallthru
          _
        // Predicated region
        $region17: #{pathfinding_transformer_forward.1} parent=11 // pred_check
          %p590 = pneg %p525
        $region18: #{pathfinding_transformer_forward.1} parent=11 // pred_check_branch
          %592 = sbr.rel (%p590) target = $region20
        $region19: #{pathfinding_transformer_forward.1} parent=11 // pred_region
          _
        $region20: #{pathfinding_transformer_forward.1} parent=11 // pred_fallthru
          _
        // Predicated region
        $region21: #{pathfinding_transformer_forward.1} parent=11 // pred_check
          %p593 = pneg %p546
        $region22: #{pathfinding_transformer_forward.1} parent=11 // pred_check_branch
          %595 = sbr.rel (%p593) target = $region24
        $region23: #{pathfinding_transformer_forward.1} parent=11 // pred_region
          _
        $region24: #{pathfinding_transformer_forward.1} parent=11 // pred_fallthru
          _
      $region12: #{pathfinding_transformer_forward.1} parent=5 // pred_fallthru
        _
      %p596 = scmp.lt.s32.totalorder %s29, 4
      // Predicated region
      $region25: #{pathfinding_transformer_forward.1} parent=5 // pred_check
        %p597 = pneg %p596
      $region26: #{pathfinding_transformer_forward.1} parent=5 // pred_check_branch
        %599 = sbr.rel (%p597) target = $region28
      $region27: #{pathfinding_transformer_forward.1} parent=5 // pred_region
        // Predicated region
        $region29: #{pathfinding_transformer_forward.1} parent=27 // pred_check
          %p600 = pneg %p61
        $region30: #{pathfinding_transformer_forward.1} parent=27 // pred_check_branch
          %602 = sbr.rel (%p600) target = $region32
        $region31: #{pathfinding_transformer_forward.1} parent=27 // pred_region
          %p603 = scmp.lt.s32.totalorder %s36, 1
          %s604 = scalar_select %p603, %s36, 1
          %s605 = smul.addr %s604, 2
          %s606 = smul.addr %s605, 8
          %s607 = scalar_lea.vmem %s0, %s606
        $region32: #{pathfinding_transformer_forward.1} parent=27 // pred_fallthru
          _
        // Predicated region
        $region33: #{pathfinding_transformer_forward.1} parent=27 // pred_check
          %p608 = pneg %p108
        $region34: #{pathfinding_transformer_forward.1} parent=27 // pred_check_branch
          %610 = sbr.rel (%p608) target = $region36
        $region35: #{pathfinding_transformer_forward.1} parent=27 // pred_region
          %p611 = scmp.lt.s32.totalorder %s37, 1
          %s612 = scalar_select %p611, %s37, 1
          %s613 = smul.addr %s612, 4
          %s614 = smul.addr %s613, 8
          %s615 = scalar_lea.vmem %s2, %s614
        $region36: #{pathfinding_transformer_forward.1} parent=27 // pred_fallthru
          _
        // Predicated region
        $region37: #{pathfinding_transformer_forward.1} parent=27 // pred_check
          %p616 = pneg %p134
        $region38: #{pathfinding_transformer_forward.1} parent=27 // pred_check_branch
          %618 = sbr.rel (%p616) target = $region40
        $region39: #{pathfinding_transformer_forward.1} parent=27 // pred_region
          %p619 = scmp.lt.s32.totalorder %s37, 1
          %s620 = scalar_select %p619, %s37, 1
          %s621 = scalar_lea.vmem %s3, %s620
        $region40: #{pathfinding_transformer_forward.1} parent=27 // pred_fallthru
          _
        // Predicated region
        $region41: #{pathfinding_transformer_forward.1} parent=27 // pred_check
          %p622 = pneg %p160
        $region42: #{pathfinding_transformer_forward.1} parent=27 // pred_check_branch
          %624 = sbr.rel (%p622) target = $region44
        $region43: #{pathfinding_transformer_forward.1} parent=27 // pred_region
          %p625 = scmp.lt.s32.totalorder %s37, 1
          %s626 = scalar_select %p625, %s37, 1
          %s627 = smul.addr %s626, 4
          %s628 = smul.addr %s627, 8
          %s629 = scalar_lea.vmem %s4, %s628
        $region44: #{pathfinding_transformer_forward.1} parent=27 // pred_fallthru
          _
        // Predicated region
        $region45: #{pathfinding_transformer_forward.1} parent=27 // pred_check
          %p630 = pneg %p186
        $region46: #{pathfinding_transformer_forward.1} parent=27 // pred_check_branch
          %632 = sbr.rel (%p630) target = $region48
        $region47: #{pathfinding_transformer_forward.1} parent=27 // pred_region
          %p633 = scmp.lt.s32.totalorder %s37, 1
          %s634 = scalar_select %p633, %s37, 1
          %s635 = scalar_lea.vmem %s5, %s634
        $region48: #{pathfinding_transformer_forward.1} parent=27 // pred_fallthru
          _
        // Predicated region
        $region49: #{pathfinding_transformer_forward.1} parent=27 // pred_check
          %p636 = pneg %p212
        $region50: #{pathfinding_transformer_forward.1} parent=27 // pred_check_branch
          %638 = sbr.rel (%p636) target = $region52
        $region51: #{pathfinding_transformer_forward.1} parent=27 // pred_region
          %p639 = scmp.lt.s32.totalorder %s37, 1
          %s640 = scalar_select %p639, %s37, 1
          %s641 = smul.addr %s640, 4
          %s642 = smul.addr %s641, 8
          %s643 = scalar_lea.vmem %s6, %s642
        $region52: #{pathfinding_transformer_forward.1} parent=27 // pred_fallthru
          _
        // Predicated region
        $region53: #{pathfinding_transformer_forward.1} parent=27 // pred_check
          %p644 = pneg %p238
        $region54: #{pathfinding_transformer_forward.1} parent=27 // pred_check_branch
          %646 = sbr.rel (%p644) target = $region56
        $region55: #{pathfinding_transformer_forward.1} parent=27 // pred_region
          %p647 = scmp.lt.s32.totalorder %s37, 1
          %s648 = scalar_select %p647, %s37, 1
          %s649 = scalar_lea.vmem %s7, %s648
        $region56: #{pathfinding_transformer_forward.1} parent=27 // pred_fallthru
          _
        // Predicated region
        $region57: #{pathfinding_transformer_forward.1} parent=27 // pred_check
          %p650 = pneg %p264
        $region58: #{pathfinding_transformer_forward.1} parent=27 // pred_check_branch
          %652 = sbr.rel (%p650) target = $region60
        $region59: #{pathfinding_transformer_forward.1} parent=27 // pred_region
          %p653 = scmp.lt.s32.totalorder %s37, 1
          %s654 = scalar_select %p653, %s37, 1
          %s655 = smul.addr %s654, 4
          %s656 = smul.addr %s655, 8
          %s657 = scalar_lea.vmem %s8, %s656
        $region60: #{pathfinding_transformer_forward.1} parent=27 // pred_fallthru
          _
        // Predicated region
        $region61: #{pathfinding_transformer_forward.1} parent=27 // pred_check
          %p658 = pneg %p290
        $region62: #{pathfinding_transformer_forward.1} parent=27 // pred_check_branch
          %660 = sbr.rel (%p658) target = $region64
        $region63: #{pathfinding_transformer_forward.1} parent=27 // pred_region
          %p661 = scmp.lt.s32.totalorder %s37, 1
          %s662 = scalar_select %p661, %s37, 1
          %s663 = scalar_lea.vmem %s9, %s662
        $region64: #{pathfinding_transformer_forward.1} parent=27 // pred_fallthru
          _
        // Predicated region
        $region65: #{pathfinding_transformer_forward.1} parent=27 // pred_check
          %p664 = pneg %p316
        $region66: #{pathfinding_transformer_forward.1} parent=27 // pred_check_branch
          %666 = sbr.rel (%p664) target = $region68
        $region67: #{pathfinding_transformer_forward.1} parent=27 // pred_region
          %p667 = scmp.lt.s32.totalorder %s37, 1
          %s668 = scalar_select %p667, %s37, 1
          %s669 = scalar_lea.vmem %s10, %s668
        $region68: #{pathfinding_transformer_forward.1} parent=27 // pred_fallthru
          _
        // Predicated region
        $region69: #{pathfinding_transformer_forward.1} parent=27 // pred_check
          %p670 = pneg %p342
        $region70: #{pathfinding_transformer_forward.1} parent=27 // pred_check_branch
          %672 = sbr.rel (%p670) target = $region72
        $region71: #{pathfinding_transformer_forward.1} parent=27 // pred_region
          %p673 = scmp.lt.s32.totalorder %s37, 1
          %s674 = scalar_select %p673, %s37, 1
          %s675 = scalar_lea.vmem %s11, %s674
        $region72: #{pathfinding_transformer_forward.1} parent=27 // pred_fallthru
          _
        // Predicated region
        $region73: #{pathfinding_transformer_forward.1} parent=27 // pred_check
          %p676 = pneg %p368
        $region74: #{pathfinding_transformer_forward.1} parent=27 // pred_check_branch
          %678 = sbr.rel (%p676) target = $region76
        $region75: #{pathfinding_transformer_forward.1} parent=27 // pred_region
          %p679 = scmp.lt.s32.totalorder %s37, 1
          %s680 = scalar_select %p679, %s37, 1
          %s681 = smul.addr %s680, 4
          %s682 = smul.addr %s681, 8
          %s683 = scalar_lea.vmem %s12, %s682
        $region76: #{pathfinding_transformer_forward.1} parent=27 // pred_fallthru
          _
        // Predicated region
        $region77: #{pathfinding_transformer_forward.1} parent=27 // pred_check
          %p684 = pneg %p394
        $region78: #{pathfinding_transformer_forward.1} parent=27 // pred_check_branch
          %686 = sbr.rel (%p684) target = $region80
        $region79: #{pathfinding_transformer_forward.1} parent=27 // pred_region
          %p687 = scmp.lt.s32.totalorder %s37, 1
          %s688 = scalar_select %p687, %s37, 1
          %s689 = scalar_lea.vmem %s13, %s688
        $region80: #{pathfinding_transformer_forward.1} parent=27 // pred_fallthru
          _
        // Predicated region
        $region81: #{pathfinding_transformer_forward.1} parent=27 // pred_check
          %p690 = pneg %p420
        $region82: #{pathfinding_transformer_forward.1} parent=27 // pred_check_branch
          %692 = sbr.rel (%p690) target = $region84
        $region83: #{pathfinding_transformer_forward.1} parent=27 // pred_region
          %p693 = scmp.lt.s32.totalorder %s37, 1
          %s694 = scalar_select %p693, %s37, 1
          %s695 = smul.addr %s694, 8
          %s696 = smul.addr %s695, 8
          %s697 = scalar_lea.vmem %s14, %s696
        $region84: #{pathfinding_transformer_forward.1} parent=27 // pred_fallthru
          _
        // Predicated region
        $region85: #{pathfinding_transformer_forward.1} parent=27 // pred_check
          %p698 = pneg %p446
        $region86: #{pathfinding_transformer_forward.1} parent=27 // pred_check_branch
          %700 = sbr.rel (%p698) target = $region88
        $region87: #{pathfinding_transformer_forward.1} parent=27 // pred_region
          %p701 = scmp.lt.s32.totalorder %s37, 1
          %s702 = scalar_select %p701, %s37, 1
          %s703 = scalar_lea.vmem %s15, %s702
        $region88: #{pathfinding_transformer_forward.1} parent=27 // pred_fallthru
          _
        // Predicated region
        $region89: #{pathfinding_transformer_forward.1} parent=27 // pred_check
          %p704 = pneg %p472
        $region90: #{pathfinding_transformer_forward.1} parent=27 // pred_check_branch
          %706 = sbr.rel (%p704) target = $region92
        $region91: #{pathfinding_transformer_forward.1} parent=27 // pred_region
          %p707 = scmp.lt.s32.totalorder %s37, 1
          %s708 = scalar_select %p707, %s37, 1
          %s709 = scalar_lea.vmem %s16, %s708
        $region92: #{pathfinding_transformer_forward.1} parent=27 // pred_fallthru
          _
        // Predicated region
        $region93: #{pathfinding_transformer_forward.1} parent=27 // pred_check
          %p710 = pneg %p498
        $region94: #{pathfinding_transformer_forward.1} parent=27 // pred_check_branch
          %712 = sbr.rel (%p710) target = $region96
        $region95: #{pathfinding_transformer_forward.1} parent=27 // pred_region
          %p713 = scmp.lt.s32.totalorder %s37, 1
          %s714 = scalar_select %p713, %s37, 1
          %s715 = scalar_lea.vmem %s17, %s714
        $region96: #{pathfinding_transformer_forward.1} parent=27 // pred_fallthru
          _
      $region28: #{pathfinding_transformer_forward.1} parent=5 // pred_fallthru
        _
      %p716 = scmp.le.s32.totalorder 1, %s29
      %p717 = scmp.lt.s32.totalorder %s29, 5
      %p718 = pnand %p716, %p717
      %p719 = pneg %p718
      // Predicated region
      $region97: #{pathfinding_transformer_forward.1} parent=5 // pred_check
        _
      $region98: #{pathfinding_transformer_forward.1} parent=5 // pred_check_branch
        %721 = sbr.rel (%p718) target = $region100
      $region99: #{pathfinding_transformer_forward.1} parent=5 // pred_region
        %s722 = ssub.s32 %s29, 1
        %p723 = scmp.lt.s32.totalorder %s38, 1
        %s724 = scalar_select %p723, %s38, 1
        %s725 = smul.addr %s724, 2
        %s726 = smul.addr %s725, 8
        %s727 = scalar_lea.vmem %s0, %s726
        %p728 = pneg %p67
        %p729 = pneg %p64
        %p730 = pneg %p88
        %p731 = pneg %p85
        %p732 = scmp.lt.s32.totalorder %s39, 1
        %s733 = scalar_select %p732, %s39, 1
        %s734 = smul.addr %s733, 4
        %s735 = smul.addr %s734, 8
        %s736 = scalar_lea.vmem %s2, %s735
        %p737 = pneg %p114
        %p738 = pneg %p111
        %p739 = scmp.lt.s32.totalorder %s39, 1
        %s740 = scalar_select %p739, %s39, 1
        %s741 = scalar_lea.vmem %s3, %s740
        %p742 = pneg %p140
        %p743 = pneg %p137
        %p744 = scmp.lt.s32.totalorder %s39, 1
        %s745 = scalar_select %p744, %s39, 1
        %s746 = smul.addr %s745, 4
        %s747 = smul.addr %s746, 8
        %s748 = scalar_lea.vmem %s4, %s747
        %p749 = pneg %p166
        %p750 = pneg %p163
        %p751 = scmp.lt.s32.totalorder %s39, 1
        %s752 = scalar_select %p751, %s39, 1
        %s753 = scalar_lea.vmem %s5, %s752
        %p754 = pneg %p192
        %p755 = pneg %p189
        %p756 = scmp.lt.s32.totalorder %s39, 1
        %s757 = scalar_select %p756, %s39, 1
        %s758 = smul.addr %s757, 4
        %s759 = smul.addr %s758, 8
        %s760 = scalar_lea.vmem %s6, %s759
        %p761 = pneg %p218
        %p762 = pneg %p215
        %p763 = scmp.lt.s32.totalorder %s39, 1
        %s764 = scalar_select %p763, %s39, 1
        %s765 = scalar_lea.vmem %s7, %s764
        %p766 = pneg %p244
        %p767 = pneg %p241
        %p768 = scmp.lt.s32.totalorder %s39, 1
        %s769 = scalar_select %p768, %s39, 1
        %s770 = smul.addr %s769, 4
        %s771 = smul.addr %s770, 8
        %s772 = scalar_lea.vmem %s8, %s771
        %p773 = pneg %p270
        %p774 = pneg %p267
        %p775 = scmp.lt.s32.totalorder %s39, 1
        %s776 = scalar_select %p775, %s39, 1
        %s777 = scalar_lea.vmem %s9, %s776
        %p778 = pneg %p296
        %p779 = pneg %p293
        %p780 = scmp.lt.s32.totalorder %s39, 1
        %s781 = scalar_select %p780, %s39, 1
        %s782 = scalar_lea.vmem %s10, %s781
        %p783 = pneg %p322
        %p784 = pneg %p319
        %p785 = scmp.lt.s32.totalorder %s39, 1
        %s786 = scalar_select %p785, %s39, 1
        %s787 = scalar_lea.vmem %s11, %s786
        %p788 = pneg %p348
        %p789 = pneg %p345
        %p790 = scmp.lt.s32.totalorder %s39, 1
        %s791 = scalar_select %p790, %s39, 1
        %s792 = smul.addr %s791, 4
        %s793 = smul.addr %s792, 8
        %s794 = scalar_lea.vmem %s12, %s793
        %p795 = pneg %p374
        %p796 = pneg %p371
        %p797 = scmp.lt.s32.totalorder %s39, 1
        %s798 = scalar_select %p797, %s39, 1
        %s799 = scalar_lea.vmem %s13, %s798
        %p800 = pneg %p400
        %p801 = pneg %p397
        %p802 = scmp.lt.s32.totalorder %s39, 1
        %s803 = scalar_select %p802, %s39, 1
        %s804 = smul.addr %s803, 8
        %s805 = smul.addr %s804, 8
        %s806 = scalar_lea.vmem %s14, %s805
        %p807 = pneg %p426
        %p808 = pneg %p423
        %p809 = scmp.lt.s32.totalorder %s39, 1
        %s810 = scalar_select %p809, %s39, 1
        %s811 = scalar_lea.vmem %s15, %s810
        %p812 = pneg %p452
        %p813 = pneg %p449
        %p814 = scmp.lt.s32.totalorder %s39, 1
        %s815 = scalar_select %p814, %s39, 1
        %s816 = scalar_lea.vmem %s16, %s815
        %p817 = pneg %p478
        %p818 = pneg %p475
        %p819 = scmp.lt.s32.totalorder %s39, 1
        %s820 = scalar_select %p819, %s39, 1
        %s821 = scalar_lea.vmem %s17, %s820
        %p822 = pneg %p504
        %p823 = pneg %p501
        %p824 = pneg %p525
        %p825 = pneg %p522
        %p826 = pneg %p546
        %p827 = pneg %p543
        %p828 = pneg %p572
        %p829 = pneg %p569
        %s830 = sand.u32 %s559, 1
        %s831 = scalar_lea.sflag [#allocation4], %s830
        %s832 = sand.u32 %s559, 1
        %s833 = scalar_lea.vmem [#allocation3], %s832
        %p834 = scmp.lt.s32.totalorder %s38, 1
        %s835 = scalar_select %p834, %s38, 1
        %s836 = smul.addr %s835, 2
        %s837 = smul.addr %s836, 8
        %s838 = scalar_lea.vmem %s0, %s837
        %p839 = scmp.lt.s32.totalorder %s39, 1
        %s840 = scalar_select %p839, %s39, 1
        %s841 = smul.addr %s840, 4
        %s842 = smul.addr %s841, 8
        %s843 = scalar_lea.vmem %s2, %s842
        %p844 = scmp.lt.s32.totalorder %s39, 1
        %s845 = scalar_select %p844, %s39, 1
        %s846 = scalar_lea.vmem %s3, %s845
        %p847 = scmp.lt.s32.totalorder %s39, 1
        %s848 = scalar_select %p847, %s39, 1
        %s849 = smul.addr %s848, 4
        %s850 = smul.addr %s849, 8
        %s851 = scalar_lea.vmem %s4, %s850
        %p852 = scmp.lt.s32.totalorder %s39, 1
        %s853 = scalar_select %p852, %s39, 1
        %s854 = scalar_lea.vmem %s5, %s853
        %p855 = scmp.lt.s32.totalorder %s39, 1
        %s856 = scalar_select %p855, %s39, 1
        %s857 = smul.addr %s856, 4
        %s858 = smul.addr %s857, 8
        %s859 = scalar_lea.vmem %s6, %s858
        %p860 = scmp.lt.s32.totalorder %s39, 1
        %s861 = scalar_select %p860, %s39, 1
        %s862 = scalar_lea.vmem %s7, %s861
        %p863 = scmp.lt.s32.totalorder %s39, 1
        %s864 = scalar_select %p863, %s39, 1
        %s865 = smul.addr %s864, 4
        %s866 = smul.addr %s865, 8
        %s867 = scalar_lea.vmem %s8, %s866
        %p868 = scmp.lt.s32.totalorder %s39, 1
        %s869 = scalar_select %p868, %s39, 1
        %s870 = scalar_lea.vmem %s9, %s869
        %p871 = scmp.lt.s32.totalorder %s39, 1
        %s872 = scalar_select %p871, %s39, 1
        %s873 = scalar_lea.vmem %s10, %s872
        %p874 = scmp.lt.s32.totalorder %s39, 1
        %s875 = scalar_select %p874, %s39, 1
        %s876 = scalar_lea.vmem %s11, %s875
        %p877 = scmp.lt.s32.totalorder %s39, 1
        %s878 = scalar_select %p877, %s39, 1
        %s879 = smul.addr %s878, 4
        %s880 = smul.addr %s879, 8
        %s881 = scalar_lea.vmem %s12, %s880
        %p882 = scmp.lt.s32.totalorder %s39, 1
        %s883 = scalar_select %p882, %s39, 1
        %s884 = scalar_lea.vmem %s13, %s883
        %p885 = scmp.lt.s32.totalorder %s39, 1
        %s886 = scalar_select %p885, %s39, 1
        %s887 = smul.addr %s886, 8
        %s888 = smul.addr %s887, 8
        %s889 = scalar_lea.vmem %s14, %s888
        %p890 = scmp.lt.s32.totalorder %s39, 1
        %s891 = scalar_select %p890, %s39, 1
        %s892 = scalar_lea.vmem %s15, %s891
        %p893 = scmp.lt.s32.totalorder %s39, 1
        %s894 = scalar_select %p893, %s39, 1
        %s895 = scalar_lea.vmem %s16, %s894
        %p896 = scmp.lt.s32.totalorder %s39, 1
        %s897 = scalar_select %p896, %s39, 1
        %s898 = scalar_lea.vmem %s17, %s897
        %v899 = vlaneseq
        %v900 = vshrl.u32 %v899, 7
        %v901 = vadd.s32 %v900, 8
        %v902 = vadd.s32 %v900, 16
        %v903 = vadd.s32 %v900, 24
        %v904 = vadd.s32 %v900, 32
        %v905 = vadd.s32 %v900, 40
        %v906 = vlaneseq
        %v907 = vand.u32 %v906, 127
        %vm908 = vcmp.ge.s32.totalorder %v900, 11
        %vm909 = vcmp.ge.s32.totalorder %v901, 11
        %vm910 = vcmp.ge.s32.totalorder %v902, 11
        %vm911 = vcmp.ge.s32.totalorder %v903, 11
        %vm912 = vcmp.ge.s32.totalorder %v904, 11
        %vm913 = vcmp.ge.s32.totalorder %v905, 11
        %v914 = vsel %vm908, 1, 0
        %v915 = vsel %vm909, 1, 0
        %v916 = vsel %vm910, 1, 0
        %v917 = vsel %vm911, 1, 0
        %v918 = vsel %vm912, 1, 0
        %v919 = vsel %vm913, 1, 0
        %vm920 = vcmp.ge.s32.totalorder %v900, 22
        %vm921 = vcmp.ge.s32.totalorder %v901, 22
        %vm922 = vcmp.ge.s32.totalorder %v902, 22
        %vm923 = vcmp.ge.s32.totalorder %v903, 22
        %vm924 = vcmp.ge.s32.totalorder %v904, 22
        %vm925 = vcmp.ge.s32.totalorder %v905, 22
        %v926 = vsel %vm920, 1, 0
        %v927 = vsel %vm921, 1, 0
        %v928 = vsel %vm922, 1, 0
        %v929 = vsel %vm923, 1, 0
        %v930 = vsel %vm924, 1, 0
        %v931 = vsel %vm925, 1, 0
        %v932 = vadd.s32 %v914, %v926
        %v933 = vadd.s32 %v915, %v927
        %v934 = vadd.s32 %v916, %v928
        %v935 = vadd.s32 %v917, %v929
        %v936 = vadd.s32 %v918, %v930
        %v937 = vadd.s32 %v919, %v931
        %vm938 = vcmp.ge.s32.totalorder %v900, 33
        %vm939 = vcmp.ge.s32.totalorder %v901, 33
        %vm940 = vcmp.ge.s32.totalorder %v902, 33
        %vm941 = vcmp.ge.s32.totalorder %v903, 33
        %vm942 = vcmp.ge.s32.totalorder %v904, 33
        %vm943 = vcmp.ge.s32.totalorder %v905, 33
        %v944 = vsel %vm938, 1, 0
        %v945 = vsel %vm939, 1, 0
        %v946 = vsel %vm940, 1, 0
        %v947 = vsel %vm941, 1, 0
        %v948 = vsel %vm942, 1, 0
        %v949 = vsel %vm943, 1, 0
        %v950 = vadd.s32 %v932, %v944
        %v951 = vadd.s32 %v933, %v945
        %v952 = vadd.s32 %v934, %v946
        %v953 = vadd.s32 %v935, %v947
        %v954 = vadd.s32 %v936, %v948
        %v955 = vadd.s32 %v937, %v949
        %vm956 = vcmp.ge.s32.totalorder %v907, 11
        %v957 = vsel %vm956, 1, 0
        %vm958 = vcmp.ge.s32.totalorder %v907, 22
        %v959 = vsel %vm958, 1, 0
        %v960 = vadd.s32 %v957, %v959
        %vm961 = vcmp.ge.s32.totalorder %v907, 33
        %v962 = vsel %vm961, 1, 0
        %v963 = vadd.s32 %v960, %v962
        %vm964 = vcmp.ge.s32.totalorder %v907, 8
        %v965 = vsel %vm964, 1, 0
        %vm966 = vcmp.ge.s32.totalorder %v907, 16
        %v967 = vsel %vm966, 1, 0
        %v968 = vadd.s32 %v965, %v967
        %vm969 = vcmp.ge.s32.totalorder %v907, 24
        %v970 = vsel %vm969, 1, 0
        %v971 = vadd.s32 %v968, %v970
        %v972 = vmul.u32 %v950, 11
        %v973 = vmul.u32 %v951, 11
        %v974 = vmul.u32 %v952, 11
        %v975 = vmul.u32 %v953, 11
        %v976 = vmul.u32 %v954, 11
        %v977 = vmul.u32 %v955, 11
        %v978 = vsub.s32 %v900, %v972
        %v979 = vsub.s32 %v901, %v973
        %v980 = vsub.s32 %v902, %v974
        %v981 = vsub.s32 %v903, %v975
        %v982 = vsub.s32 %v904, %v976
        %v983 = vsub.s32 %v905, %v977
        %vm984 = vcmp.eq.s32.totalorder %v978, %v907
        %vm985 = vcmp.eq.s32.totalorder %v979, %v907
        %vm986 = vcmp.eq.s32.totalorder %v980, %v907
        %vm987 = vcmp.eq.s32.totalorder %v981, %v907
        %vm988 = vcmp.eq.s32.totalorder %v982, %v907
        %vm989 = vcmp.eq.s32.totalorder %v983, %v907
        %v990 = vsel %vm984, 1.0, 0.0
        %v991 = vsel %vm985, 1.0, 0.0
        %v992 = vsel %vm986, 1.0, 0.0
        %v993 = vsel %vm987, 1.0, 0.0
        %v994 = vsel %vm988, 1.0, 0.0
        %v995 = vsel %vm989, 1.0, 0.0
        %vm996 = vcmp.eq.s32.totalorder %v950, %v971
        %vm997 = vcmp.eq.s32.totalorder %v951, %v971
        %vm998 = vcmp.eq.s32.totalorder %v952, %v971
        %vm999 = vcmp.eq.s32.totalorder %v953, %v971
        %vm1000 = vcmp.eq.s32.totalorder %v954, %v971
        %vm1001 = vcmp.eq.s32.totalorder %v955, %v971
        %v1002 = vsel %vm996, 1.0, 0.0
        %v1003 = vsel %vm997, 1.0, 0.0
        %v1004 = vsel %vm998, 1.0, 0.0
        %v1005 = vsel %vm999, 1.0, 0.0
        %v1006 = vsel %vm1000, 1.0, 0.0
        %v1007 = vsel %vm1001, 1.0, 0.0
        %vm1008 = vcmp.eq.s32.totalorder %v950, %v963
        %vm1009 = vcmp.eq.s32.totalorder %v951, %v963
        %vm1010 = vcmp.eq.s32.totalorder %v952, %v963
        %vm1011 = vcmp.eq.s32.totalorder %v953, %v963
        %vm1012 = vcmp.eq.s32.totalorder %v954, %v963
        %vm1013 = vcmp.eq.s32.totalorder %v955, %v963
        %v1014 = vsel %vm1008, 1.0, 0.0
        %v1015 = vsel %vm1009, 1.0, 0.0
        %v1016 = vsel %vm1010, 1.0, 0.0
        %v1017 = vsel %vm1011, 1.0, 0.0
        %v1018 = vsel %vm1012, 1.0, 0.0
        %v1019 = vsel %vm1013, 1.0, 0.0
        %vm1020 = vcmp.eq.s32.totalorder %v963, 0
        %v1021 = vsel %vm1020, 1.0, 0.0
        %vm1022 = vcmp.eq.s32.totalorder %v963, 1
        %v1023 = vsel %vm1022, 1.0, 0.0
        %vm1024 = vcmp.eq.s32.totalorder %v963, 2
        %v1025 = vsel %vm1024, 1.0, 0.0
        %vm1026 = vcmp.eq.s32.totalorder %v963, 3
        %v1027 = vsel %vm1026, 1.0, 0.0
        %v1028 = vsub.f32 %v1021, 1.0
        %v1029 = vmul.f32 %v1028, 1e+30
        %v1030 = vsub.f32 %v1023, 1.0
        %v1031 = vmul.f32 %v1030, 1e+30
        %v1032 = vsub.f32 %v1025, 1.0
        %v1033 = vmul.f32 %v1032, 1e+30
        %v1034 = vsub.f32 %v1027, 1.0
        %v1035 = vmul.f32 %v1034, 1e+30
        %p1036 = scmp.eq.s32.totalorder %s39, 0
        // Predicated region
        $region101: #{pathfinding_transformer_forward.1} parent=99 // pred_check
          %p1037 = pneg %p1036
        $region102: #{pathfinding_transformer_forward.1} parent=99 // pred_check_branch
          %1039 = sbr.rel (%p1037) target = $region104
        $region103: #{pathfinding_transformer_forward.1} parent=99 // pred_region
          %v1040 = vld [vmem:[%s838] sm:$0xff]
          %v1041 = vld [vmem:[%s838 + $0x8] sm:$0x7]
          %v1042 = vld [vmem:[%s1] sm:$0xff]
          %v1043 = vld [vmem:[%s1 + $0x8] sm:$0x7]
          %v1044 = vadd.f32 %v1040, %v1042
          %v1045 = vadd.f32 %v1041, %v1043
          %vm1046 = vcmask 261120
          %1047 = vst.msk [vmem:[#allocation2] sm:$0xff] %vm1046, %v1044
          %vm1048 = vcmask 256000
          %1049 = vst.msk [vmem:[#allocation2 + $0x8] sm:$0x7] %vm1048, %v1045
        $region104: #{pathfinding_transformer_forward.1} parent=99 // pred_fallthru
          _
        %v1050 = vld [vmem:[#allocation2] sm:$0xff]
        %v1051 = vld [vmem:[#allocation2 + $0x8] sm:$0x7]
        %v1052 = vld [vmem:[%s843] sm:$0xff]
        %v1053 = vld [vmem:[%s843 + $0x8] sm:$0xff]
        %v1054 = vld [vmem:[%s843 + $0x10] sm:$0xff]
        %v1055 = vld [vmem:[%s843 + $0x18] sm:$0xff]
        %v1056 = vld [vmem:[%s846] sm:$0x1]
        %v1058 = vlaneseq
        %v1059 = vshrl.u32 %v1058, 7
        %v1060 = vsub.s32 0, %v1059
        %v1061 = vrot.slane %v1056, %v1060
        %vm1063 = vcmask 261120
        %v1065 = vsel %vm1063, %v1050, 0
        %v1068 = vsel %vm1063, %v1051, 0
        %1070 = vmatprep.subr.mxu0 0.0
        %1071 = vmatpush1.msra.mxu0 %v1052
        %1072 = vmatprep.subr.mxu0 0.0
        %1073 = vmatpush1.msra.mxu0 %v1053
        %1074 = vmatprep.subr.mxu0 0.0
        %1075 = vmatpush1.msra.mxu0 %v1054
        %1076 = vmatprep.subr.mxu0 0.0
        %1077 = vmatpush1.msra.mxu0 %v1055
        %1078 = vmatprep.subr.mxu0 0.0
        %1079 = vmatpush1.msra.mxu0 0.0
        %1080 = vmatprep.subr.mxu0 0.0
        %1081 = vmatpush1.msra.mxu0 0.0
        %1082 = vmatprep.subr.mxu0 0.0
        %1083 = vmatpush1.msra.mxu0 0.0
        %1084 = vmatprep.subr.mxu0 0.0
        %1085 = vmatpush1.msra.mxu0 0.0
        %1086 = vmatprep.subr.mxu0 0.0
        %1087 = vmatpush1.msra.mxu0 0.0
        %1088 = vmatprep.subr.mxu0 0.0
        %1089 = vmatpush1.msra.mxu0 0.0
        %1090 = vmatprep.subr.mxu0 0.0
        %1091 = vmatpush1.msra.mxu0 0.0
        %1092 = vmatprep.subr.mxu0 0.0
        %1093 = vmatpush1.msra.mxu0 0.0
        %1094 = vmatprep.subr.mxu0 0.0
        %1095 = vmatpush1.msra.mxu0 0.0
        %1096 = vmatprep.subr.mxu0 0.0
        %1097 = vmatpush1.msra.mxu0 0.0
        %1098 = vmatprep.subr.mxu0 0.0
        %1099 = vmatpush1.msra.mxu0 0.0
        %1100 = vmatprep.subr.mxu0 0.0
        %1101 = vmatpush1.msra.mxu0 0.0
        %1102 = vmatprep.subr.mxu0 0.0
        %1103 = vmatpush1.msra.mxu0 0.0
        %1104 = vmatprep.subr.mxu0 0.0
        %1105 = vmatpush1.msra.mxu0 0.0
        %1106 = vmatprep.subr.mxu0 0.0
        %1107 = vmatpush1.msra.mxu0 0.0
        %1108 = vmatprep.subr.mxu0 0.0
        %1109 = vmatpush1.msra.mxu0 0.0
        %1110 = vmatprep.subr.mxu0 0.0
        %1111 = vmatpush1.msra.mxu0 0.0
        %1112 = vmatprep.subr.mxu0 0.0
        %1113 = vmatpush1.msra.mxu0 0.0
        %1114 = vmatprep.subr.mxu0 0.0
        %1115 = vmatpush1.msra.mxu0 0.0
        %1116 = vmatprep.subr.mxu0 0.0
        %1117 = vmatpush1.msra.mxu0 0.0
        %1118 = vmatprep.subr.mxu0 0.0
        %1119 = vmatpush1.msra.mxu0 0.0
        %1120 = vmatprep.subr.mxu0 0.0
        %1121 = vmatpush1.msra.mxu0 0.0
        %1122 = vmatprep.subr.mxu0 0.0
        %1123 = vmatpush1.msra.mxu0 0.0
        %1124 = vmatprep.subr.mxu0 0.0
        %1125 = vmatpush1.msra.mxu0 0.0
        %1126 = vmatprep.subr.mxu0 0.0
        %1127 = vmatpush1.msra.mxu0 0.0
        %1128 = vmatprep.subr.mxu0 0.0
        %1129 = vmatpush1.msra.mxu0 0.0
        %1130 = vmatprep.subr.mxu0 0.0
        %1131 = vmatpush1.msra.mxu0 0.0
        %1132 = vmatprep.subr.mxu0 0.0
        %1133 = vmatpush1.msra.mxu0 0.0
        %1134 = vmatprep.mubr.f32.mxu0 0.0
        %1135 = vmatmul.mubr.f32.gmra.mrb[0].mxu0 %v1065
        %v1136 = vpop.f32.mrb[0].mxu0
        %v1137 = vadd.f32 %v1061, %v1136
        %v1138 = vpop.f32.mrb[0].mxu0
        %1139 = vmatprep.mubr.f32.mxu0 0.0
        %1140 = vmatmul.mubr.f32.gmra.mrb[0].mxu0 %v1068
        %v1141 = vpop.f32.mrb[0].mxu0
        %v1142 = vadd.f32 %v1061, %v1141
        %v1143 = vpop.f32.mrb[0].mxu0
        %1144 = vdwg.mxu0
        %v1145 = vmul.f32 %v1137, 0.35355338
        %v1146 = vmul.f32 %v1142, 0.35355338
        %v1147 = vld [vmem:[%s851] sm:$0xff]
        %v1148 = vld [vmem:[%s851 + $0x8] sm:$0xff]
        %v1149 = vld [vmem:[%s851 + $0x10] sm:$0xff]
        %v1150 = vld [vmem:[%s851 + $0x18] sm:$0xff]
        %v1151 = vld [vmem:[%s854] sm:$0x1]
        %v1153 = vlaneseq
        %v1154 = vshrl.u32 %v1153, 7
        %v1155 = vsub.s32 0, %v1154
        %v1156 = vrot.slane %v1151, %v1155
        %1158 = vmatprep.subr.mxu0 0.0
        %1159 = vmatpush1.msra.mxu0 %v1147
        %1160 = vmatprep.subr.mxu0 0.0
        %1161 = vmatpush1.msra.mxu0 %v1148
        %1162 = vmatprep.subr.mxu0 0.0
        %1163 = vmatpush1.msra.mxu0 %v1149
        %1164 = vmatprep.subr.mxu0 0.0
        %1165 = vmatpush1.msra.mxu0 %v1150
        %1166 = vmatprep.subr.mxu0 0.0
        %1167 = vmatpush1.msra.mxu0 0.0
        %1168 = vmatprep.subr.mxu0 0.0
        %1169 = vmatpush1.msra.mxu0 0.0
        %1170 = vmatprep.subr.mxu0 0.0
        %1171 = vmatpush1.msra.mxu0 0.0
        %1172 = vmatprep.subr.mxu0 0.0
        %1173 = vmatpush1.msra.mxu0 0.0
        %1174 = vmatprep.subr.mxu0 0.0
        %1175 = vmatpush1.msra.mxu0 0.0
        %1176 = vmatprep.subr.mxu0 0.0
        %1177 = vmatpush1.msra.mxu0 0.0
        %1178 = vmatprep.subr.mxu0 0.0
        %1179 = vmatpush1.msra.mxu0 0.0
        %1180 = vmatprep.subr.mxu0 0.0
        %1181 = vmatpush1.msra.mxu0 0.0
        %1182 = vmatprep.subr.mxu0 0.0
        %1183 = vmatpush1.msra.mxu0 0.0
        %1184 = vmatprep.subr.mxu0 0.0
        %1185 = vmatpush1.msra.mxu0 0.0
        %1186 = vmatprep.subr.mxu0 0.0
        %1187 = vmatpush1.msra.mxu0 0.0
        %1188 = vmatprep.subr.mxu0 0.0
        %1189 = vmatpush1.msra.mxu0 0.0
        %1190 = vmatprep.subr.mxu0 0.0
        %1191 = vmatpush1.msra.mxu0 0.0
        %1192 = vmatprep.subr.mxu0 0.0
        %1193 = vmatpush1.msra.mxu0 0.0
        %1194 = vmatprep.subr.mxu0 0.0
        %1195 = vmatpush1.msra.mxu0 0.0
        %1196 = vmatprep.subr.mxu0 0.0
        %1197 = vmatpush1.msra.mxu0 0.0
        %1198 = vmatprep.subr.mxu0 0.0
        %1199 = vmatpush1.msra.mxu0 0.0
        %1200 = vmatprep.subr.mxu0 0.0
        %1201 = vmatpush1.msra.mxu0 0.0
        %1202 = vmatprep.subr.mxu0 0.0
        %1203 = vmatpush1.msra.mxu0 0.0
        %1204 = vmatprep.subr.mxu0 0.0
        %1205 = vmatpush1.msra.mxu0 0.0
        %1206 = vmatprep.subr.mxu0 0.0
        %1207 = vmatpush1.msra.mxu0 0.0
        %1208 = vmatprep.subr.mxu0 0.0
        %1209 = vmatpush1.msra.mxu0 0.0
        %1210 = vmatprep.subr.mxu0 0.0
        %1211 = vmatpush1.msra.mxu0 0.0
        %1212 = vmatprep.subr.mxu0 0.0
        %1213 = vmatpush1.msra.mxu0 0.0
        %1214 = vmatprep.subr.mxu0 0.0
        %1215 = vmatpush1.msra.mxu0 0.0
        %1216 = vmatprep.subr.mxu0 0.0
        %1217 = vmatpush1.msra.mxu0 0.0
        %1218 = vmatprep.subr.mxu0 0.0
        %1219 = vmatpush1.msra.mxu0 0.0
        %1220 = vmatprep.subr.mxu0 0.0
        %1221 = vmatpush1.msra.mxu0 0.0
        %1222 = vmatprep.mubr.f32.mxu0 0.0
        %1223 = vmatmul.mubr.f32.gmra.mrb[0].mxu0 %v1065
        %v1224 = vpop.f32.mrb[0].mxu0
        %v1225 = vadd.f32 %v1156, %v1224
        %v1226 = vpop.f32.mrb[0].mxu0
        %1227 = vmatprep.mubr.f32.mxu0 0.0
        %1228 = vmatmul.mubr.f32.gmra.mrb[0].mxu0 %v1068
        %v1229 = vpop.f32.mrb[0].mxu0
        %v1230 = vadd.f32 %v1156, %v1229
        %v1231 = vpop.f32.mrb[0].mxu0
        %1232 = vdwg.mxu0
        %v1233 = vld [vmem:[%s859] sm:$0xff]
        %v1234 = vld [vmem:[%s859 + $0x8] sm:$0xff]
        %v1235 = vld [vmem:[%s859 + $0x10] sm:$0xff]
        %v1236 = vld [vmem:[%s859 + $0x18] sm:$0xff]
        %v1237 = vld [vmem:[%s862] sm:$0x1]
        %v1239 = vlaneseq
        %v1240 = vshrl.u32 %v1239, 7
        %v1241 = vsub.s32 0, %v1240
        %v1242 = vrot.slane %v1237, %v1241
        %1244 = vmatprep.subr.mxu0 0.0
        %1245 = vmatpush1.msra.mxu0 %v1233
        %1246 = vmatprep.subr.mxu0 0.0
        %1247 = vmatpush1.msra.mxu0 %v1234
        %1248 = vmatprep.subr.mxu0 0.0
        %1249 = vmatpush1.msra.mxu0 %v1235
        %1250 = vmatprep.subr.mxu0 0.0
        %1251 = vmatpush1.msra.mxu0 %v1236
        %1252 = vmatprep.subr.mxu0 0.0
        %1253 = vmatpush1.msra.mxu0 0.0
        %1254 = vmatprep.subr.mxu0 0.0
        %1255 = vmatpush1.msra.mxu0 0.0
        %1256 = vmatprep.subr.mxu0 0.0
        %1257 = vmatpush1.msra.mxu0 0.0
        %1258 = vmatprep.subr.mxu0 0.0
        %1259 = vmatpush1.msra.mxu0 0.0
        %1260 = vmatprep.subr.mxu0 0.0
        %1261 = vmatpush1.msra.mxu0 0.0
        %1262 = vmatprep.subr.mxu0 0.0
        %1263 = vmatpush1.msra.mxu0 0.0
        %1264 = vmatprep.subr.mxu0 0.0
        %1265 = vmatpush1.msra.mxu0 0.0
        %1266 = vmatprep.subr.mxu0 0.0
        %1267 = vmatpush1.msra.mxu0 0.0
        %1268 = vmatprep.subr.mxu0 0.0
        %1269 = vmatpush1.msra.mxu0 0.0
        %1270 = vmatprep.subr.mxu0 0.0
        %1271 = vmatpush1.msra.mxu0 0.0
        %1272 = vmatprep.subr.mxu0 0.0
        %1273 = vmatpush1.msra.mxu0 0.0
        %1274 = vmatprep.subr.mxu0 0.0
        %1275 = vmatpush1.msra.mxu0 0.0
        %1276 = vmatprep.subr.mxu0 0.0
        %1277 = vmatpush1.msra.mxu0 0.0
        %1278 = vmatprep.subr.mxu0 0.0
        %1279 = vmatpush1.msra.mxu0 0.0
        %1280 = vmatprep.subr.mxu0 0.0
        %1281 = vmatpush1.msra.mxu0 0.0
        %1282 = vmatprep.subr.mxu0 0.0
        %1283 = vmatpush1.msra.mxu0 0.0
        %1284 = vmatprep.subr.mxu0 0.0
        %1285 = vmatpush1.msra.mxu0 0.0
        %1286 = vmatprep.subr.mxu0 0.0
        %1287 = vmatpush1.msra.mxu0 0.0
        %1288 = vmatprep.subr.mxu0 0.0
        %1289 = vmatpush1.msra.mxu0 0.0
        %1290 = vmatprep.subr.mxu0 0.0
        %1291 = vmatpush1.msra.mxu0 0.0
        %1292 = vmatprep.subr.mxu0 0.0
        %1293 = vmatpush1.msra.mxu0 0.0
        %1294 = vmatprep.subr.mxu0 0.0
        %1295 = vmatpush1.msra.mxu0 0.0
        %1296 = vmatprep.subr.mxu0 0.0
        %1297 = vmatpush1.msra.mxu0 0.0
        %1298 = vmatprep.subr.mxu0 0.0
        %1299 = vmatpush1.msra.mxu0 0.0
        %1300 = vmatprep.subr.mxu0 0.0
        %1301 = vmatpush1.msra.mxu0 0.0
        %1302 = vmatprep.subr.mxu0 0.0
        %1303 = vmatpush1.msra.mxu0 0.0
        %1304 = vmatprep.subr.mxu0 0.0
        %1305 = vmatpush1.msra.mxu0 0.0
        %1306 = vmatprep.subr.mxu0 0.0
        %1307 = vmatpush1.msra.mxu0 0.0
        %1308 = vmatprep.mubr.f32.mxu0 0.0
        %1309 = vmatmul.mubr.f32.gmra.mrb[0].mxu0 %v1065
        %v1310 = vpop.f32.mrb[0].mxu0
        %v1311 = vadd.f32 %v1242, %v1310
        %v1312 = vpop.f32.mrb[0].mxu0
        %1313 = vmatprep.mubr.f32.mxu0 0.0
        %1314 = vmatmul.mubr.f32.gmra.mrb[0].mxu0 %v1068
        %v1315 = vpop.f32.mrb[0].mxu0
        %v1316 = vadd.f32 %v1242, %v1315
        %v1317 = vpop.f32.mrb[0].mxu0
        %1318 = vdwg.mxu0
        %vm1319 = vcmask 89088
        %v1321 = vsel %vm1319, %v990, 0
        %v1324 = vsel %vm1319, %v991, 0
        %v1327 = vsel %vm1319, %v992, 0
        %v1330 = vsel %vm1319, %v993, 0
        %v1333 = vsel %vm1319, %v994, 0
        %v1336 = vsel %vm1319, %v995, 0
        %vm1338 = vcmask 1042432
        %v1340 = vsel %vm1338, %v1230, 0
        %1342 = vmatprep.subr.mxu0 0.0
        %1343 = vmatpush1.msra.mxu0 %v1225
        %1344 = vmatprep.subr.mxu0 0.0
        %1345 = vmatpush1.msra.mxu0 %v1340
        %1346 = vmatprep.subr.mxu0 0.0
        %1347 = vmatpush1.msra.mxu0 0.0
        %1348 = vmatprep.subr.mxu0 0.0
        %1349 = vmatpush1.msra.mxu0 0.0
        %1350 = vmatprep.subr.mxu0 0.0
        %1351 = vmatpush1.msra.mxu0 0.0
        %1352 = vmatprep.subr.mxu0 0.0
        %1353 = vmatpush1.msra.mxu0 0.0
        %1354 = vmatprep.subr.mxu0 0.0
        %1355 = vmatpush1.msra.mxu0 0.0
        %1356 = vmatprep.subr.mxu0 0.0
        %1357 = vmatpush1.msra.mxu0 0.0
        %1358 = vmatprep.subr.mxu0 0.0
        %1359 = vmatpush1.msra.mxu0 0.0
        %1360 = vmatprep.subr.mxu0 0.0
        %1361 = vmatpush1.msra.mxu0 0.0
        %1362 = vmatprep.subr.mxu0 0.0
        %1363 = vmatpush1.msra.mxu0 0.0
        %1364 = vmatprep.subr.mxu0 0.0
        %1365 = vmatpush1.msra.mxu0 0.0
        %1366 = vmatprep.subr.mxu0 0.0
        %1367 = vmatpush1.msra.mxu0 0.0
        %1368 = vmatprep.subr.mxu0 0.0
        %1369 = vmatpush1.msra.mxu0 0.0
        %1370 = vmatprep.subr.mxu0 0.0
        %1371 = vmatpush1.msra.mxu0 0.0
        %1372 = vmatprep.subr.mxu0 0.0
        %1373 = vmatpush1.msra.mxu0 0.0
        %1374 = vmatprep.subr.mxu0 0.0
        %1375 = vmatpush1.msra.mxu0 0.0
        %1376 = vmatprep.subr.mxu0 0.0
        %1377 = vmatpush1.msra.mxu0 0.0
        %1378 = vmatprep.subr.mxu0 0.0
        %1379 = vmatpush1.msra.mxu0 0.0
        %1380 = vmatprep.subr.mxu0 0.0
        %1381 = vmatpush1.msra.mxu0 0.0
        %1382 = vmatprep.subr.mxu0 0.0
        %1383 = vmatpush1.msra.mxu0 0.0
        %1384 = vmatprep.subr.mxu0 0.0
        %1385 = vmatpush1.msra.mxu0 0.0
        %1386 = vmatprep.subr.mxu0 0.0
        %1387 = vmatpush1.msra.mxu0 0.0
        %1388 = vmatprep.subr.mxu0 0.0
        %1389 = vmatpush1.msra.mxu0 0.0
        %1390 = vmatprep.subr.mxu0 0.0
        %1391 = vmatpush1.msra.mxu0 0.0
        %1392 = vmatprep.subr.mxu0 0.0
        %1393 = vmatpush1.msra.mxu0 0.0
        %1394 = vmatprep.subr.mxu0 0.0
        %1395 = vmatpush1.msra.mxu0 0.0
        %1396 = vmatprep.subr.mxu0 0.0
        %1397 = vmatpush1.msra.mxu0 0.0
        %1398 = vmatprep.subr.mxu0 0.0
        %1399 = vmatpush1.msra.mxu0 0.0
        %1400 = vmatprep.subr.mxu0 0.0
        %1401 = vmatpush1.msra.mxu0 0.0
        %1402 = vmatprep.subr.mxu0 0.0
        %1403 = vmatpush1.msra.mxu0 0.0
        %1404 = vmatprep.subr.mxu0 0.0
        %1405 = vmatpush1.msra.mxu0 0.0
        %1406 = vmatprep.mubr.f32.mxu0 0.0
        %1407 = vmatmul.mubr.f32.gmra.mrb[0].mxu0 %v1321
        %v1408 = vpop.f32.mrb[0].mxu0
        %v1409 = vadd.f32 0.0, %v1408
        %v1410 = vpop.f32.mrb[0].mxu0
        %1411 = vmatprep.mubr.f32.mxu0 0.0
        %1412 = vmatmul.mubr.f32.gmra.mrb[0].mxu0 %v1324
        %v1413 = vpop.f32.mrb[0].mxu0
        %v1414 = vadd.f32 0.0, %v1413
        %v1415 = vpop.f32.mrb[0].mxu0
        %1416 = vmatprep.mubr.f32.mxu0 0.0
        %1417 = vmatmul.mubr.f32.gmra.mrb[0].mxu0 %v1327
        %v1418 = vpop.f32.mrb[0].mxu0
        %v1419 = vadd.f32 0.0, %v1418
        %v1420 = vpop.f32.mrb[0].mxu0
        %1421 = vmatprep.mubr.f32.mxu0 0.0
        %1422 = vmatmul.mubr.f32.gmra.mrb[0].mxu0 %v1330
        %v1423 = vpop.f32.mrb[0].mxu0
        %v1424 = vadd.f32 0.0, %v1423
        %v1425 = vpop.f32.mrb[0].mxu0
        %1426 = vmatprep.mubr.f32.mxu0 0.0
        %1427 = vmatmul.mubr.f32.gmra.mrb[0].mxu0 %v1333
        %v1428 = vpop.f32.mrb[0].mxu0
        %v1429 = vadd.f32 0.0, %v1428
        %v1430 = vpop.f32.mrb[0].mxu0
        %1431 = vmatprep.mubr.f32.mxu0 0.0
        %1432 = vmatmul.mubr.f32.gmra.mrb[0].mxu0 %v1336
        %v1433 = vpop.f32.mrb[0].mxu0
        %v1434 = vadd.f32 0.0, %v1433
        %v1435 = vpop.f32.mrb[0].mxu0
        %1436 = vdwg.mxu0
        %v1438 = vsel %vm1338, %v1316, 0
        %1440 = vmatprep.subr.mxu0 0.0
        %1441 = vmatpush1.msra.mxu0 %v1311
        %1442 = vmatprep.subr.mxu0 0.0
        %1443 = vmatpush1.msra.mxu0 %v1438
        %1444 = vmatprep.subr.mxu0 0.0
        %1445 = vmatpush1.msra.mxu0 0.0
        %1446 = vmatprep.subr.mxu0 0.0
        %1447 = vmatpush1.msra.mxu0 0.0
        %1448 = vmatprep.subr.mxu0 0.0
        %1449 = vmatpush1.msra.mxu0 0.0
        %1450 = vmatprep.subr.mxu0 0.0
        %1451 = vmatpush1.msra.mxu0 0.0
        %1452 = vmatprep.subr.mxu0 0.0
        %1453 = vmatpush1.msra.mxu0 0.0
        %1454 = vmatprep.subr.mxu0 0.0
        %1455 = vmatpush1.msra.mxu0 0.0
        %1456 = vmatprep.subr.mxu0 0.0
        %1457 = vmatpush1.msra.mxu0 0.0
        %1458 = vmatprep.subr.mxu0 0.0
        %1459 = vmatpush1.msra.mxu0 0.0
        %1460 = vmatprep.subr.mxu0 0.0
        %1461 = vmatpush1.msra.mxu0 0.0
        %1462 = vmatprep.subr.mxu0 0.0
        %1463 = vmatpush1.msra.mxu0 0.0
        %1464 = vmatprep.subr.mxu0 0.0
        %1465 = vmatpush1.msra.mxu0 0.0
        %1466 = vmatprep.subr.mxu0 0.0
        %1467 = vmatpush1.msra.mxu0 0.0
        %1468 = vmatprep.subr.mxu0 0.0
        %1469 = vmatpush1.msra.mxu0 0.0
        %1470 = vmatprep.subr.mxu0 0.0
        %1471 = vmatpush1.msra.mxu0 0.0
        %1472 = vmatprep.subr.mxu0 0.0
        %1473 = vmatpush1.msra.mxu0 0.0
        %1474 = vmatprep.subr.mxu0 0.0
        %1475 = vmatpush1.msra.mxu0 0.0
        %1476 = vmatprep.subr.mxu0 0.0
        %1477 = vmatpush1.msra.mxu0 0.0
        %1478 = vmatprep.subr.mxu0 0.0
        %1479 = vmatpush1.msra.mxu0 0.0
        %1480 = vmatprep.subr.mxu0 0.0
        %1481 = vmatpush1.msra.mxu0 0.0
        %1482 = vmatprep.subr.mxu0 0.0
        %1483 = vmatpush1.msra.mxu0 0.0
        %1484 = vmatprep.subr.mxu0 0.0
        %1485 = vmatpush1.msra.mxu0 0.0
        %1486 = vmatprep.subr.mxu0 0.0
        %1487 = vmatpush1.msra.mxu0 0.0
        %1488 = vmatprep.subr.mxu0 0.0
        %1489 = vmatpush1.msra.mxu0 0.0
        %1490 = vmatprep.subr.mxu0 0.0
        %1491 = vmatpush1.msra.mxu0 0.0
        %1492 = vmatprep.subr.mxu0 0.0
        %1493 = vmatpush1.msra.mxu0 0.0
        %1494 = vmatprep.subr.mxu0 0.0
        %1495 = vmatpush1.msra.mxu0 0.0
        %1496 = vmatprep.subr.mxu0 0.0
        %1497 = vmatpush1.msra.mxu0 0.0
        %1498 = vmatprep.subr.mxu0 0.0
        %1499 = vmatpush1.msra.mxu0 0.0
        %1500 = vmatprep.subr.mxu0 0.0
        %1501 = vmatpush1.msra.mxu0 0.0
        %1502 = vmatprep.subr.mxu0 0.0
        %1503 = vmatpush1.msra.mxu0 0.0
        %1504 = vmatprep.mubr.f32.mxu0 0.0
        %1505 = vmatmul.mubr.f32.gmra.mrb[0].mxu0 %v1321
        %v1506 = vpop.f32.mrb[0].mxu0
        %v1507 = vadd.f32 0.0, %v1506
        %v1508 = vpop.f32.mrb[0].mxu0
        %1509 = vmatprep.mubr.f32.mxu0 0.0
        %1510 = vmatmul.mubr.f32.gmra.mrb[0].mxu0 %v1324
        %v1511 = vpop.f32.mrb[0].mxu0
        %v1512 = vadd.f32 0.0, %v1511
        %v1513 = vpop.f32.mrb[0].mxu0
        %1514 = vmatprep.mubr.f32.mxu0 0.0
        %1515 = vmatmul.mubr.f32.gmra.mrb[0].mxu0 %v1327
        %v1516 = vpop.f32.mrb[0].mxu0
        %v1517 = vadd.f32 0.0, %v1516
        %v1518 = vpop.f32.mrb[0].mxu0
        %1519 = vmatprep.mubr.f32.mxu0 0.0
        %1520 = vmatmul.mubr.f32.gmra.mrb[0].mxu0 %v1330
        %v1521 = vpop.f32.mrb[0].mxu0
        %v1522 = vadd.f32 0.0, %v1521
        %v1523 = vpop.f32.mrb[0].mxu0
        %1524 = vmatprep.mubr.f32.mxu0 0.0
        %1525 = vmatmul.mubr.f32.gmra.mrb[0].mxu0 %v1333
        %v1526 = vpop.f32.mrb[0].mxu0
        %v1527 = vadd.f32 0.0, %v1526
        %v1528 = vpop.f32.mrb[0].mxu0
        %1529 = vmatprep.mubr.f32.mxu0 0.0
        %1530 = vmatmul.mubr.f32.gmra.mrb[0].mxu0 %v1336
        %v1531 = vpop.f32.mrb[0].mxu0
        %v1532 = vadd.f32 0.0, %v1531
        %v1533 = vpop.f32.mrb[0].mxu0
        %1534 = vdwg.mxu0
        %v1535 = vmul.f32 %v1409, %v1002
        %v1536 = vmul.f32 %v1414, %v1003
        %v1537 = vmul.f32 %v1419, %v1004
        %v1538 = vmul.f32 %v1424, %v1005
        %v1539 = vmul.f32 %v1429, %v1006
        %v1540 = vmul.f32 %v1434, %v1007
        %v1541 = vmul.f32 %v1507, %v1002
        %v1542 = vmul.f32 %v1512, %v1003
        %v1543 = vmul.f32 %v1517, %v1004
        %v1544 = vmul.f32 %v1522, %v1005
        %v1545 = vmul.f32 %v1527, %v1006
        %v1546 = vmul.f32 %v1532, %v1007
        %v1548 = vsel %vm1063, %v1145, 0
        %v1551 = vsel %vm1063, %v1146, 0
        %v1554 = vsel %vm1063, %v1535, 0
        %v1557 = vsel %vm1063, %v1536, 0
        %v1560 = vsel %vm1063, %v1537, 0
        %v1563 = vsel %vm1063, %v1538, 0
        %v1566 = vsel %vm1063, %v1539, 0
        %v1569 = vsel %vm1063, %v1540, 0
        %1571 = vmatprep.subr.mxu0 0.0
        %1572 = vmatpush1.xpose.msra.mxu0 %v1554
        %1573 = vmatprep.subr.mxu0 0.0
        %1574 = vmatpush1.xpose.msra.mxu0 %v1557
        %1575 = vmatprep.subr.mxu0 0.0
        %1576 = vmatpush1.xpose.msra.mxu0 %v1560
        %1577 = vmatprep.subr.mxu0 0.0
        %1578 = vmatpush1.xpose.msra.mxu0 %v1563
        %1579 = vmatprep.subr.mxu0 0.0
        %1580 = vmatpush1.xpose.msra.mxu0 %v1566
        %1581 = vmatprep.subr.mxu0 0.0
        %1582 = vmatpush1.xpose.msra.mxu0 %v1569
        %1583 = vmatprep.subr.mxu0 0.0
        %1584 = vmatpush1.xpose.msra.mxu0 0.0
        %1585 = vmatprep.subr.mxu0 0.0
        %1586 = vmatpush1.xpose.msra.mxu0 0.0
        %1587 = vmatprep.subr.mxu0 0.0
        %1588 = vmatpush1.xpose.msra.mxu0 0.0
        %1589 = vmatprep.subr.mxu0 0.0
        %1590 = vmatpush1.xpose.msra.mxu0 0.0
        %1591 = vmatprep.subr.mxu0 0.0
        %1592 = vmatpush1.xpose.msra.mxu0 0.0
        %1593 = vmatprep.subr.mxu0 0.0
        %1594 = vmatpush1.xpose.msra.mxu0 0.0
        %1595 = vmatprep.subr.mxu0 0.0
        %1596 = vmatpush1.xpose.msra.mxu0 0.0
        %1597 = vmatprep.subr.mxu0 0.0
        %1598 = vmatpush1.xpose.msra.mxu0 0.0
        %1599 = vmatprep.subr.mxu0 0.0
        %1600 = vmatpush1.xpose.msra.mxu0 0.0
        %1601 = vmatprep.subr.mxu0 0.0
        %1602 = vmatpush1.xpose.msra.mxu0 0.0
        %1603 = vmatprep.subr.mxu0 0.0
        %1604 = vmatpush1.xpose.msra.mxu0 0.0
        %1605 = vmatprep.subr.mxu0 0.0
        %1606 = vmatpush1.xpose.msra.mxu0 0.0
        %1607 = vmatprep.subr.mxu0 0.0
        %1608 = vmatpush1.xpose.msra.mxu0 0.0
        %1609 = vmatprep.subr.mxu0 0.0
        %1610 = vmatpush1.xpose.msra.mxu0 0.0
        %1611 = vmatprep.subr.mxu0 0.0
        %1612 = vmatpush1.xpose.msra.mxu0 0.0
        %1613 = vmatprep.subr.mxu0 0.0
        %1614 = vmatpush1.xpose.msra.mxu0 0.0
        %1615 = vmatprep.subr.mxu0 0.0
        %1616 = vmatpush1.xpose.msra.mxu0 0.0
        %1617 = vmatprep.subr.mxu0 0.0
        %1618 = vmatpush1.xpose.msra.mxu0 0.0
        %1619 = vmatprep.subr.mxu0 0.0
        %1620 = vmatpush1.xpose.msra.mxu0 0.0
        %1621 = vmatprep.subr.mxu0 0.0
        %1622 = vmatpush1.xpose.msra.mxu0 0.0
        %1623 = vmatprep.subr.mxu0 0.0
        %1624 = vmatpush1.xpose.msra.mxu0 0.0
        %1625 = vmatprep.subr.mxu0 0.0
        %1626 = vmatpush1.xpose.msra.mxu0 0.0
        %1627 = vmatprep.subr.mxu0 0.0
        %1628 = vmatpush1.xpose.msra.mxu0 0.0
        %1629 = vmatprep.subr.mxu0 0.0
        %1630 = vmatpush1.xpose.msra.mxu0 0.0
        %1631 = vmatprep.subr.mxu0 0.0
        %1632 = vmatpush1.xpose.msra.mxu0 0.0
        %1633 = vmatprep.subr.mxu0 0.0
        %1634 = vmatpush1.xpose.msra.mxu0 0.0
        %1635 = vmatprep.mubr.f32.mxu0 0.0
        %1636 = vmatmul.mubr.f32.gmra.mrb[0].mxu0 %v1548
        %v1637 = vpop.f32.mrb[0].mxu0
        %v1638 = vadd.f32 0.0, %v1637
        %v1639 = vpop.f32.mrb[0].mxu0
        %1640 = vmatprep.mubr.f32.mxu0 0.0
        %1641 = vmatmul.mubr.f32.gmra.mrb[0].mxu0 %v1551
        %v1642 = vpop.f32.mrb[0].mxu0
        %v1643 = vadd.f32 0.0, %v1642
        %v1644 = vpop.f32.mrb[0].mxu0
        %1645 = vdwg.mxu0
        %v1646 = vadd.f32 %v1638, %v1029
        %v1647 = vadd.f32 %v1643, %v1029
        %vm1648 = vcmask 359424
        %v1649 = vsel %vm1648, %v1646, -inf
        %1650 = vmax.xlane.f32.xlu0 %v1649
        %v1651 = vpop.xlane.xlu0 %1650
        %vm1652 = vcmask 354304
        %v1653 = vsel %vm1652, %v1647, -inf
        %1654 = vmax.xlane.f32.xlu0 %v1653
        %v1655 = vpop.xlane.xlu0 %1654
        %v1656 = vmul.f32 %v1651, %v1021
        %v1657 = vmul.f32 %v1655, %v1021
        %v1658 = vadd.f32 %v1656, 0.0
        %v1659 = vadd.f32 %v1657, 0.0
        %v1660 = vadd.f32 %v1638, %v1031
        %v1661 = vadd.f32 %v1643, %v1031
        %v1662 = vsel %vm1648, %v1660, -inf
        %1663 = vmax.xlane.f32.xlu0 %v1662
        %v1664 = vpop.xlane.xlu0 %1663
        %v1665 = vsel %vm1652, %v1661, -inf
        %1666 = vmax.xlane.f32.xlu0 %v1665
        %v1667 = vpop.xlane.xlu0 %1666
        %v1668 = vmul.f32 %v1664, %v1023
        %v1669 = vmul.f32 %v1667, %v1023
        %v1670 = vadd.f32 %v1658, %v1668
        %v1671 = vadd.f32 %v1659, %v1669
        %v1672 = vadd.f32 %v1638, %v1033
        %v1673 = vadd.f32 %v1643, %v1033
        %v1674 = vsel %vm1648, %v1672, -inf
        %1675 = vmax.xlane.f32.xlu0 %v1674
        %v1676 = vpop.xlane.xlu0 %1675
        %v1677 = vsel %vm1652, %v1673, -inf
        %1678 = vmax.xlane.f32.xlu0 %v1677
        %v1679 = vpop.xlane.xlu0 %1678
        %v1680 = vmul.f32 %v1676, %v1025
        %v1681 = vmul.f32 %v1679, %v1025
        %v1682 = vadd.f32 %v1670, %v1680
        %v1683 = vadd.f32 %v1671, %v1681
        %v1684 = vadd.f32 %v1638, %v1035
        %v1685 = vadd.f32 %v1643, %v1035
        %v1686 = vsel %vm1648, %v1684, -inf
        %1687 = vmax.xlane.f32.xlu0 %v1686
        %v1688 = vpop.xlane.xlu0 %1687
        %v1689 = vsel %vm1652, %v1685, -inf
        %1690 = vmax.xlane.f32.xlu0 %v1689
        %v1691 = vpop.xlane.xlu0 %1690
        %v1692 = vmul.f32 %v1688, %v1027
        %v1693 = vmul.f32 %v1691, %v1027
        %v1694 = vadd.f32 %v1682, %v1692
        %v1695 = vadd.f32 %v1683, %v1693
        %v1696 = vsub.f32 %v1638, %v1694
        %v1697 = vsub.f32 %v1643, %v1695
        %v1698 = vmul.f32 %v1696, 1.442695
        %v1699 = vpow.pop %v1698
        %v1700 = vmul.f32 %v1697, 1.442695
        %v1701 = vpow.pop %v1700
        %v1703 = vsel %vm1648, %v1699, 0
        %v1706 = vsel %vm1648, %v1701, 0
        %vm1708 = vcmask 1043456
        %v1710 = vsel %vm1708, %v1019, 0
        %1712 = vmatprep.subr.mxu0 0.0
        %1713 = vmatpush1.msra.mxu0 %v1014
        %1714 = vmatprep.subr.mxu0 0.0
        %1715 = vmatpush1.msra.mxu0 %v1015
        %1716 = vmatprep.subr.mxu0 0.0
        %1717 = vmatpush1.msra.mxu0 %v1016
        %1718 = vmatprep.subr.mxu0 0.0
        %1719 = vmatpush1.msra.mxu0 %v1017
        %1720 = vmatprep.subr.mxu0 0.0
        %1721 = vmatpush1.msra.mxu0 %v1018
        %1722 = vmatprep.subr.mxu0 0.0
        %1723 = vmatpush1.msra.mxu0 %v1710
        %1724 = vmatprep.subr.mxu0 0.0
        %1725 = vmatpush1.msra.mxu0 0.0
        %1726 = vmatprep.subr.mxu0 0.0
        %1727 = vmatpush1.msra.mxu0 0.0
        %1728 = vmatprep.subr.mxu0 0.0
        %1729 = vmatpush1.msra.mxu0 0.0
        %1730 = vmatprep.subr.mxu0 0.0
        %1731 = vmatpush1.msra.mxu0 0.0
        %1732 = vmatprep.subr.mxu0 0.0
        %1733 = vmatpush1.msra.mxu0 0.0
        %1734 = vmatprep.subr.mxu0 0.0
        %1735 = vmatpush1.msra.mxu0 0.0
        %1736 = vmatprep.subr.mxu0 0.0
        %1737 = vmatpush1.msra.mxu0 0.0
        %1738 = vmatprep.subr.mxu0 0.0
        %1739 = vmatpush1.msra.mxu0 0.0
        %1740 = vmatprep.subr.mxu0 0.0
        %1741 = vmatpush1.msra.mxu0 0.0
        %1742 = vmatprep.subr.mxu0 0.0
        %1743 = vmatpush1.msra.mxu0 0.0
        %1744 = vmatprep.subr.mxu0 0.0
        %1745 = vmatpush1.msra.mxu0 0.0
        %1746 = vmatprep.subr.mxu0 0.0
        %1747 = vmatpush1.msra.mxu0 0.0
        %1748 = vmatprep.subr.mxu0 0.0
        %1749 = vmatpush1.msra.mxu0 0.0
        %1750 = vmatprep.subr.mxu0 0.0
        %1751 = vmatpush1.msra.mxu0 0.0
        %1752 = vmatprep.subr.mxu0 0.0
        %1753 = vmatpush1.msra.mxu0 0.0
        %1754 = vmatprep.subr.mxu0 0.0
        %1755 = vmatpush1.msra.mxu0 0.0
        %1756 = vmatprep.subr.mxu0 0.0
        %1757 = vmatpush1.msra.mxu0 0.0
        %1758 = vmatprep.subr.mxu0 0.0
        %1759 = vmatpush1.msra.mxu0 0.0
        %1760 = vmatprep.subr.mxu0 0.0
        %1761 = vmatpush1.msra.mxu0 0.0
        %1762 = vmatprep.subr.mxu0 0.0
        %1763 = vmatpush1.msra.mxu0 0.0
        %1764 = vmatprep.subr.mxu0 0.0
        %1765 = vmatpush1.msra.mxu0 0.0
        %1766 = vmatprep.subr.mxu0 0.0
        %1767 = vmatpush1.msra.mxu0 0.0
        %1768 = vmatprep.subr.mxu0 0.0
        %1769 = vmatpush1.msra.mxu0 0.0
        %1770 = vmatprep.subr.mxu0 0.0
        %1771 = vmatpush1.msra.mxu0 0.0
        %1772 = vmatprep.subr.mxu0 0.0
        %1773 = vmatpush1.msra.mxu0 0.0
        %1774 = vmatprep.subr.mxu0 0.0
        %1775 = vmatpush1.msra.mxu0 0.0
        %1776 = vmatprep.mubr.f32.mxu0 0.0
        %1777 = vmatmul.mubr.f32.gmra.mrb[0].mxu0 %v1703
        %v1778 = vpop.f32.mrb[0].mxu0
        %v1779 = vadd.f32 0.0, %v1778
        %v1780 = vpop.f32.mrb[0].mxu0
        %1781 = vmatprep.mubr.f32.mxu0 0.0
        %1782 = vmatmul.mubr.f32.gmra.mrb[0].mxu0 %v1706
        %v1783 = vpop.f32.mrb[0].mxu0
        %v1784 = vadd.f32 0.0, %v1783
        %v1785 = vpop.f32.mrb[0].mxu0
        %1786 = vdwg.mxu0
        %v1787 = vrcp.pop %v1779
        %v1788 = vmul.f32 %v1699, %v1787
        %v1789 = vrcp.pop %v1784
        %v1790 = vmul.f32 %v1701, %v1789
        %v1792 = vsel %vm1648, %v1788, 0
        %v1795 = vsel %vm1648, %v1790, 0
        %v1798 = vsel %vm1708, %v1546, 0
        %1800 = vmatprep.subr.mxu0 0.0
        %1801 = vmatpush1.msra.mxu0 %v1541
        %1802 = vmatprep.subr.mxu0 0.0
        %1803 = vmatpush1.msra.mxu0 %v1542
        %1804 = vmatprep.subr.mxu0 0.0
        %1805 = vmatpush1.msra.mxu0 %v1543
        %1806 = vmatprep.subr.mxu0 0.0
        %1807 = vmatpush1.msra.mxu0 %v1544
        %1808 = vmatprep.subr.mxu0 0.0
        %1809 = vmatpush1.msra.mxu0 %v1545
        %1810 = vmatprep.subr.mxu0 0.0
        %1811 = vmatpush1.msra.mxu0 %v1798
        %1812 = vmatprep.subr.mxu0 0.0
        %1813 = vmatpush1.msra.mxu0 0.0
        %1814 = vmatprep.subr.mxu0 0.0
        %1815 = vmatpush1.msra.mxu0 0.0
        %1816 = vmatprep.subr.mxu0 0.0
        %1817 = vmatpush1.msra.mxu0 0.0
        %1818 = vmatprep.subr.mxu0 0.0
        %1819 = vmatpush1.msra.mxu0 0.0
        %1820 = vmatprep.subr.mxu0 0.0
        %1821 = vmatpush1.msra.mxu0 0.0
        %1822 = vmatprep.subr.mxu0 0.0
        %1823 = vmatpush1.msra.mxu0 0.0
        %1824 = vmatprep.subr.mxu0 0.0
        %1825 = vmatpush1.msra.mxu0 0.0
        %1826 = vmatprep.subr.mxu0 0.0
        %1827 = vmatpush1.msra.mxu0 0.0
        %1828 = vmatprep.subr.mxu0 0.0
        %1829 = vmatpush1.msra.mxu0 0.0
        %1830 = vmatprep.subr.mxu0 0.0
        %1831 = vmatpush1.msra.mxu0 0.0
        %1832 = vmatprep.subr.mxu0 0.0
        %1833 = vmatpush1.msra.mxu0 0.0
        %1834 = vmatprep.subr.mxu0 0.0
        %1835 = vmatpush1.msra.mxu0 0.0
        %1836 = vmatprep.subr.mxu0 0.0
        %1837 = vmatpush1.msra.mxu0 0.0
        %1838 = vmatprep.subr.mxu0 0.0
        %1839 = vmatpush1.msra.mxu0 0.0
        %1840 = vmatprep.subr.mxu0 0.0
        %1841 = vmatpush1.msra.mxu0 0.0
        %1842 = vmatprep.subr.mxu0 0.0
        %1843 = vmatpush1.msra.mxu0 0.0
        %1844 = vmatprep.subr.mxu0 0.0
        %1845 = vmatpush1.msra.mxu0 0.0
        %1846 = vmatprep.subr.mxu0 0.0
        %1847 = vmatpush1.msra.mxu0 0.0
        %1848 = vmatprep.subr.mxu0 0.0
        %1849 = vmatpush1.msra.mxu0 0.0
        %1850 = vmatprep.subr.mxu0 0.0
        %1851 = vmatpush1.msra.mxu0 0.0
        %1852 = vmatprep.subr.mxu0 0.0
        %1853 = vmatpush1.msra.mxu0 0.0
        %1854 = vmatprep.subr.mxu0 0.0
        %1855 = vmatpush1.msra.mxu0 0.0
        %1856 = vmatprep.subr.mxu0 0.0
        %1857 = vmatpush1.msra.mxu0 0.0
        %1858 = vmatprep.subr.mxu0 0.0
        %1859 = vmatpush1.msra.mxu0 0.0
        %1860 = vmatprep.subr.mxu0 0.0
        %1861 = vmatpush1.msra.mxu0 0.0
        %1862 = vmatprep.subr.mxu0 0.0
        %1863 = vmatpush1.msra.mxu0 0.0
        %1864 = vmatprep.mubr.f32.mxu0 0.0
        %1865 = vmatmul.mubr.f32.gmra.mrb[0].mxu0 %v1792
        %v1866 = vpop.f32.mrb[0].mxu0
        %v1867 = vadd.f32 0.0, %v1866
        %v1868 = vpop.f32.mrb[0].mxu0
        %1869 = vmatprep.mubr.f32.mxu0 0.0
        %1870 = vmatmul.mubr.f32.gmra.mrb[0].mxu0 %v1795
        %v1871 = vpop.f32.mrb[0].mxu0
        %v1872 = vadd.f32 0.0, %v1871
        %v1873 = vpop.f32.mrb[0].mxu0
        %1874 = vdwg.mxu0
        %v1875 = vld [vmem:[%s867] sm:$0xff]
        %v1876 = vld [vmem:[%s867 + $0x8] sm:$0xff]
        %v1877 = vld [vmem:[%s867 + $0x10] sm:$0xff]
        %v1878 = vld [vmem:[%s867 + $0x18] sm:$0xff]
        %v1879 = vld [vmem:[%s870] sm:$0x1]
        %v1881 = vlaneseq
        %v1882 = vshrl.u32 %v1881, 7
        %v1883 = vsub.s32 0, %v1882
        %v1884 = vrot.slane %v1879, %v1883
        %v1887 = vsel %vm1063, %v1867, 0
        %v1890 = vsel %vm1063, %v1872, 0
        %1892 = vmatprep.subr.mxu0 0.0
        %1893 = vmatpush1.msra.mxu0 %v1875
        %1894 = vmatprep.subr.mxu0 0.0
        %1895 = vmatpush1.msra.mxu0 %v1876
        %1896 = vmatprep.subr.mxu0 0.0
        %1897 = vmatpush1.msra.mxu0 %v1877
        %1898 = vmatprep.subr.mxu0 0.0
        %1899 = vmatpush1.msra.mxu0 %v1878
        %1900 = vmatprep.subr.mxu0 0.0
        %1901 = vmatpush1.msra.mxu0 0.0
        %1902 = vmatprep.subr.mxu0 0.0
        %1903 = vmatpush1.msra.mxu0 0.0
        %1904 = vmatprep.subr.mxu0 0.0
        %1905 = vmatpush1.msra.mxu0 0.0
        %1906 = vmatprep.subr.mxu0 0.0
        %1907 = vmatpush1.msra.mxu0 0.0
        %1908 = vmatprep.subr.mxu0 0.0
        %1909 = vmatpush1.msra.mxu0 0.0
        %1910 = vmatprep.subr.mxu0 0.0
        %1911 = vmatpush1.msra.mxu0 0.0
        %1912 = vmatprep.subr.mxu0 0.0
        %1913 = vmatpush1.msra.mxu0 0.0
        %1914 = vmatprep.subr.mxu0 0.0
        %1915 = vmatpush1.msra.mxu0 0.0
        %1916 = vmatprep.subr.mxu0 0.0
        %1917 = vmatpush1.msra.mxu0 0.0
        %1918 = vmatprep.subr.mxu0 0.0
        %1919 = vmatpush1.msra.mxu0 0.0
        %1920 = vmatprep.subr.mxu0 0.0
        %1921 = vmatpush1.msra.mxu0 0.0
        %1922 = vmatprep.subr.mxu0 0.0
        %1923 = vmatpush1.msra.mxu0 0.0
        %1924 = vmatprep.subr.mxu0 0.0
        %1925 = vmatpush1.msra.mxu0 0.0
        %1926 = vmatprep.subr.mxu0 0.0
        %1927 = vmatpush1.msra.mxu0 0.0
        %1928 = vmatprep.subr.mxu0 0.0
        %1929 = vmatpush1.msra.mxu0 0.0
        %1930 = vmatprep.subr.mxu0 0.0
        %1931 = vmatpush1.msra.mxu0 0.0
        %1932 = vmatprep.subr.mxu0 0.0
        %1933 = vmatpush1.msra.mxu0 0.0
        %1934 = vmatprep.subr.mxu0 0.0
        %1935 = vmatpush1.msra.mxu0 0.0
        %1936 = vmatprep.subr.mxu0 0.0
        %1937 = vmatpush1.msra.mxu0 0.0
        %1938 = vmatprep.subr.mxu0 0.0
        %1939 = vmatpush1.msra.mxu0 0.0
        %1940 = vmatprep.subr.mxu0 0.0
        %1941 = vmatpush1.msra.mxu0 0.0
        %1942 = vmatprep.subr.mxu0 0.0
        %1943 = vmatpush1.msra.mxu0 0.0
        %1944 = vmatprep.subr.mxu0 0.0
        %1945 = vmatpush1.msra.mxu0 0.0
        %1946 = vmatprep.subr.mxu0 0.0
        %1947 = vmatpush1.msra.mxu0 0.0
        %1948 = vmatprep.subr.mxu0 0.0
        %1949 = vmatpush1.msra.mxu0 0.0
        %1950 = vmatprep.subr.mxu0 0.0
        %1951 = vmatpush1.msra.mxu0 0.0
        %1952 = vmatprep.subr.mxu0 0.0
        %1953 = vmatpush1.msra.mxu0 0.0
        %1954 = vmatprep.subr.mxu0 0.0
        %1955 = vmatpush1.msra.mxu0 0.0
        %1956 = vmatprep.mubr.f32.mxu0 0.0
        %1957 = vmatmul.mubr.f32.gmra.mrb[0].mxu0 %v1887
        %v1958 = vpop.f32.mrb[0].mxu0
        %v1959 = vadd.f32 %v1884, %v1958
        %v1960 = vpop.f32.mrb[0].mxu0
        %1961 = vmatprep.mubr.f32.mxu0 0.0
        %1962 = vmatmul.mubr.f32.gmra.mrb[0].mxu0 %v1890
        %v1963 = vpop.f32.mrb[0].mxu0
        %v1964 = vadd.f32 %v1884, %v1963
        %v1965 = vpop.f32.mrb[0].mxu0
        %1966 = vdwg.mxu0
        %v1967 = vadd.f32 %v1050, %v1959
        %v1968 = vadd.f32 %v1051, %v1964
        %v1969 = vld [vmem:[%s873] sm:$0x1]
        %v1970 = vld [vmem:[%s876] sm:$0x1]
        %v1972 = vsel %vm1063, %v1967, 0
        %v1975 = vsel %vm1063, %v1968, 0
        %1977 = vmatprep.subr.mxu0 0.0
        %1978 = vmatpush1.msra.mxu0 0.03125
        %1979 = vmatprep.subr.mxu0 0.0
        %1980 = vmatpush1.msra.mxu0 0.03125
        %1981 = vmatprep.subr.mxu0 0.0
        %1982 = vmatpush1.msra.mxu0 0.03125
        %1983 = vmatprep.subr.mxu0 0.0
        %1984 = vmatpush1.msra.mxu0 0.03125
        %1985 = vmatprep.subr.mxu0 0.0
        %1986 = vmatpush1.msra.mxu0 0.0
        %1987 = vmatprep.subr.mxu0 0.0
        %1988 = vmatpush1.msra.mxu0 0.0
        %1989 = vmatprep.subr.mxu0 0.0
        %1990 = vmatpush1.msra.mxu0 0.0
        %1991 = vmatprep.subr.mxu0 0.0
        %1992 = vmatpush1.msra.mxu0 0.0
        %1993 = vmatprep.subr.mxu0 0.0
        %1994 = vmatpush1.msra.mxu0 0.0
        %1995 = vmatprep.subr.mxu0 0.0
        %1996 = vmatpush1.msra.mxu0 0.0
        %1997 = vmatprep.subr.mxu0 0.0
        %1998 = vmatpush1.msra.mxu0 0.0
        %1999 = vmatprep.subr.mxu0 0.0
        %2000 = vmatpush1.msra.mxu0 0.0
        %2001 = vmatprep.subr.mxu0 0.0
        %2002 = vmatpush1.msra.mxu0 0.0
        %2003 = vmatprep.subr.mxu0 0.0
        %2004 = vmatpush1.msra.mxu0 0.0
        %2005 = vmatprep.subr.mxu0 0.0
        %2006 = vmatpush1.msra.mxu0 0.0
        %2007 = vmatprep.subr.mxu0 0.0
        %2008 = vmatpush1.msra.mxu0 0.0
        %2009 = vmatprep.subr.mxu0 0.0
        %2010 = vmatpush1.msra.mxu0 0.0
        %2011 = vmatprep.subr.mxu0 0.0
        %2012 = vmatpush1.msra.mxu0 0.0
        %2013 = vmatprep.subr.mxu0 0.0
        %2014 = vmatpush1.msra.mxu0 0.0
        %2015 = vmatprep.subr.mxu0 0.0
        %2016 = vmatpush1.msra.mxu0 0.0
        %2017 = vmatprep.subr.mxu0 0.0
        %2018 = vmatpush1.msra.mxu0 0.0
        %2019 = vmatprep.subr.mxu0 0.0
        %2020 = vmatpush1.msra.mxu0 0.0
        %2021 = vmatprep.subr.mxu0 0.0
        %2022 = vmatpush1.msra.mxu0 0.0
        %2023 = vmatprep.subr.mxu0 0.0
        %2024 = vmatpush1.msra.mxu0 0.0
        %2025 = vmatprep.subr.mxu0 0.0
        %2026 = vmatpush1.msra.mxu0 0.0
        %2027 = vmatprep.subr.mxu0 0.0
        %2028 = vmatpush1.msra.mxu0 0.0
        %2029 = vmatprep.subr.mxu0 0.0
        %2030 = vmatpush1.msra.mxu0 0.0
        %2031 = vmatprep.subr.mxu0 0.0
        %2032 = vmatpush1.msra.mxu0 0.0
        %2033 = vmatprep.subr.mxu0 0.0
        %2034 = vmatpush1.msra.mxu0 0.0
        %2035 = vmatprep.subr.mxu0 0.0
        %2036 = vmatpush1.msra.mxu0 0.0
        %2037 = vmatprep.subr.mxu0 0.0
        %2038 = vmatpush1.msra.mxu0 0.0
        %2039 = vmatprep.subr.mxu0 0.0
        %2040 = vmatpush1.msra.mxu0 0.0
        %2041 = vmatprep.mubr.f32.mxu0 0.0
        %2042 = vmatmul.mubr.f32.gmra.mrb[0].mxu0 %v1972
        %v2043 = vpop.f32.mrb[0].mxu0
        %v2044 = vadd.f32 0.0, %v2043
        %v2045 = vpop.f32.mrb[0].mxu0
        %2046 = vmatprep.mubr.f32.mxu0 0.0
        %2047 = vmatmul.mubr.f32.gmra.mrb[0].mxu0 %v1975
        %v2048 = vpop.f32.mrb[0].mxu0
        %v2049 = vadd.f32 0.0, %v2048
        %v2050 = vpop.f32.mrb[0].mxu0
        %2051 = vdwg.mxu0
        %2053 = vset.pattern.permute.xlu0 0
        %2054 = vperm.xlu0 %2053, %v2044
        %v2055 = vpop.permute.xlu0 %2054
        %2058 = vset.pattern.permute.xlu0 0
        %2059 = vperm.xlu0 %2058, %v2049
        %v2060 = vpop.permute.xlu0 %2059
        %v2062 = vsub.f32 %v1967, %v2055
        %v2063 = vsub.f32 %v1968, %v2060
        %v2064 = vmul.f32 %v2062, %v2062
        %v2065 = vmul.f32 %v2063, %v2063
        %v2067 = vsel %vm1063, %v2064, 0
        %v2070 = vsel %vm1063, %v2065, 0
        %2072 = vmatprep.subr.mxu0 0.0
        %2073 = vmatpush1.msra.mxu0 0.03125
        %2074 = vmatprep.subr.mxu0 0.0
        %2075 = vmatpush1.msra.mxu0 0.03125
        %2076 = vmatprep.subr.mxu0 0.0
        %2077 = vmatpush1.msra.mxu0 0.03125
        %2078 = vmatprep.subr.mxu0 0.0
        %2079 = vmatpush1.msra.mxu0 0.03125
        %2080 = vmatprep.subr.mxu0 0.0
        %2081 = vmatpush1.msra.mxu0 0.0
        %2082 = vmatprep.subr.mxu0 0.0
        %2083 = vmatpush1.msra.mxu0 0.0
        %2084 = vmatprep.subr.mxu0 0.0
        %2085 = vmatpush1.msra.mxu0 0.0
        %2086 = vmatprep.subr.mxu0 0.0
        %2087 = vmatpush1.msra.mxu0 0.0
        %2088 = vmatprep.subr.mxu0 0.0
        %2089 = vmatpush1.msra.mxu0 0.0
        %2090 = vmatprep.subr.mxu0 0.0
        %2091 = vmatpush1.msra.mxu0 0.0
        %2092 = vmatprep.subr.mxu0 0.0
        %2093 = vmatpush1.msra.mxu0 0.0
        %2094 = vmatprep.subr.mxu0 0.0
        %2095 = vmatpush1.msra.mxu0 0.0
        %2096 = vmatprep.subr.mxu0 0.0
        %2097 = vmatpush1.msra.mxu0 0.0
        %2098 = vmatprep.subr.mxu0 0.0
        %2099 = vmatpush1.msra.mxu0 0.0
        %2100 = vmatprep.subr.mxu0 0.0
        %2101 = vmatpush1.msra.mxu0 0.0
        %2102 = vmatprep.subr.mxu0 0.0
        %2103 = vmatpush1.msra.mxu0 0.0
        %2104 = vmatprep.subr.mxu0 0.0
        %2105 = vmatpush1.msra.mxu0 0.0
        %2106 = vmatprep.subr.mxu0 0.0
        %2107 = vmatpush1.msra.mxu0 0.0
        %2108 = vmatprep.subr.mxu0 0.0
        %2109 = vmatpush1.msra.mxu0 0.0
        %2110 = vmatprep.subr.mxu0 0.0
        %2111 = vmatpush1.msra.mxu0 0.0
        %2112 = vmatprep.subr.mxu0 0.0
        %2113 = vmatpush1.msra.mxu0 0.0
        %2114 = vmatprep.subr.mxu0 0.0
        %2115 = vmatpush1.msra.mxu0 0.0
        %2116 = vmatprep.subr.mxu0 0.0
        %2117 = vmatpush1.msra.mxu0 0.0
        %2118 = vmatprep.subr.mxu0 0.0
        %2119 = vmatpush1.msra.mxu0 0.0
        %2120 = vmatprep.subr.mxu0 0.0
        %2121 = vmatpush1.msra.mxu0 0.0
        %2122 = vmatprep.subr.mxu0 0.0
        %2123 = vmatpush1.msra.mxu0 0.0
        %2124 = vmatprep.subr.mxu0 0.0
        %2125 = vmatpush1.msra.mxu0 0.0
        %2126 = vmatprep.subr.mxu0 0.0
        %2127 = vmatpush1.msra.mxu0 0.0
        %2128 = vmatprep.subr.mxu0 0.0
        %2129 = vmatpush1.msra.mxu0 0.0
        %2130 = vmatprep.subr.mxu0 0.0
        %2131 = vmatpush1.msra.mxu0 0.0
        %2132 = vmatprep.subr.mxu0 0.0
        %2133 = vmatpush1.msra.mxu0 0.0
        %2134 = vmatprep.subr.mxu0 0.0
        %2135 = vmatpush1.msra.mxu0 0.0
        %2136 = vmatprep.mubr.f32.mxu0 0.0
        %2137 = vmatmul.mubr.f32.gmra.mrb[0].mxu0 %v2067
        %v2138 = vpop.f32.mrb[0].mxu0
        %v2139 = vadd.f32 1e-05, %v2138
        %v2140 = vpop.f32.mrb[0].mxu0
        %2141 = vmatprep.mubr.f32.mxu0 0.0
        %2142 = vmatmul.mubr.f32.gmra.mrb[0].mxu0 %v2070
        %v2143 = vpop.f32.mrb[0].mxu0
        %v2144 = vadd.f32 1e-05, %v2143
        %v2145 = vpop.f32.mrb[0].mxu0
        %2146 = vdwg.mxu0
        %v2147 = vrsqrt.pop %v2139
        %v2148 = vrsqrt.pop %v2144
        %2150 = vset.pattern.permute.xlu0 0
        %2151 = vperm.xlu0 %2150, %v2147
        %v2152 = vpop.permute.xlu0 %2151
        %2155 = vset.pattern.permute.xlu0 0
        %2156 = vperm.xlu0 %2155, %v2148
        %v2157 = vpop.permute.xlu0 %2156
        %v2159 = vmul.f32 %v2062, %v2152
        %v2160 = vmul.f32 %v2063, %v2157
        %v2162 = vlaneseq
        %v2163 = vshrl.u32 %v2162, 7
        %v2164 = vsub.s32 0, %v2163
        %v2165 = vrot.slane %v1969, %v2164
        %v2167 = vmul.f32 %v2159, %v2165
        %v2168 = vmul.f32 %v2160, %v2165
        %v2170 = vlaneseq
        %v2171 = vshrl.u32 %v2170, 7
        %v2172 = vsub.s32 0, %v2171
        %v2173 = vrot.slane %v1970, %v2172
        %v2175 = vadd.f32 %v2167, %v2173
        %v2176 = vadd.f32 %v2168, %v2173
        %v2177 = vld [vmem:[%s881] sm:$0xff]
        %v2178 = vld [vmem:[%s881 + $0x8] sm:$0xff]
        %v2179 = vld [vmem:[%s881 + $0x10] sm:$0xff]
        %v2180 = vld [vmem:[%s881 + $0x18] sm:$0xff]
        %v2181 = vld [vmem:[%s884] sm:$0x1]
        %v2183 = vlaneseq
        %v2184 = vshrl.u32 %v2183, 7
        %v2185 = vsub.s32 0, %v2184
        %v2186 = vrot.slane %v2181, %v2185
        %v2189 = vsel %vm1063, %v2175, 0
        %v2192 = vsel %vm1063, %v2176, 0
        %2194 = vmatprep.subr.mxu0 0.0
        %2195 = vmatpush1.msra.mxu0 %v2177
        %2196 = vmatprep.subr.mxu0 0.0
        %2197 = vmatpush1.msra.mxu0 %v2178
        %2198 = vmatprep.subr.mxu0 0.0
        %2199 = vmatpush1.msra.mxu0 %v2179
        %2200 = vmatprep.subr.mxu0 0.0
        %2201 = vmatpush1.msra.mxu0 %v2180
        %2202 = vmatprep.subr.mxu0 0.0
        %2203 = vmatpush1.msra.mxu0 0.0
        %2204 = vmatprep.subr.mxu0 0.0
        %2205 = vmatpush1.msra.mxu0 0.0
        %2206 = vmatprep.subr.mxu0 0.0
        %2207 = vmatpush1.msra.mxu0 0.0
        %2208 = vmatprep.subr.mxu0 0.0
        %2209 = vmatpush1.msra.mxu0 0.0
        %2210 = vmatprep.subr.mxu0 0.0
        %2211 = vmatpush1.msra.mxu0 0.0
        %2212 = vmatprep.subr.mxu0 0.0
        %2213 = vmatpush1.msra.mxu0 0.0
        %2214 = vmatprep.subr.mxu0 0.0
        %2215 = vmatpush1.msra.mxu0 0.0
        %2216 = vmatprep.subr.mxu0 0.0
        %2217 = vmatpush1.msra.mxu0 0.0
        %2218 = vmatprep.subr.mxu0 0.0
        %2219 = vmatpush1.msra.mxu0 0.0
        %2220 = vmatprep.subr.mxu0 0.0
        %2221 = vmatpush1.msra.mxu0 0.0
        %2222 = vmatprep.subr.mxu0 0.0
        %2223 = vmatpush1.msra.mxu0 0.0
        %2224 = vmatprep.subr.mxu0 0.0
        %2225 = vmatpush1.msra.mxu0 0.0
        %2226 = vmatprep.subr.mxu0 0.0
        %2227 = vmatpush1.msra.mxu0 0.0
        %2228 = vmatprep.subr.mxu0 0.0
        %2229 = vmatpush1.msra.mxu0 0.0
        %2230 = vmatprep.subr.mxu0 0.0
        %2231 = vmatpush1.msra.mxu0 0.0
        %2232 = vmatprep.subr.mxu0 0.0
        %2233 = vmatpush1.msra.mxu0 0.0
        %2234 = vmatprep.subr.mxu0 0.0
        %2235 = vmatpush1.msra.mxu0 0.0
        %2236 = vmatprep.subr.mxu0 0.0
        %2237 = vmatpush1.msra.mxu0 0.0
        %2238 = vmatprep.subr.mxu0 0.0
        %2239 = vmatpush1.msra.mxu0 0.0
        %2240 = vmatprep.subr.mxu0 0.0
        %2241 = vmatpush1.msra.mxu0 0.0
        %2242 = vmatprep.subr.mxu0 0.0
        %2243 = vmatpush1.msra.mxu0 0.0
        %2244 = vmatprep.subr.mxu0 0.0
        %2245 = vmatpush1.msra.mxu0 0.0
        %2246 = vmatprep.subr.mxu0 0.0
        %2247 = vmatpush1.msra.mxu0 0.0
        %2248 = vmatprep.subr.mxu0 0.0
        %2249 = vmatpush1.msra.mxu0 0.0
        %2250 = vmatprep.subr.mxu0 0.0
        %2251 = vmatpush1.msra.mxu0 0.0
        %2252 = vmatprep.subr.mxu0 0.0
        %2253 = vmatpush1.msra.mxu0 0.0
        %2254 = vmatprep.subr.mxu0 0.0
        %2255 = vmatpush1.msra.mxu0 0.0
        %2256 = vmatprep.subr.mxu0 0.0
        %2257 = vmatpush1.msra.mxu0 0.0
        %2258 = vmatprep.mubr.f32.mxu0 0.0
        %2259 = vmatmul.mubr.f32.gmra.mrb[0].mxu0 %v2189
        %v2260 = vpop.f32.mrb[0].mxu0
        %v2261 = vadd.f32 %v2186, %v2260
        %v2262 = vpop.f32.mrb[0].mxu0
        %2263 = vmatprep.mubr.f32.mxu0 0.0
        %2264 = vmatmul.mubr.f32.gmra.mrb[0].mxu0 %v2192
        %v2265 = vpop.f32.mrb[0].mxu0
        %v2266 = vadd.f32 %v2186, %v2265
        %v2267 = vpop.f32.mrb[0].mxu0
        %2268 = vdwg.mxu0
        %v2269 = vmax.f32 %v2261, 0.0
        %v2270 = vmax.f32 %v2266, 0.0
        %v2271 = vld [vmem:[%s889] sm:$0xff]
        %v2272 = vld [vmem:[%s889 + $0x8] sm:$0xff]
        %v2273 = vld [vmem:[%s889 + $0x10] sm:$0xff]
        %v2274 = vld [vmem:[%s889 + $0x18] sm:$0xff]
        %v2275 = vld [vmem:[%s889 + $0x20] sm:$0xff]
        %v2276 = vld [vmem:[%s889 + $0x28] sm:$0xff]
        %v2277 = vld [vmem:[%s889 + $0x30] sm:$0xff]
        %v2278 = vld [vmem:[%s889 + $0x38] sm:$0xff]
        %v2279 = vld [vmem:[%s892] sm:$0x1]
        %v2281 = vlaneseq
        %v2282 = vshrl.u32 %v2281, 7
        %v2283 = vsub.s32 0, %v2282
        %v2284 = vrot.slane %v2279, %v2283
        %vm2286 = vcmask 523264
        %v2288 = vsel %vm2286, %v2269, 0
        %v2291 = vsel %vm2286, %v2270, 0
        %2293 = vmatprep.subr.mxu0 0.0
        %2294 = vmatpush1.msra.mxu0 %v2271
        %2295 = vmatprep.subr.mxu0 0.0
        %2296 = vmatpush1.msra.mxu0 %v2272
        %2297 = vmatprep.subr.mxu0 0.0
        %2298 = vmatpush1.msra.mxu0 %v2273
        %2299 = vmatprep.subr.mxu0 0.0
        %2300 = vmatpush1.msra.mxu0 %v2274
        %2301 = vmatprep.subr.mxu0 0.0
        %2302 = vmatpush1.msra.mxu0 %v2275
        %2303 = vmatprep.subr.mxu0 0.0
        %2304 = vmatpush1.msra.mxu0 %v2276
        %2305 = vmatprep.subr.mxu0 0.0
        %2306 = vmatpush1.msra.mxu0 %v2277
        %2307 = vmatprep.subr.mxu0 0.0
        %2308 = vmatpush1.msra.mxu0 %v2278
        %2309 = vmatprep.subr.mxu0 0.0
        %2310 = vmatpush1.msra.mxu0 0.0
        %2311 = vmatprep.subr.mxu0 0.0
        %2312 = vmatpush1.msra.mxu0 0.0
        %2313 = vmatprep.subr.mxu0 0.0
        %2314 = vmatpush1.msra.mxu0 0.0
        %2315 = vmatprep.subr.mxu0 0.0
        %2316 = vmatpush1.msra.mxu0 0.0
        %2317 = vmatprep.subr.mxu0 0.0
        %2318 = vmatpush1.msra.mxu0 0.0
        %2319 = vmatprep.subr.mxu0 0.0
        %2320 = vmatpush1.msra.mxu0 0.0
        %2321 = vmatprep.subr.mxu0 0.0
        %2322 = vmatpush1.msra.mxu0 0.0
        %2323 = vmatprep.subr.mxu0 0.0
        %2324 = vmatpush1.msra.mxu0 0.0
        %2325 = vmatprep.subr.mxu0 0.0
        %2326 = vmatpush1.msra.mxu0 0.0
        %2327 = vmatprep.subr.mxu0 0.0
        %2328 = vmatpush1.msra.mxu0 0.0
        %2329 = vmatprep.subr.mxu0 0.0
        %2330 = vmatpush1.msra.mxu0 0.0
        %2331 = vmatprep.subr.mxu0 0.0
        %2332 = vmatpush1.msra.mxu0 0.0
        %2333 = vmatprep.subr.mxu0 0.0
        %2334 = vmatpush1.msra.mxu0 0.0
        %2335 = vmatprep.subr.mxu0 0.0
        %2336 = vmatpush1.msra.mxu0 0.0
        %2337 = vmatprep.subr.mxu0 0.0
        %2338 = vmatpush1.msra.mxu0 0.0
        %2339 = vmatprep.subr.mxu0 0.0
        %2340 = vmatpush1.msra.mxu0 0.0
        %2341 = vmatprep.subr.mxu0 0.0
        %2342 = vmatpush1.msra.mxu0 0.0
        %2343 = vmatprep.subr.mxu0 0.0
        %2344 = vmatpush1.msra.mxu0 0.0
        %2345 = vmatprep.subr.mxu0 0.0
        %2346 = vmatpush1.msra.mxu0 0.0
        %2347 = vmatprep.subr.mxu0 0.0
        %2348 = vmatpush1.msra.mxu0 0.0
        %2349 = vmatprep.subr.mxu0 0.0
        %2350 = vmatpush1.msra.mxu0 0.0
        %2351 = vmatprep.subr.mxu0 0.0
        %2352 = vmatpush1.msra.mxu0 0.0
        %2353 = vmatprep.subr.mxu0 0.0
        %2354 = vmatpush1.msra.mxu0 0.0
        %2355 = vmatprep.subr.mxu0 0.0
        %2356 = vmatpush1.msra.mxu0 0.0
        %2357 = vmatprep.mubr.f32.mxu0 0.0
        %2358 = vmatmul.mubr.f32.gmra.mrb[0].mxu0 %v2288
        %v2359 = vpop.f32.mrb[0].mxu0
        %v2360 = vadd.f32 %v2284, %v2359
        %v2361 = vpop.f32.mrb[0].mxu0
        %2362 = vmatprep.mubr.f32.mxu0 0.0
        %2363 = vmatmul.mubr.f32.gmra.mrb[0].mxu0 %v2291
        %v2364 = vpop.f32.mrb[0].mxu0
        %v2365 = vadd.f32 %v2284, %v2364
        %v2366 = vpop.f32.mrb[0].mxu0
        %2367 = vdwg.mxu0
        %v2368 = vadd.f32 %v2175, %v2360
        %v2369 = vadd.f32 %v2176, %v2365
        %v2370 = vld [vmem:[%s895] sm:$0x1]
        %v2371 = vld [vmem:[%s898] sm:$0x1]
        %v2373 = vsel %vm1063, %v2368, 0
        %v2376 = vsel %vm1063, %v2369, 0
        %2378 = vmatprep.subr.mxu0 0.0
        %2379 = vmatpush1.msra.mxu0 0.03125
        %2380 = vmatprep.subr.mxu0 0.0
        %2381 = vmatpush1.msra.mxu0 0.03125
        %2382 = vmatprep.subr.mxu0 0.0
        %2383 = vmatpush1.msra.mxu0 0.03125
        %2384 = vmatprep.subr.mxu0 0.0
        %2385 = vmatpush1.msra.mxu0 0.03125
        %2386 = vmatprep.subr.mxu0 0.0
        %2387 = vmatpush1.msra.mxu0 0.0
        %2388 = vmatprep.subr.mxu0 0.0
        %2389 = vmatpush1.msra.mxu0 0.0
        %2390 = vmatprep.subr.mxu0 0.0
        %2391 = vmatpush1.msra.mxu0 0.0
        %2392 = vmatprep.subr.mxu0 0.0
        %2393 = vmatpush1.msra.mxu0 0.0
        %2394 = vmatprep.subr.mxu0 0.0
        %2395 = vmatpush1.msra.mxu0 0.0
        %2396 = vmatprep.subr.mxu0 0.0
        %2397 = vmatpush1.msra.mxu0 0.0
        %2398 = vmatprep.subr.mxu0 0.0
        %2399 = vmatpush1.msra.mxu0 0.0
        %2400 = vmatprep.subr.mxu0 0.0
        %2401 = vmatpush1.msra.mxu0 0.0
        %2402 = vmatprep.subr.mxu0 0.0
        %2403 = vmatpush1.msra.mxu0 0.0
        %2404 = vmatprep.subr.mxu0 0.0
        %2405 = vmatpush1.msra.mxu0 0.0
        %2406 = vmatprep.subr.mxu0 0.0
        %2407 = vmatpush1.msra.mxu0 0.0
        %2408 = vmatprep.subr.mxu0 0.0
        %2409 = vmatpush1.msra.mxu0 0.0
        %2410 = vmatprep.subr.mxu0 0.0
        %2411 = vmatpush1.msra.mxu0 0.0
        %2412 = vmatprep.subr.mxu0 0.0
        %2413 = vmatpush1.msra.mxu0 0.0
        %2414 = vmatprep.subr.mxu0 0.0
        %2415 = vmatpush1.msra.mxu0 0.0
        %2416 = vmatprep.subr.mxu0 0.0
        %2417 = vmatpush1.msra.mxu0 0.0
        %2418 = vmatprep.subr.mxu0 0.0
        %2419 = vmatpush1.msra.mxu0 0.0
        %2420 = vmatprep.subr.mxu0 0.0
        %2421 = vmatpush1.msra.mxu0 0.0
        %2422 = vmatprep.subr.mxu0 0.0
        %2423 = vmatpush1.msra.mxu0 0.0
        %2424 = vmatprep.subr.mxu0 0.0
        %2425 = vmatpush1.msra.mxu0 0.0
        %2426 = vmatprep.subr.mxu0 0.0
        %2427 = vmatpush1.msra.mxu0 0.0
        %2428 = vmatprep.subr.mxu0 0.0
        %2429 = vmatpush1.msra.mxu0 0.0
        %2430 = vmatprep.subr.mxu0 0.0
        %2431 = vmatpush1.msra.mxu0 0.0
        %2432 = vmatprep.subr.mxu0 0.0
        %2433 = vmatpush1.msra.mxu0 0.0
        %2434 = vmatprep.subr.mxu0 0.0
        %2435 = vmatpush1.msra.mxu0 0.0
        %2436 = vmatprep.subr.mxu0 0.0
        %2437 = vmatpush1.msra.mxu0 0.0
        %2438 = vmatprep.subr.mxu0 0.0
        %2439 = vmatpush1.msra.mxu0 0.0
        %2440 = vmatprep.subr.mxu0 0.0
        %2441 = vmatpush1.msra.mxu0 0.0
        %2442 = vmatprep.mubr.f32.mxu0 0.0
        %2443 = vmatmul.mubr.f32.gmra.mrb[0].mxu0 %v2373
        %v2444 = vpop.f32.mrb[0].mxu0
        %v2445 = vadd.f32 0.0, %v2444
        %v2446 = vpop.f32.mrb[0].mxu0
        %2447 = vmatprep.mubr.f32.mxu0 0.0
        %2448 = vmatmul.mubr.f32.gmra.mrb[0].mxu0 %v2376
        %v2449 = vpop.f32.mrb[0].mxu0
        %v2450 = vadd.f32 0.0, %v2449
        %v2451 = vpop.f32.mrb[0].mxu0
        %2452 = vdwg.mxu0
        %2454 = vset.pattern.permute.xlu0 0
        %2455 = vperm.xlu0 %2454, %v2445
        %v2456 = vpop.permute.xlu0 %2455
        %2459 = vset.pattern.permute.xlu0 0
        %2460 = vperm.xlu0 %2459, %v2450
        %v2461 = vpop.permute.xlu0 %2460
        %v2463 = vsub.f32 %v2368, %v2456
        %v2464 = vsub.f32 %v2369, %v2461
        %v2465 = vmul.f32 %v2463, %v2463
        %v2466 = vmul.f32 %v2464, %v2464
        %v2468 = vsel %vm1063, %v2465, 0
        %v2471 = vsel %vm1063, %v2466, 0
        %2473 = vmatprep.subr.mxu0 0.0
        %2474 = vmatpush1.msra.mxu0 0.03125
        %2475 = vmatprep.subr.mxu0 0.0
        %2476 = vmatpush1.msra.mxu0 0.03125
        %2477 = vmatprep.subr.mxu0 0.0
        %2478 = vmatpush1.msra.mxu0 0.03125
        %2479 = vmatprep.subr.mxu0 0.0
        %2480 = vmatpush1.msra.mxu0 0.03125
        %2481 = vmatprep.subr.mxu0 0.0
        %2482 = vmatpush1.msra.mxu0 0.0
        %2483 = vmatprep.subr.mxu0 0.0
        %2484 = vmatpush1.msra.mxu0 0.0
        %2485 = vmatprep.subr.mxu0 0.0
        %2486 = vmatpush1.msra.mxu0 0.0
        %2487 = vmatprep.subr.mxu0 0.0
        %2488 = vmatpush1.msra.mxu0 0.0
        %2489 = vmatprep.subr.mxu0 0.0
        %2490 = vmatpush1.msra.mxu0 0.0
        %2491 = vmatprep.subr.mxu0 0.0
        %2492 = vmatpush1.msra.mxu0 0.0
        %2493 = vmatprep.subr.mxu0 0.0
        %2494 = vmatpush1.msra.mxu0 0.0
        %2495 = vmatprep.subr.mxu0 0.0
        %2496 = vmatpush1.msra.mxu0 0.0
        %2497 = vmatprep.subr.mxu0 0.0
        %2498 = vmatpush1.msra.mxu0 0.0
        %2499 = vmatprep.subr.mxu0 0.0
        %2500 = vmatpush1.msra.mxu0 0.0
        %2501 = vmatprep.subr.mxu0 0.0
        %2502 = vmatpush1.msra.mxu0 0.0
        %2503 = vmatprep.subr.mxu0 0.0
        %2504 = vmatpush1.msra.mxu0 0.0
        %2505 = vmatprep.subr.mxu0 0.0
        %2506 = vmatpush1.msra.mxu0 0.0
        %2507 = vmatprep.subr.mxu0 0.0
        %2508 = vmatpush1.msra.mxu0 0.0
        %2509 = vmatprep.subr.mxu0 0.0
        %2510 = vmatpush1.msra.mxu0 0.0
        %2511 = vmatprep.subr.mxu0 0.0
        %2512 = vmatpush1.msra.mxu0 0.0
        %2513 = vmatprep.subr.mxu0 0.0
        %2514 = vmatpush1.msra.mxu0 0.0
        %2515 = vmatprep.subr.mxu0 0.0
        %2516 = vmatpush1.msra.mxu0 0.0
        %2517 = vmatprep.subr.mxu0 0.0
        %2518 = vmatpush1.msra.mxu0 0.0
        %2519 = vmatprep.subr.mxu0 0.0
        %2520 = vmatpush1.msra.mxu0 0.0
        %2521 = vmatprep.subr.mxu0 0.0
        %2522 = vmatpush1.msra.mxu0 0.0
        %2523 = vmatprep.subr.mxu0 0.0
        %2524 = vmatpush1.msra.mxu0 0.0
        %2525 = vmatprep.subr.mxu0 0.0
        %2526 = vmatpush1.msra.mxu0 0.0
        %2527 = vmatprep.subr.mxu0 0.0
        %2528 = vmatpush1.msra.mxu0 0.0
        %2529 = vmatprep.subr.mxu0 0.0
        %2530 = vmatpush1.msra.mxu0 0.0
        %2531 = vmatprep.subr.mxu0 0.0
        %2532 = vmatpush1.msra.mxu0 0.0
        %2533 = vmatprep.subr.mxu0 0.0
        %2534 = vmatpush1.msra.mxu0 0.0
        %2535 = vmatprep.subr.mxu0 0.0
        %2536 = vmatpush1.msra.mxu0 0.0
        %2537 = vmatprep.mubr.f32.mxu0 0.0
        %2538 = vmatmul.mubr.f32.gmra.mrb[0].mxu0 %v2468
        %v2539 = vpop.f32.mrb[0].mxu0
        %v2540 = vadd.f32 1e-05, %v2539
        %v2541 = vpop.f32.mrb[0].mxu0
        %2542 = vmatprep.mubr.f32.mxu0 0.0
        %2543 = vmatmul.mubr.f32.gmra.mrb[0].mxu0 %v2471
        %v2544 = vpop.f32.mrb[0].mxu0
        %v2545 = vadd.f32 1e-05, %v2544
        %v2546 = vpop.f32.mrb[0].mxu0
        %2547 = vdwg.mxu0
        %v2548 = vrsqrt.pop %v2540
        %v2549 = vrsqrt.pop %v2545
        %2551 = vset.pattern.permute.xlu0 0
        %2552 = vperm.xlu0 %2551, %v2548
        %v2553 = vpop.permute.xlu0 %2552
        %2556 = vset.pattern.permute.xlu0 0
        %2557 = vperm.xlu0 %2556, %v2549
        %v2558 = vpop.permute.xlu0 %2557
        %v2560 = vmul.f32 %v2463, %v2553
        %v2561 = vmul.f32 %v2464, %v2558
        %v2563 = vlaneseq
        %v2564 = vshrl.u32 %v2563, 7
        %v2565 = vsub.s32 0, %v2564
        %v2566 = vrot.slane %v2370, %v2565
        %v2568 = vmul.f32 %v2560, %v2566
        %v2569 = vmul.f32 %v2561, %v2566
        %v2571 = vlaneseq
        %v2572 = vshrl.u32 %v2571, 7
        %v2573 = vsub.s32 0, %v2572
        %v2574 = vrot.slane %v2371, %v2573
        %v2576 = vadd.f32 %v2568, %v2574
        %v2577 = vadd.f32 %v2569, %v2574
        %2578 = vst.msk [vmem:[#allocation2] sm:$0xff] %vm1063, %v2576
        %vm2579 = vcmask 256000
        %2580 = vst.msk [vmem:[#allocation2 + $0x8] sm:$0x7] %vm2579, %v2577
        %p2581 = scmp.eq.s32.totalorder %s39, 1
        // Predicated region
        $region105: #{pathfinding_transformer_forward.1} parent=99 // pred_check
          %p2582 = pneg %p2581
        $region106: #{pathfinding_transformer_forward.1} parent=99 // pred_check_branch
          %2584 = sbr.rel (%p2582) target = $region108
        $region107: #{pathfinding_transformer_forward.1} parent=99 // pred_region
          %v2586 = vsel %vm1319, 0.09090909, 0
          %v2589 = vsel %vm1338, %v2577, 0
          %2591 = vmatprep.subr.mxu0 0.0
          %2592 = vmatpush1.msra.mxu0 %v2576
          %2593 = vmatprep.subr.mxu0 0.0
          %2594 = vmatpush1.msra.mxu0 %v2589
          %2595 = vmatprep.subr.mxu0 0.0
          %2596 = vmatpush1.msra.mxu0 0.0
          %2597 = vmatprep.subr.mxu0 0.0
          %2598 = vmatpush1.msra.mxu0 0.0
          %2599 = vmatprep.subr.mxu0 0.0
          %2600 = vmatpush1.msra.mxu0 0.0
          %2601 = vmatprep.subr.mxu0 0.0
          %2602 = vmatpush1.msra.mxu0 0.0
          %2603 = vmatprep.subr.mxu0 0.0
          %2604 = vmatpush1.msra.mxu0 0.0
          %2605 = vmatprep.subr.mxu0 0.0
          %2606 = vmatpush1.msra.mxu0 0.0
          %2607 = vmatprep.subr.mxu0 0.0
          %2608 = vmatpush1.msra.mxu0 0.0
          %2609 = vmatprep.subr.mxu0 0.0
          %2610 = vmatpush1.msra.mxu0 0.0
          %2611 = vmatprep.subr.mxu0 0.0
          %2612 = vmatpush1.msra.mxu0 0.0
          %2613 = vmatprep.subr.mxu0 0.0
          %2614 = vmatpush1.msra.mxu0 0.0
          %2615 = vmatprep.subr.mxu0 0.0
          %2616 = vmatpush1.msra.mxu0 0.0
          %2617 = vmatprep.subr.mxu0 0.0
          %2618 = vmatpush1.msra.mxu0 0.0
          %2619 = vmatprep.subr.mxu0 0.0
          %2620 = vmatpush1.msra.mxu0 0.0
          %2621 = vmatprep.subr.mxu0 0.0
          %2622 = vmatpush1.msra.mxu0 0.0
          %2623 = vmatprep.subr.mxu0 0.0
          %2624 = vmatpush1.msra.mxu0 0.0
          %2625 = vmatprep.subr.mxu0 0.0
          %2626 = vmatpush1.msra.mxu0 0.0
          %2627 = vmatprep.subr.mxu0 0.0
          %2628 = vmatpush1.msra.mxu0 0.0
          %2629 = vmatprep.subr.mxu0 0.0
          %2630 = vmatpush1.msra.mxu0 0.0
          %2631 = vmatprep.subr.mxu0 0.0
          %2632 = vmatpush1.msra.mxu0 0.0
          %2633 = vmatprep.subr.mxu0 0.0
          %2634 = vmatpush1.msra.mxu0 0.0
          %2635 = vmatprep.subr.mxu0 0.0
          %2636 = vmatpush1.msra.mxu0 0.0
          %2637 = vmatprep.subr.mxu0 0.0
          %2638 = vmatpush1.msra.mxu0 0.0
          %2639 = vmatprep.subr.mxu0 0.0
          %2640 = vmatpush1.msra.mxu0 0.0
          %2641 = vmatprep.subr.mxu0 0.0
          %2642 = vmatpush1.msra.mxu0 0.0
          %2643 = vmatprep.subr.mxu0 0.0
          %2644 = vmatpush1.msra.mxu0 0.0
          %2645 = vmatprep.subr.mxu0 0.0
          %2646 = vmatpush1.msra.mxu0 0.0
          %2647 = vmatprep.subr.mxu0 0.0
          %2648 = vmatpush1.msra.mxu0 0.0
          %2649 = vmatprep.subr.mxu0 0.0
          %2650 = vmatpush1.msra.mxu0 0.0
          %2651 = vmatprep.subr.mxu0 0.0
          %2652 = vmatpush1.msra.mxu0 0.0
          %2653 = vmatprep.subr.mxu0 0.0
          %2654 = vmatpush1.msra.mxu0 0.0
          %2655 = vmatprep.mubr.f32.mxu0 0.0
          %2656 = vmatmul.mubr.f32.gmra.mrb[0].mxu0 %v2586
          %v2657 = vpop.f32.mrb[0].mxu0
          %v2658 = vadd.f32 0.0, %v2657
          %v2659 = vpop.f32.mrb[0].mxu0
          %2660 = vdwg.mxu0
          %v2661 = vld [vmem:[%s18] sm:$0xff]
          %v2662 = vld [vmem:[%s18 + $0x8] sm:$0xff]
          %v2663 = vld [vmem:[%s18 + $0x10] sm:$0xff]
          %v2664 = vld [vmem:[%s18 + $0x18] sm:$0xff]
          %v2665 = vld [vmem:[%s19] sm:$0x1]
          %v2667 = vsel %vm1063, %v2658, 0
          %2669 = vmatprep.subr.mxu0 0.0
          %2670 = vmatpush1.msra.mxu0 %v2661
          %2671 = vmatprep.subr.mxu0 0.0
          %2672 = vmatpush1.msra.mxu0 %v2662
          %2673 = vmatprep.subr.mxu0 0.0
          %2674 = vmatpush1.msra.mxu0 %v2663
          %2675 = vmatprep.subr.mxu0 0.0
          %2676 = vmatpush1.msra.mxu0 %v2664
          %2677 = vmatprep.subr.mxu0 0.0
          %2678 = vmatpush1.msra.mxu0 0.0
          %2679 = vmatprep.subr.mxu0 0.0
          %2680 = vmatpush1.msra.mxu0 0.0
          %2681 = vmatprep.subr.mxu0 0.0
          %2682 = vmatpush1.msra.mxu0 0.0
          %2683 = vmatprep.subr.mxu0 0.0
          %2684 = vmatpush1.msra.mxu0 0.0
          %2685 = vmatprep.subr.mxu0 0.0
          %2686 = vmatpush1.msra.mxu0 0.0
          %2687 = vmatprep.subr.mxu0 0.0
          %2688 = vmatpush1.msra.mxu0 0.0
          %2689 = vmatprep.subr.mxu0 0.0
          %2690 = vmatpush1.msra.mxu0 0.0
          %2691 = vmatprep.subr.mxu0 0.0
          %2692 = vmatpush1.msra.mxu0 0.0
          %2693 = vmatprep.subr.mxu0 0.0
          %2694 = vmatpush1.msra.mxu0 0.0
          %2695 = vmatprep.subr.mxu0 0.0
          %2696 = vmatpush1.msra.mxu0 0.0
          %2697 = vmatprep.subr.mxu0 0.0
          %2698 = vmatpush1.msra.mxu0 0.0
          %2699 = vmatprep.subr.mxu0 0.0
          %2700 = vmatpush1.msra.mxu0 0.0
          %2701 = vmatprep.subr.mxu0 0.0
          %2702 = vmatpush1.msra.mxu0 0.0
          %2703 = vmatprep.subr.mxu0 0.0
          %2704 = vmatpush1.msra.mxu0 0.0
          %2705 = vmatprep.subr.mxu0 0.0
          %2706 = vmatpush1.msra.mxu0 0.0
          %2707 = vmatprep.subr.mxu0 0.0
          %2708 = vmatpush1.msra.mxu0 0.0
          %2709 = vmatprep.subr.mxu0 0.0
          %2710 = vmatpush1.msra.mxu0 0.0
          %2711 = vmatprep.subr.mxu0 0.0
          %2712 = vmatpush1.msra.mxu0 0.0
          %2713 = vmatprep.subr.mxu0 0.0
          %2714 = vmatpush1.msra.mxu0 0.0
          %2715 = vmatprep.subr.mxu0 0.0
          %2716 = vmatpush1.msra.mxu0 0.0
          %2717 = vmatprep.subr.mxu0 0.0
          %2718 = vmatpush1.msra.mxu0 0.0
          %2719 = vmatprep.subr.mxu0 0.0
          %2720 = vmatpush1.msra.mxu0 0.0
          %2721 = vmatprep.subr.mxu0 0.0
          %2722 = vmatpush1.msra.mxu0 0.0
          %2723 = vmatprep.subr.mxu0 0.0
          %2724 = vmatpush1.msra.mxu0 0.0
          %2725 = vmatprep.subr.mxu0 0.0
          %2726 = vmatpush1.msra.mxu0 0.0
          %2727 = vmatprep.subr.mxu0 0.0
          %2728 = vmatpush1.msra.mxu0 0.0
          %2729 = vmatprep.subr.mxu0 0.0
          %2730 = vmatpush1.msra.mxu0 0.0
          %2731 = vmatprep.subr.mxu0 0.0
          %2732 = vmatpush1.msra.mxu0 0.0
          %2733 = vmatprep.mubr.f32.mxu0 0.0
          %2734 = vmatmul.mubr.f32.gmra.mrb[0].mxu0 %v2667
          %v2735 = vpop.f32.mrb[0].mxu0
          %v2736 = vadd.f32 %v2665, %v2735
          %v2737 = vpop.f32.mrb[0].mxu0
          %2738 = vdwg.mxu0
          %vm2739 = vcmask 24576
          %2740 = vst.msk [vmem:[%s833] sm:$0x1] %vm2739, %v2736
        $region108: #{pathfinding_transformer_forward.1} parent=99 // pred_fallthru
          _
        %s2741 = sand.u32 %s559, 1
        %s2742 = scalar_lea.sflag [#allocation4], %s2741
        %s2743 = sand.u32 %s559, 1
        %s2744 = scalar_lea.vmem [#allocation3], %s2743
        // Predicated region
        $region109: #{pathfinding_transformer_forward.1} parent=99 // pred_check
          %p2745 = pneg %p569
        $region110: #{pathfinding_transformer_forward.1} parent=99 // pred_check_branch
          %2747 = sbr.rel (%p2745) target = $region112
        $region111: #{pathfinding_transformer_forward.1} parent=99 // pred_region
          %s2749 = ssub.s32 16, 16
          %2750 = vsyncadd %s2742, %s2749
          %s2751 = smul.addr %s38, 16
          %s2752 = scalar_lea.hbm %s20, %s2751
          %s2754 = sshll.u32 %s2744, 4
          %s2755 = int_to_ptr.vmem [resolvable:$true] %s2754
          %2757 = dma.vmem_to_hbm [thread:$0]  %s2755, 16, %s2752, %s2742
        $region112: #{pathfinding_transformer_forward.1} parent=99 // pred_fallthru
          _
      $region100: #{pathfinding_transformer_forward.1} parent=5 // pred_fallthru
        _
      %p2758 = scmp.le.s32.totalorder 2, %s29
      // Predicated region
      $region113: #{pathfinding_transformer_forward.1} parent=5 // pred_check
        %p2759 = pneg %p2758
      $region114: #{pathfinding_transformer_forward.1} parent=5 // pred_check_branch
        %2761 = sbr.rel (%p2759) target = $region116
      $region115: #{pathfinding_transformer_forward.1} parent=5 // pred_region
        %s2762 = ssub.s32 %s29, 2
        // Predicated region
        $region117: #{pathfinding_transformer_forward.1} parent=115 // pred_check
          %p2763 = pneg %p575
        $region118: #{pathfinding_transformer_forward.1} parent=115 // pred_check_branch
          %2765 = sbr.rel (%p2763) target = $region120
        $region119: #{pathfinding_transformer_forward.1} parent=115 // pred_region
          %s2766 = sand.u32 %s560, 1
          %s2767 = scalar_lea.sflag [#allocation4], %s2766
          %s2768 = sand.u32 %s560, 1
          %s2769 = scalar_lea.vmem [#allocation3], %s2768
          %2770 = dma.done %s2767, 16
        $region120: #{pathfinding_transformer_forward.1} parent=115 // pred_fallthru
          _
      $region116: #{pathfinding_transformer_forward.1} parent=5 // pred_fallthru
        _
    $region6: #{pathfinding_transformer_forward.1} parent=1 // loop_footer
      %s33 = sadd.s32 1, %s29
    $region7: #{pathfinding_transformer_forward.1} parent=1 // loop_footer_branch
      %28 = sbr.rel target = $region3
    $region8: #{pathfinding_transformer_forward.1} parent=1 // loop_exit
      _
    %2771 = vsyncpa [#allocation4], 1
    %s2772 = scalar_lea.sflag [#allocation4], 1
    %2773 = vsyncpa %s2772, 1

</llo_original>
